<compile_context>
chip_gen: v5e
topology: v5e:2x2
jax: 0.10.0
libtpu: 0.0.40
codegen_flags: <defaults>
</compile_context>

<pallas_src>
import functools

import numpy as np
import jax
import jax.numpy as jnp
from jax.experimental import pallas as pl
from jax.experimental.pallas import tpu as pltpu


# ----------------------------------------------------------------------------
# Synthetic network config (stands in for utils.parse_cfg(cfg_file)).
# Exercises: conv(+bn+leaky), conv(bias, linear), shortcut, route (single & concat),
# upsample (bilinear), yolo detection heads at two scales.
# ----------------------------------------------------------------------------
NET_CFG = [
    {"type": "net", "height": 32, "width": 32},
    {"type": "convolutional", "filters": 8,  "size": 3, "stride": 1, "pad": 1,
     "batch_normalize": 1, "activation": "leaky"},                                   # 0: 8 x32x32
    {"type": "convolutional", "filters": 16, "size": 3, "stride": 2, "pad": 1,
     "batch_normalize": 1, "activation": "leaky"},                                   # 1: 16x16x16
    {"type": "convolutional", "filters": 8,  "size": 1, "stride": 1, "pad": 1,
     "batch_normalize": 1, "activation": "leaky"},                                   # 2: 8 x16x16
    {"type": "convolutional", "filters": 16, "size": 3, "stride": 1, "pad": 1,
     "batch_normalize": 1, "activation": "leaky"},                                   # 3: 16x16x16
    {"type": "shortcut", "from": -3},                                                # 4: 16x16x16
    {"type": "convolutional", "filters": 24, "size": 1, "stride": 1, "pad": 1,
     "activation": "linear"},                                                        # 5: 24x16x16
    {"type": "yolo", "mask": "3,4,5",
     "anchors": "10,13, 16,30, 33,23, 30,61, 62,45, 59,119", "classes": 3},          # 6
    {"type": "route", "layers": "-3"},                                               # 7: -> layer 4
    {"type": "convolutional", "filters": 8, "size": 1, "stride": 1, "pad": 1,
     "batch_normalize": 1, "activation": "leaky"},                                   # 8: 8 x16x16
    {"type": "upsample", "stride": 2},                                               # 9: 8 x32x32
    {"type": "route", "layers": "-1, 0"},                                            # 10: 16x32x32
    {"type": "convolutional", "filters": 24, "size": 1, "stride": 1, "pad": 1,
     "activation": "linear"},                                                        # 11: 24x32x32
    {"type": "yolo", "mask": "0,1,2",
     "anchors": "10,13, 16,30, 33,23, 30,61, 62,45, 59,119", "classes": 3},          # 12
]

_VMEM = pl.BlockSpec(memory_space=pltpu.MemorySpace.VMEM)
_VMEM_LIMIT_BYTES = 32 * 1024 * 1024   # safe on v5e/v6e (128 MiB) and v7x (64 MiB)


def _pick_tile(m):
    """Largest lane-dense tile (multiple of 128) that evenly divides m."""
    for t in (512, 256, 128):
        if m % t == 0:
            return t
    return m


# ----------------------------------------------------------------------------
# Pallas kernels
# ----------------------------------------------------------------------------
def _gemm_fused_kernel(*refs, slope, has_affine, has_residual):
    # out(Co, tm) = [leaky(]( W(Co,K) @ P(K,tm) ) [* scale + shift])[)] [+ residual]
    w_ref, p_ref = refs[0], refs[1]
    idx = 2
    y = jnp.dot(w_ref[...], p_ref[...], preferred_element_type=jnp.float32)  # bf16 MXU, f32 acc
    if has_affine:
        y = y * refs[idx][...] + refs[idx + 1][...]      # folded BN / bias (f32 epilogue)
        idx += 2
    if slope != 1.0:
        y = jnp.where(y >= 0.0, y, slope * y)            # LeakyReLU
    if has_residual:
        y = y + refs[idx][...]                           # fused shortcut add
        idx += 1
    refs[idx][...] = y                                   # lane-dense store (tm % 128 == 0)


def pallas_gemm_fused(w, p, *, scale=None, shift=None, slope=1.0, residual=None):
    """Lane-dense fused GEMM: out (Co, M) = epilogue(W (Co,K) @ P (K,M))."""
    co, k = w.shape
    k2, m = p.shape
    assert k == k2
    tm = _pick_tile(m)
    grid = (m // tm,)
    has_affine = scale is not None
    has_residual = residual is not None

    args = [w, p]
    in_specs = [
        pl.BlockSpec((co, k), lambda i: (0, 0)),     # small weight, resident
        pl.BlockSpec((k, tm), lambda i: (0, i)),     # patches tiled along M
    ]
    if has_affine:
        args += [scale, shift]
        in_specs += [
            pl.BlockSpec((co, 1), lambda i: (0, 0)),
            pl.BlockSpec((co, 1), lambda i: (0, 0)),
        ]
    if has_residual:
        args.append(residual)
        in_specs.append(pl.BlockSpec((co, tm), lambda i: (0, i)))

    kern = functools.partial(_gemm_fused_kernel, slope=float(slope),
                             has_affine=has_affine, has_residual=has_residual)
    return pl.pallas_call(
        kern,
        out_shape=jax.ShapeDtypeStruct((co, m), jnp.float32),
        grid=grid,
        in_specs=in_specs,
        out_specs=pl.BlockSpec((co, tm), lambda i: (0, i)),
        compiler_params=pltpu.CompilerParams(
            dimension_semantics=("parallel",),
            vmem_limit_bytes=_VMEM_LIMIT_BYTES),
    )(*args)


def _add_kernel(a_ref, b_ref, o_ref):
    o_ref[...] = a_ref[...] + b_ref[...]


def pallas_add(a, b):
    # Fallback shortcut add (only used when epilogue fusion does not apply).
    shape = a.shape
    a2 = a.reshape(shape[0], -1)
    b2 = b.reshape(shape[0], -1)
    out = pl.pallas_call(
        _add_kernel,
        out_shape=jax.ShapeDtypeStruct(a2.shape, a.dtype),
        in_specs=[_VMEM, _VMEM],
        out_specs=_VMEM,
    )(a2, b2)
    return out.reshape(shape)


def _nan_to_num_f32(x):
    big = np.float32(np.finfo(np.float32).max)
    x = jnp.where(jnp.isnan(x), jnp.float32(0.0), x)
    return jnp.clip(x, -big, big)     # maps +/-inf to +/-float32 max, like torch.nan_to_num


def _yolo_kernel(x_ref, aux_ref, o_ref, *, stride):
    # x: (B, D, R) with rows 0,1 = tx,ty ; 2,3 = tw,th ; 4 = obj ; 5.. = class scores
    # aux: (4, R) = [x_offset, y_offset, anchor_w/stride, anchor_h/stride]
    xy = jax.nn.sigmoid(x_ref[:, 0:2, :])
    o_ref[:, 0:2, :] = _nan_to_num_f32((xy + aux_ref[0:2, :][None]) * stride)
    wh = jnp.exp(x_ref[:, 2:4, :])                       # exp only on the 2 rows that need it
    o_ref[:, 2:4, :] = _nan_to_num_f32(aux_ref[2:4, :][None] * wh * stride)
    o_ref[:, 4:, :] = _nan_to_num_f32(jax.nn.sigmoid(x_ref[:, 4:, :]))


# ----------------------------------------------------------------------------
# Layer wrappers (glue + kernel calls).  Activation layout is CNHW: (C, N, H, W).
# ----------------------------------------------------------------------------
def _im2col_cnhw(x, k, stride, padding):
    # x: (C, N, H, W) -> patches (C*K*K, N*Ho*Wo) with row order (c, kh, kw).
    c, n, h, w = x.shape
    ho = (h + 2 * padding - k) // stride + 1
    wo = (w + 2 * padding - k) // stride + 1
    if k == 1 and padding == 0 and stride == 1:
        return x.reshape(c, n * h * w), ho, wo           # 1x1 conv: no materialization
    xp = jnp.pad(x, ((0, 0), (0, 0), (padding, padding), (padding, padding)))
    taps = []
    for di in range(k):
        for dj in range(k):
            taps.append(xp[:, :, di:di + stride * ho:stride, dj:dj + stride * wo:stride])
    pk = jnp.stack(taps, axis=1)                         # (C, K*K, N, Ho, Wo)
    return pk.reshape(c * k * k, n * ho * wo), ho, wo


def pallas_conv(x, w2d, scale, shift, k, stride, padding, slope, residual=None):
    _, n, _, _ = x.shape
    co = w2d.shape[0]
    patches, ho, wo = _im2col_cnhw(x, k, stride, padding)
    patches = patches.astype(jnp.bfloat16)               # bf16 MXU inputs, f32 epilogue
    res2d = None if residual is None else residual.reshape(residual.shape[0], -1)
    out = pallas_gemm_fused(w2d, patches, scale=scale, shift=shift,
                            slope=slope, residual=res2d)  # (Co, N*Ho*Wo) lane-dense
    return out.reshape(co, n, ho, wo)


def _bilinear_matrix(out_size, in_size, scale):
    # PyTorch nn.Upsample(mode='bilinear', align_corners=False) source mapping.
    a = np.zeros((out_size, in_size), np.float32)
    for i in range(out_size):
        src = (i + 0.5) / float(scale) - 0.5
        src = max(src, 0.0)
        i0 = min(int(np.floor(src)), in_size - 1)
        i1 = min(i0 + 1, in_size - 1)
        w1 = src - i0
        a[i, i0] += 1.0 - w1
        a[i, i1] += w1
    return a


def pallas_upsample_bilinear(x, scale):
    # Single fused GEMM: out (C, N*Ho*Wo) = X (C, N*H*W) @ kron(I_N, Ah (x) Aw)^T
    c, n, h, w = x.shape
    ho, wo = int(h * scale), int(w * scale)
    ah = _bilinear_matrix(ho, h, scale)                                  # (Ho, H)
    aw = _bilinear_matrix(wo, w, scale)                                  # (Wo, W)
    interp = np.kron(np.eye(n, dtype=np.float32), np.kron(ah, aw))       # (N*Ho*Wo, N*H*W)
    interp_t = jnp.asarray(interp.T, jnp.bfloat16)                       # (N*H*W, N*Ho*Wo)
    x2d = x.reshape(c, n * h * w).astype(jnp.bfloat16)
    out = pallas_gemm_fused(x2d, interp_t)                               # pure GEMM, no epilogue
    return out.reshape(c, n, ho, wo)


def _get_anchors(anchor_str, mask):
    vals = [int(v) for v in anchor_str.split(',')]
    pairs = [(vals[2 * i], vals[2 * i + 1]) for i in range(len(vals) // 2)]
    return [pairs[int(m)] for m in mask]


def pallas_yolo_math(fmap, anchors, height):
    # fmap: (C=3*D, N, G, G) in layer layout.
    c, n, g, _ = fmap.shape
    stride = height // g
    d = c // 3
    r = g * g * 3
    # (3, D, N, G*G) -> (B, D, R) with R ordered (grid cell, anchor) like the torch view chain.
    xt = fmap.reshape(3, d, n, g * g).transpose(2, 1, 3, 0).reshape(n, d, r)

    anc = np.asarray(anchors, np.float32)                     # (3, 2)
    anc_rep = np.tile(anc, (g * g, 1)) / float(stride)        # (R, 2)
    gr = np.arange(g)
    xs, ys = np.meshgrid(gr, gr)
    xoff = np.repeat(xs.reshape(-1), 3).astype(np.float32)
    yoff = np.repeat(ys.reshape(-1), 3).astype(np.float32)
    aux = jnp.asarray(np.stack([xoff, yoff, anc_rep[:, 0], anc_rep[:, 1]], axis=0))  # (4, R)

    tr = _pick_tile(r)
    kern = functools.partial(_yolo_kernel, stride=float(stride))
    out = pl.pallas_call(
        kern,
        out_shape=jax.ShapeDtypeStruct((n, d, r), jnp.float32),
        grid=(r // tr,),
        in_specs=[pl.BlockSpec((n, d, tr), lambda i: (0, 0, i)),
                  pl.BlockSpec((4, tr), lambda i: (0, i))],
        out_specs=pl.BlockSpec((n, d, tr), lambda i: (0, 0, i)),
        compiler_params=pltpu.CompilerParams(
            dimension_semantics=("parallel",),
            vmem_limit_bytes=_VMEM_LIMIT_BYTES),
    )(xt, aux)
    return out.transpose(0, 2, 1)                             # (B, R, D)


# ----------------------------------------------------------------------------
# Parameter init (deterministic, mirrors create_module_list shapes; BN folded)
# ----------------------------------------------------------------------------
def init_params(key):
    params = {}
    prev = 3
    filters = []
    for index, layer in enumerate(NET_CFG[1:]):
        t = layer["type"]
        if t == "convolutional":
            k = layer["size"]
            co = layer["filters"]
            key, k1, k2, k3, k4, k5 = jax.random.split(key, 6)
            w = jax.random.normal(k1, (co, prev, k, k), jnp.float32) * 0.05
            if layer.get("batch_normalize", 0):
                gamma = 1.0 + 0.1 * jax.random.normal(k2, (co,), jnp.float32)
                beta = 0.1 * jax.random.normal(k3, (co,), jnp.float32)
                mean = 0.1 * jax.random.normal(k4, (co,), jnp.float32)
                var = 1.0 + 0.1 * jax.random.uniform(k5, (co,), jnp.float32)
                scale = gamma / jnp.sqrt(var + 1e-5)
                shift = beta - mean * scale
            else:
                bias = 0.1 * jax.random.normal(k2, (co,), jnp.float32)
                scale = jnp.ones((co,), jnp.float32)
                shift = bias
            params[index] = {
                "w2d": w.reshape(co, -1).astype(jnp.bfloat16),   # (Co, C*K*K), MXU dtype
                "scale": scale.reshape(co, 1),                   # f32 epilogue params
                "shift": shift.reshape(co, 1),
            }
            prev = co
        elif t == "route":
            ls = layer["layers"]
            if "," in ls:
                l1, l2 = [int(v) for v in ls.split(",")]
                if l1 < 0:
                    l1 = index + l1
                if l2 < 0:
                    l2 = index + l2
                prev = filters[l1] + filters[l2]
            else:
                prev = filters[index + int(ls)]
        # shortcut / upsample / yolo: channel count unchanged
        filters.append(prev)
    return params


# ----------------------------------------------------------------------------
# Forward pass (mirrors Yolo3.forward); activations flow in CNHW layout.
# ----------------------------------------------------------------------------
def yolo3_forward(params, x):
    cfg = NET_CFG[1:]
    height = int(NET_CFG[0]["height"])
    feature_map_list = []
    detection_tensor = None
    fused_shortcuts = set()
    inp = jnp.transpose(x, (1, 0, 2, 3))                     # NCHW -> CNHW, once
    for index, layer in enumerate(cfg):
        t = layer["type"]
        if t == "convolutional":
            p = params[index]
            k = layer["size"]
            stride = layer["stride"]
            padding = (k // 2) if layer["pad"] else 0
            slope = 0.1 if layer["activation"] == "leaky" else 1.0
            residual = None
            # Fuse a directly-following shortcut into this conv's epilogue.
            # Valid for YOLOv3-style cfgs: the conv before a shortcut is only consumed by it.
            if index + 1 < len(cfg) and cfg[index + 1]["type"] == "shortcut":
                res_idx = (index + 1) + int(cfg[index + 1]["from"])
                if 0 <= res_idx < index:
                    co = p["w2d"].shape[0]
                    _, n_b, h_in, w_in = inp.shape
                    ho = (h_in + 2 * padding - k) // stride + 1
                    wo = (w_in + 2 * padding - k) // stride + 1
                    cand = feature_map_list[res_idx]
                    if cand.shape == (co, n_b, ho, wo):
                        residual = cand
                        fused_shortcuts.add(index + 1)
            out = pallas_conv(inp, p["w2d"], p["scale"], p["shift"],
                              k, stride, padding, slope, residual=residual)
        elif t == "shortcut":
            if index in fused_shortcuts:
                out = inp                                     # add already done in conv epilogue
            else:
                out = pallas_add(feature_map_list[index - 1],
                                 feature_map_list[index + int(layer["from"])])
        elif t == "upsample":
            out = pallas_upsample_bilinear(inp, layer["stride"])
        elif t == "route":
            ls = layer["layers"]
            if "," in ls:
                l1, l2 = [int(v) for v in ls.split(",")]
                if l1 < 0:
                    l1 = index + l1
                if l2 < 0:
                    l2 = index + l2
                out = jnp.concatenate([feature_map_list[l1], feature_map_list[l2]], axis=0)
            else:
                out = feature_map_list[index + int(ls)]
        elif t == "yolo":
            anchors = _get_anchors(layer["anchors"], layer["mask"].split(","))
            out = pallas_yolo_math(inp, anchors, height)
            if detection_tensor is None:
                detection_tensor = out
            else:
                detection_tensor = jnp.concatenate([detection_tensor, out], axis=1)
        else:
            raise ValueError(f"unknown layer type {t}")
        feature_map_list.append(out)
        inp = out
    # nan_to_num is fused into the YOLO kernel's output writes.
    return detection_tensor


if __name__ == "__main__":
    key = jax.random.PRNGKey(0)
    kp, kx = jax.random.split(key)
    params = init_params(kp)
    x = jax.random.normal(kx, (2, 3, 32, 32), jnp.float32)   # NCHW, 3 input channels
    fwd = jax.jit(yolo3_forward)
    out = fwd(params, x)
    out = jax.block_until_ready(out)
    expected_rows = 16 * 16 * 3 + 32 * 32 * 3                # two yolo heads at strides 2 and 1
    assert out.shape == (2, expected_rows, 8), out.shape
    assert bool(jnp.all(jnp.isfinite(out)))
    print("KERNEL_OK")
</pallas_src>

<mosaic_0001>
module attributes {stable_mosaic.version = 11 : i64} {
  func.func @_gemm_fused_kernel(%arg0: i32, %arg1: memref<8x27xbf16, #tpu.memory_space<vmem>>, %arg2: memref<27x512xbf16, #tpu.memory_space<vmem>>, %arg3: memref<8x1xf32, #tpu.memory_space<vmem>>, %arg4: memref<8x1xf32, #tpu.memory_space<vmem>>, %arg5: memref<8x512xf32, #tpu.memory_space<vmem>>) attributes {dimension_semantics = [#tpu.dimension_semantics<parallel>], iteration_bounds = array<i64: 4>, scalar_prefetch = 0 : i64, scratch_operands = 0 : i64, tpu.core_type = #tpu.core_type<tc>, window_params = [{pipeline_mode = #tpu.pipeline_mode<synchronous>, transform_indices = @transform_0, window_bounds = array<i64: 8, 27>}, {transform_indices = @transform_1, window_bounds = array<i64: 27, 512>}, {pipeline_mode = #tpu.pipeline_mode<synchronous>, transform_indices = @transform_2, window_bounds = array<i64: 8, 1>}, {pipeline_mode = #tpu.pipeline_mode<synchronous>, transform_indices = @transform_3, window_bounds = array<i64: 8, 1>}, {transform_indices = @transform_4, window_bounds = array<i64: 8, 512>}]} {
    %c0 = arith.constant 0 : index
    %c0_0 = arith.constant 0 : index
    %0 = vector.load %arg1[%c0, %c0_0] : memref<8x27xbf16, #tpu.memory_space<vmem>>, vector<8x27xbf16>
    %c0_1 = arith.constant 0 : index
    %c0_2 = arith.constant 0 : index
    %1 = vector.load %arg2[%c0_1, %c0_2] : memref<27x512xbf16, #tpu.memory_space<vmem>>, vector<27x512xbf16>
    %cst = arith.constant dense<0.000000e+00> : vector<8x512xf32>
    %2 = tpu.matmul %0, %1, %cst {dimension_numbers = #tpu.dot_dimension_numbers<[1], [0], [0], [1], [0, 0, 1, 1], [], []>} : vector<8x27xbf16>, vector<27x512xbf16>, vector<8x512xf32> -> vector<8x512xf32>
    %c0_3 = arith.constant 0 : index
    %c0_4 = arith.constant 0 : index
    %3 = vector.load %arg3[%c0_3, %c0_4] : memref<8x1xf32, #tpu.memory_space<vmem>>, vector<8x1xf32>
    %4 = vector.broadcast %3 : vector<8x1xf32> to vector<8x512xf32>
    %5 = arith.mulf %2, %4 : vector<8x512xf32>
    %c0_5 = arith.constant 0 : index
    %c0_6 = arith.constant 0 : index
    %6 = vector.load %arg4[%c0_5, %c0_6] : memref<8x1xf32, #tpu.memory_space<vmem>>, vector<8x1xf32>
    %7 = vector.broadcast %6 : vector<8x1xf32> to vector<8x512xf32>
    %8 = arith.addf %5, %7 : vector<8x512xf32>
    %cst_7 = arith.constant 0.000000e+00 : f32
    %9 = vector.broadcast %cst_7 : f32 to vector<8x512xf32>
    %10 = arith.cmpf oge, %8, %9 : vector<8x512xf32>
    %cst_8 = arith.constant 1.000000e-01 : f32
    %11 = vector.broadcast %cst_8 : f32 to vector<8x512xf32>
    %12 = arith.mulf %11, %8 : vector<8x512xf32>
    %13 = arith.select %10, %8, %12 : vector<8x512xi1>, vector<8x512xf32>
    %c0_9 = arith.constant 0 : index
    %c0_10 = arith.constant 0 : index
    %14 = vector.load %arg5[%c0_9, %c0_10] : memref<8x512xf32, #tpu.memory_space<vmem>>, vector<8x512xf32>
    tpu.vector_store %arg5[%c0_9, %c0_10], %13 {strides = array<i32>} : memref<8x512xf32, #tpu.memory_space<vmem>>, vector<8x512xf32>,
    return
  }
  func.func @transform_0(%arg0: i32) -> (i32, i32) {
    %c0_i32 = arith.constant 0 : i32
    %c0_i32_0 = arith.constant 0 : i32
    %c0_i32_1 = arith.constant 0 : i32
    return %c0_i32, %c0_i32_0 : i32, i32
  }
  func.func @transform_1(%arg0: i32) -> (i32, i32) {
    %c0_i32 = arith.constant 0 : i32
    %c0_i32_0 = arith.constant 0 : i32
    return %c0_i32, %arg0 : i32, i32
  }
  func.func @transform_2(%arg0: i32) -> (i32, i32) {
    %c0_i32 = arith.constant 0 : i32
    %c0_i32_0 = arith.constant 0 : i32
    %c0_i32_1 = arith.constant 0 : i32
    return %c0_i32, %c0_i32_0 : i32, i32
  }
  func.func @transform_3(%arg0: i32) -> (i32, i32) {
    %c0_i32 = arith.constant 0 : i32
    %c0_i32_0 = arith.constant 0 : i32
    %c0_i32_1 = arith.constant 0 : i32
    return %c0_i32, %c0_i32_0 : i32, i32
  }
  func.func @transform_4(%arg0: i32) -> (i32, i32) {
    %c0_i32 = arith.constant 0 : i32
    %c0_i32_0 = arith.constant 0 : i32
    return %c0_i32, %arg0 : i32, i32
  }
}

module attributes {stable_mosaic.version = 11 : i64} {
  func.func @_gemm_fused_kernel(%arg0: i32, %arg1: memref<16x72xbf16, #tpu.memory_space<vmem>>, %arg2: memref<72x512xbf16, #tpu.memory_space<vmem>>, %arg3: memref<16x1xf32, #tpu.memory_space<vmem>>, %arg4: memref<16x1xf32, #tpu.memory_space<vmem>>, %arg5: memref<16x512xf32, #tpu.memory_space<vmem>>) attributes {dimension_semantics = [#tpu.dimension_semantics<parallel>], iteration_bounds = array<i64: 1>, scalar_prefetch = 0 : i64, scratch_operands = 0 : i64, tpu.core_type = #tpu.core_type<tc>, window_params = [{pipeline_mode = #tpu.pipeline_mode<synchronous>, transform_indices = @transform_0, window_bounds = array<i64: 16, 72>}, {transform_indices = @transform_1, window_bounds = array<i64: 72, 512>}, {pipeline_mode = #tpu.pipeline_mode<synchronous>, transform_indices = @transform_2, window_bounds = array<i64: 16, 1>}, {pipeline_mode = #tpu.pipeline_mode<synchronous>, transform_indices = @transform_3, window_bounds = array<i64: 16, 1>}, {transform_indices = @transform_4, window_bounds = array<i64: 16, 512>}]} {
    %c0 = arith.constant 0 : index
    %c0_0 = arith.constant 0 : index
    %0 = vector.load %arg1[%c0, %c0_0] : memref<16x72xbf16, #tpu.memory_space<vmem>>, vector<16x72xbf16>
    %c0_1 = arith.constant 0 : index
    %c0_2 = arith.constant 0 : index
    %1 = vector.load %arg2[%c0_1, %c0_2] : memref<72x512xbf16, #tpu.memory_space<vmem>>, vector<72x512xbf16>
    %cst = arith.constant dense<0.000000e+00> : vector<16x512xf32>
    %2 = tpu.matmul %0, %1, %cst {dimension_numbers = #tpu.dot_dimension_numbers<[1], [0], [0], [1], [0, 0, 1, 1], [], []>} : vector<16x72xbf16>, vector<72x512xbf16>, vector<16x512xf32> -> vector<16x512xf32>
    %c0_3 = arith.constant 0 : index
    %c0_4 = arith.constant 0 : index
    %3 = vector.load %arg3[%c0_3, %c0_4] : memref<16x1xf32, #tpu.memory_space<vmem>>, vector<16x1xf32>
    %4 = vector.broadcast %3 : vector<16x1xf32> to vector<16x512xf32>
    %5 = arith.mulf %2, %4 : vector<16x512xf32>
    %c0_5 = arith.constant 0 : index
    %c0_6 = arith.constant 0 : index
    %6 = vector.load %arg4[%c0_5, %c0_6] : memref<16x1xf32, #tpu.memory_space<vmem>>, vector<16x1xf32>
    %7 = vector.broadcast %6 : vector<16x1xf32> to vector<16x512xf32>
    %8 = arith.addf %5, %7 : vector<16x512xf32>
    %cst_7 = arith.constant 0.000000e+00 : f32
    %9 = vector.broadcast %cst_7 : f32 to vector<16x512xf32>
    %10 = arith.cmpf oge, %8, %9 : vector<16x512xf32>
    %cst_8 = arith.constant 1.000000e-01 : f32
    %11 = vector.broadcast %cst_8 : f32 to vector<16x512xf32>
    %12 = arith.mulf %11, %8 : vector<16x512xf32>
    %13 = arith.select %10, %8, %12 : vector<16x512xi1>, vector<16x512xf32>
    %c0_9 = arith.constant 0 : index
    %c0_10 = arith.constant 0 : index
    %14 = vector.load %arg5[%c0_9, %c0_10] : memref<16x512xf32, #tpu.memory_space<vmem>>, vector<16x512xf32>
    tpu.vector_store %arg5[%c0_9, %c0_10], %13 {strides = array<i32>} : memref<16x512xf32, #tpu.memory_space<vmem>>, vector<16x512xf32>,
    return
  }
  func.func @transform_0(%arg0: i32) -> (i32, i32) {
    %c0_i32 = arith.constant 0 : i32
    %c0_i32_0 = arith.constant 0 : i32
    %c0_i32_1 = arith.constant 0 : i32
    return %c0_i32, %c0_i32_0 : i32, i32
  }
  func.func @transform_1(%arg0: i32) -> (i32, i32) {
    %c0_i32 = arith.constant 0 : i32
    %c0_i32_0 = arith.constant 0 : i32
    return %c0_i32, %arg0 : i32, i32
  }
  func.func @transform_2(%arg0: i32) -> (i32, i32) {
    %c0_i32 = arith.constant 0 : i32
    %c0_i32_0 = arith.constant 0 : i32
    %c0_i32_1 = arith.constant 0 : i32
    return %c0_i32, %c0_i32_0 : i32, i32
  }
  func.func @transform_3(%arg0: i32) -> (i32, i32) {
    %c0_i32 = arith.constant 0 : i32
    %c0_i32_0 = arith.constant 0 : i32
    %c0_i32_1 = arith.constant 0 : i32
    return %c0_i32, %c0_i32_0 : i32, i32
  }
  func.func @transform_4(%arg0: i32) -> (i32, i32) {
    %c0_i32 = arith.constant 0 : i32
    %c0_i32_0 = arith.constant 0 : i32
    return %c0_i32, %arg0 : i32, i32
  }
}

module attributes {stable_mosaic.version = 11 : i64} {
  func.func @_gemm_fused_kernel(%arg0: i32, %arg1: memref<8x16xbf16, #tpu.memory_space<vmem>>, %arg2: memref<16x512xbf16, #tpu.memory_space<vmem>>, %arg3: memref<8x1xf32, #tpu.memory_space<vmem>>, %arg4: memref<8x1xf32, #tpu.memory_space<vmem>>, %arg5: memref<8x512xf32, #tpu.memory_space<vmem>>) attributes {dimension_semantics = [#tpu.dimension_semantics<parallel>], iteration_bounds = array<i64: 1>, scalar_prefetch = 0 : i64, scratch_operands = 0 : i64, tpu.core_type = #tpu.core_type<tc>, window_params = [{pipeline_mode = #tpu.pipeline_mode<synchronous>, transform_indices = @transform_0, window_bounds = array<i64: 8, 16>}, {transform_indices = @transform_1, window_bounds = array<i64: 16, 512>}, {pipeline_mode = #tpu.pipeline_mode<synchronous>, transform_indices = @transform_2, window_bounds = array<i64: 8, 1>}, {pipeline_mode = #tpu.pipeline_mode<synchronous>, transform_indices = @transform_3, window_bounds = array<i64: 8, 1>}, {transform_indices = @transform_4, window_bounds = array<i64: 8, 512>}]} {
    %c0 = arith.constant 0 : index
    %c0_0 = arith.constant 0 : index
    %0 = vector.load %arg1[%c0, %c0_0] : memref<8x16xbf16, #tpu.memory_space<vmem>>, vector<8x16xbf16>
    %c0_1 = arith.constant 0 : index
    %c0_2 = arith.constant 0 : index
    %1 = vector.load %arg2[%c0_1, %c0_2] : memref<16x512xbf16, #tpu.memory_space<vmem>>, vector<16x512xbf16>
    %cst = arith.constant dense<0.000000e+00> : vector<8x512xf32>
    %2 = tpu.matmul %0, %1, %cst {dimension_numbers = #tpu.dot_dimension_numbers<[1], [0], [0], [1], [0, 0, 1, 1], [], []>} : vector<8x16xbf16>, vector<16x512xbf16>, vector<8x512xf32> -> vector<8x512xf32>
    %c0_3 = arith.constant 0 : index
    %c0_4 = arith.constant 0 : index
    %3 = vector.load %arg3[%c0_3, %c0_4] : memref<8x1xf32, #tpu.memory_space<vmem>>, vector<8x1xf32>
    %4 = vector.broadcast %3 : vector<8x1xf32> to vector<8x512xf32>
    %5 = arith.mulf %2, %4 : vector<8x512xf32>
    %c0_5 = arith.constant 0 : index
    %c0_6 = arith.constant 0 : index
    %6 = vector.load %arg4[%c0_5, %c0_6] : memref<8x1xf32, #tpu.memory_space<vmem>>, vector<8x1xf32>
    %7 = vector.broadcast %6 : vector<8x1xf32> to vector<8x512xf32>
    %8 = arith.addf %5, %7 : vector<8x512xf32>
    %cst_7 = arith.constant 0.000000e+00 : f32
    %9 = vector.broadcast %cst_7 : f32 to vector<8x512xf32>
    %10 = arith.cmpf oge, %8, %9 : vector<8x512xf32>
    %cst_8 = arith.constant 1.000000e-01 : f32
    %11 = vector.broadcast %cst_8 : f32 to vector<8x512xf32>
    %12 = arith.mulf %11, %8 : vector<8x512xf32>
    %13 = arith.select %10, %8, %12 : vector<8x512xi1>, vector<8x512xf32>
    %c0_9 = arith.constant 0 : index
    %c0_10 = arith.constant 0 : index
    %14 = vector.load %arg5[%c0_9, %c0_10] : memref<8x512xf32, #tpu.memory_space<vmem>>, vector<8x512xf32>
    tpu.vector_store %arg5[%c0_9, %c0_10], %13 {strides = array<i32>} : memref<8x512xf32, #tpu.memory_space<vmem>>, vector<8x512xf32>,
    return
  }
  func.func @transform_0(%arg0: i32) -> (i32, i32) {
    %c0_i32 = arith.constant 0 : i32
    %c0_i32_0 = arith.constant 0 : i32
    %c0_i32_1 = arith.constant 0 : i32
    return %c0_i32, %c0_i32_0 : i32, i32
  }
  func.func @transform_1(%arg0: i32) -> (i32, i32) {
    %c0_i32 = arith.constant 0 : i32
    %c0_i32_0 = arith.constant 0 : i32
    return %c0_i32, %arg0 : i32, i32
  }
  func.func @transform_2(%arg0: i32) -> (i32, i32) {
    %c0_i32 = arith.constant 0 : i32
    %c0_i32_0 = arith.constant 0 : i32
    %c0_i32_1 = arith.constant 0 : i32
    return %c0_i32, %c0_i32_0 : i32, i32
  }
  func.func @transform_3(%arg0: i32) -> (i32, i32) {
    %c0_i32 = arith.constant 0 : i32
    %c0_i32_0 = arith.constant 0 : i32
    %c0_i32_1 = arith.constant 0 : i32
    return %c0_i32, %c0_i32_0 : i32, i32
  }
  func.func @transform_4(%arg0: i32) -> (i32, i32) {
    %c0_i32 = arith.constant 0 : i32
    %c0_i32_0 = arith.constant 0 : i32
    return %c0_i32, %arg0 : i32, i32
  }
}

module attributes {stable_mosaic.version = 11 : i64} {
  func.func @_gemm_fused_kernel(%arg0: i32, %arg1: memref<24x16xbf16, #tpu.memory_space<vmem>>, %arg2: memref<16x512xbf16, #tpu.memory_space<vmem>>, %arg3: memref<24x1xf32, #tpu.memory_space<vmem>>, %arg4: memref<24x1xf32, #tpu.memory_space<vmem>>, %arg5: memref<24x512xf32, #tpu.memory_space<vmem>>) attributes {dimension_semantics = [#tpu.dimension_semantics<parallel>], iteration_bounds = array<i64: 4>, scalar_prefetch = 0 : i64, scratch_operands = 0 : i64, tpu.core_type = #tpu.core_type<tc>, window_params = [{pipeline_mode = #tpu.pipeline_mode<synchronous>, transform_indices = @transform_0, window_bounds = array<i64: 24, 16>}, {transform_indices = @transform_1, window_bounds = array<i64: 16, 512>}, {pipeline_mode = #tpu.pipeline_mode<synchronous>, transform_indices = @transform_2, window_bounds = array<i64: 24, 1>}, {pipeline_mode = #tpu.pipeline_mode<synchronous>, transform_indices = @transform_3, window_bounds = array<i64: 24, 1>}, {transform_indices = @transform_4, window_bounds = array<i64: 24, 512>}]} {
    %c0 = arith.constant 0 : index
    %c0_0 = arith.constant 0 : index
    %0 = vector.load %arg1[%c0, %c0_0] : memref<24x16xbf16, #tpu.memory_space<vmem>>, vector<24x16xbf16>
    %c0_1 = arith.constant 0 : index
    %c0_2 = arith.constant 0 : index
    %1 = vector.load %arg2[%c0_1, %c0_2] : memref<16x512xbf16, #tpu.memory_space<vmem>>, vector<16x512xbf16>
    %cst = arith.constant dense<0.000000e+00> : vector<24x512xf32>
    %2 = tpu.matmul %0, %1, %cst {dimension_numbers = #tpu.dot_dimension_numbers<[1], [0], [0], [1], [0, 0, 1, 1], [], []>} : vector<24x16xbf16>, vector<16x512xbf16>, vector<24x512xf32> -> vector<24x512xf32>
    %c0_3 = arith.constant 0 : index
    %c0_4 = arith.constant 0 : index
    %3 = vector.load %arg3[%c0_3, %c0_4] : memref<24x1xf32, #tpu.memory_space<vmem>>, vector<24x1xf32>
    %4 = vector.broadcast %3 : vector<24x1xf32> to vector<24x512xf32>
    %5 = arith.mulf %2, %4 : vector<24x512xf32>
    %c0_5 = arith.constant 0 : index
    %c0_6 = arith.constant 0 : index
    %6 = vector.load %arg4[%c0_5, %c0_6] : memref<24x1xf32, #tpu.memory_space<vmem>>, vector<24x1xf32>
    %7 = vector.broadcast %6 : vector<24x1xf32> to vector<24x512xf32>
    %8 = arith.addf %5, %7 : vector<24x512xf32>
    %c0_7 = arith.constant 0 : index
    %c0_8 = arith.constant 0 : index
    %9 = vector.load %arg5[%c0_7, %c0_8] : memref<24x512xf32, #tpu.memory_space<vmem>>, vector<24x512xf32>
    tpu.vector_store %arg5[%c0_7, %c0_8], %8 {strides = array<i32>} : memref<24x512xf32, #tpu.memory_space<vmem>>, vector<24x512xf32>,
    return
  }
  func.func @transform_0(%arg0: i32) -> (i32, i32) {
    %c0_i32 = arith.constant 0 : i32
    %c0_i32_0 = arith.constant 0 : i32
    %c0_i32_1 = arith.constant 0 : i32
    return %c0_i32, %c0_i32_0 : i32, i32
  }
  func.func @transform_1(%arg0: i32) -> (i32, i32) {
    %c0_i32 = arith.constant 0 : i32
    %c0_i32_0 = arith.constant 0 : i32
    return %c0_i32, %arg0 : i32, i32
  }
  func.func @transform_2(%arg0: i32) -> (i32, i32) {
    %c0_i32 = arith.constant 0 : i32
    %c0_i32_0 = arith.constant 0 : i32
    %c0_i32_1 = arith.constant 0 : i32
    return %c0_i32, %c0_i32_0 : i32, i32
  }
  func.func @transform_3(%arg0: i32) -> (i32, i32) {
    %c0_i32 = arith.constant 0 : i32
    %c0_i32_0 = arith.constant 0 : i32
    %c0_i32_1 = arith.constant 0 : i32
    return %c0_i32, %c0_i32_0 : i32, i32
  }
  func.func @transform_4(%arg0: i32) -> (i32, i32) {
    %c0_i32 = arith.constant 0 : i32
    %c0_i32_0 = arith.constant 0 : i32
    return %c0_i32, %arg0 : i32, i32
  }
}

module attributes {stable_mosaic.version = 11 : i64} {
  func.func @_gemm_fused_kernel(%arg0: i32, %arg1: memref<16x72xbf16, #tpu.memory_space<vmem>>, %arg2: memref<72x512xbf16, #tpu.memory_space<vmem>>, %arg3: memref<16x1xf32, #tpu.memory_space<vmem>>, %arg4: memref<16x1xf32, #tpu.memory_space<vmem>>, %arg5: memref<16x512xf32, #tpu.memory_space<vmem>>, %arg6: memref<16x512xf32, #tpu.memory_space<vmem>>) attributes {dimension_semantics = [#tpu.dimension_semantics<parallel>], iteration_bounds = array<i64: 1>, scalar_prefetch = 0 : i64, scratch_operands = 0 : i64, tpu.core_type = #tpu.core_type<tc>, window_params = [{pipeline_mode = #tpu.pipeline_mode<synchronous>, transform_indices = @transform_0, window_bounds = array<i64: 16, 72>}, {transform_indices = @transform_1, window_bounds = array<i64: 72, 512>}, {pipeline_mode = #tpu.pipeline_mode<synchronous>, transform_indices = @transform_2, window_bounds = array<i64: 16, 1>}, {pipeline_mode = #tpu.pipeline_mode<synchronous>, transform_indices = @transform_3, window_bounds = array<i64: 16, 1>}, {transform_indices = @transform_4, window_bounds = array<i64: 16, 512>}, {transform_indices = @transform_5, window_bounds = array<i64: 16, 512>}]} {
    %c0 = arith.constant 0 : index
    %c0_0 = arith.constant 0 : index
    %0 = vector.load %arg1[%c0, %c0_0] : memref<16x72xbf16, #tpu.memory_space<vmem>>, vector<16x72xbf16>
    %c0_1 = arith.constant 0 : index
    %c0_2 = arith.constant 0 : index
    %1 = vector.load %arg2[%c0_1, %c0_2] : memref<72x512xbf16, #tpu.memory_space<vmem>>, vector<72x512xbf16>
    %cst = arith.constant dense<0.000000e+00> : vector<16x512xf32>
    %2 = tpu.matmul %0, %1, %cst {dimension_numbers = #tpu.dot_dimension_numbers<[1], [0], [0], [1], [0, 0, 1, 1], [], []>} : vector<16x72xbf16>, vector<72x512xbf16>, vector<16x512xf32> -> vector<16x512xf32>
    %c0_3 = arith.constant 0 : index
    %c0_4 = arith.constant 0 : index
    %3 = vector.load %arg3[%c0_3, %c0_4] : memref<16x1xf32, #tpu.memory_space<vmem>>, vector<16x1xf32>
    %4 = vector.broadcast %3 : vector<16x1xf32> to vector<16x512xf32>
    %5 = arith.mulf %2, %4 : vector<16x512xf32>
    %c0_5 = arith.constant 0 : index
    %c0_6 = arith.constant 0 : index
    %6 = vector.load %arg4[%c0_5, %c0_6] : memref<16x1xf32, #tpu.memory_space<vmem>>, vector<16x1xf32>
    %7 = vector.broadcast %6 : vector<16x1xf32> to vector<16x512xf32>
    %8 = arith.addf %5, %7 : vector<16x512xf32>
    %cst_7 = arith.constant 0.000000e+00 : f32
    %9 = vector.broadcast %cst_7 : f32 to vector<16x512xf32>
    %10 = arith.cmpf oge, %8, %9 : vector<16x512xf32>
    %cst_8 = arith.constant 1.000000e-01 : f32
    %11 = vector.broadcast %cst_8 : f32 to vector<16x512xf32>
    %12 = arith.mulf %11, %8 : vector<16x512xf32>
    %13 = arith.select %10, %8, %12 : vector<16x512xi1>, vector<16x512xf32>
    %c0_9 = arith.constant 0 : index
    %c0_10 = arith.constant 0 : index
    %14 = vector.load %arg5[%c0_9, %c0_10] : memref<16x512xf32, #tpu.memory_space<vmem>>, vector<16x512xf32>
    %15 = arith.addf %13, %14 : vector<16x512xf32>
    %c0_11 = arith.constant 0 : index
    %c0_12 = arith.constant 0 : index
    %16 = vector.load %arg6[%c0_11, %c0_12] : memref<16x512xf32, #tpu.memory_space<vmem>>, vector<16x512xf32>
    tpu.vector_store %arg6[%c0_11, %c0_12], %15 {strides = array<i32>} : memref<16x512xf32, #tpu.memory_space<vmem>>, vector<16x512xf32>,
    return
  }
  func.func @transform_0(%arg0: i32) -> (i32, i32) {
    %c0_i32 = arith.constant 0 : i32
    %c0_i32_0 = arith.constant 0 : i32
    %c0_i32_1 = arith.constant 0 : i32
    return %c0_i32, %c0_i32_0 : i32, i32
  }
  func.func @transform_1(%arg0: i32) -> (i32, i32) {
    %c0_i32 = arith.constant 0 : i32
    %c0_i32_0 = arith.constant 0 : i32
    return %c0_i32, %arg0 : i32, i32
  }
  func.func @transform_2(%arg0: i32) -> (i32, i32) {
    %c0_i32 = arith.constant 0 : i32
    %c0_i32_0 = arith.constant 0 : i32
    %c0_i32_1 = arith.constant 0 : i32
    return %c0_i32, %c0_i32_0 : i32, i32
  }
  func.func @transform_3(%arg0: i32) -> (i32, i32) {
    %c0_i32 = arith.constant 0 : i32
    %c0_i32_0 = arith.constant 0 : i32
    %c0_i32_1 = arith.constant 0 : i32
    return %c0_i32, %c0_i32_0 : i32, i32
  }
  func.func @transform_4(%arg0: i32) -> (i32, i32) {
    %c0_i32 = arith.constant 0 : i32
    %c0_i32_0 = arith.constant 0 : i32
    return %c0_i32, %arg0 : i32, i32
  }
  func.func @transform_5(%arg0: i32) -> (i32, i32) {
    %c0_i32 = arith.constant 0 : i32
    %c0_i32_0 = arith.constant 0 : i32
    return %c0_i32, %arg0 : i32, i32
  }
}

module attributes {stable_mosaic.version = 11 : i64} {
  func.func @_gemm_fused_kernel(%arg0: i32, %arg1: memref<8x512xbf16, #tpu.memory_space<vmem>>, %arg2: memref<512x512xbf16, #tpu.memory_space<vmem>>, %arg3: memref<8x512xf32, #tpu.memory_space<vmem>>) attributes {dimension_semantics = [#tpu.dimension_semantics<parallel>], iteration_bounds = array<i64: 4>, scalar_prefetch = 0 : i64, scratch_operands = 0 : i64, tpu.core_type = #tpu.core_type<tc>, window_params = [{pipeline_mode = #tpu.pipeline_mode<synchronous>, transform_indices = @transform_0, window_bounds = array<i64: 8, 512>}, {transform_indices = @transform_1, window_bounds = array<i64: 512, 512>}, {transform_indices = @transform_2, window_bounds = array<i64: 8, 512>}]} {
    %c0 = arith.constant 0 : index
    %c0_0 = arith.constant 0 : index
    %0 = vector.load %arg1[%c0, %c0_0] : memref<8x512xbf16, #tpu.memory_space<vmem>>, vector<8x512xbf16>
    %c0_1 = arith.constant 0 : index
    %c0_2 = arith.constant 0 : index
    %1 = vector.load %arg2[%c0_1, %c0_2] : memref<512x512xbf16, #tpu.memory_space<vmem>>, vector<512x512xbf16>
    %cst = arith.constant dense<0.000000e+00> : vector<8x512xf32>
    %2 = tpu.matmul %0, %1, %cst {dimension_numbers = #tpu.dot_dimension_numbers<[1], [0], [0], [1], [0, 0, 1, 1], [], []>} : vector<8x512xbf16>, vector<512x512xbf16>, vector<8x512xf32> -> vector<8x512xf32>
    %c0_3 = arith.constant 0 : index
    %c0_4 = arith.constant 0 : index
    %3 = vector.load %arg3[%c0_3, %c0_4] : memref<8x512xf32, #tpu.memory_space<vmem>>, vector<8x512xf32>
    tpu.vector_store %arg3[%c0_3, %c0_4], %2 {strides = array<i32>} : memref<8x512xf32, #tpu.memory_space<vmem>>, vector<8x512xf32>,
    return
  }
  func.func @transform_0(%arg0: i32) -> (i32, i32) {
    %c0_i32 = arith.constant 0 : i32
    %c0_i32_0 = arith.constant 0 : i32
    %c0_i32_1 = arith.constant 0 : i32
    return %c0_i32, %c0_i32_0 : i32, i32
  }
  func.func @transform_1(%arg0: i32) -> (i32, i32) {
    %c0_i32 = arith.constant 0 : i32
    %c0_i32_0 = arith.constant 0 : i32
    return %c0_i32, %arg0 : i32, i32
  }
  func.func @transform_2(%arg0: i32) -> (i32, i32) {
    %c0_i32 = arith.constant 0 : i32
    %c0_i32_0 = arith.constant 0 : i32
    return %c0_i32, %arg0 : i32, i32
  }
}

module attributes {stable_mosaic.version = 11 : i64} {
  func.func @_yolo_kernel(%arg0: i32, %arg1: memref<2x8x512xf32, #tpu.memory_space<vmem>>, %arg2: memref<4x512xf32, #tpu.memory_space<vmem>>, %arg3: memref<2x8x512xf32, #tpu.memory_space<vmem>>) attributes {dimension_semantics = [#tpu.dimension_semantics<parallel>], iteration_bounds = array<i64: 6>, scalar_prefetch = 0 : i64, scratch_operands = 0 : i64, tpu.core_type = #tpu.core_type<tc>, window_params = [{transform_indices = @transform_0, window_bounds = array<i64: 2, 8, 512>}, {transform_indices = @transform_1, window_bounds = array<i64: 4, 512>}, {transform_indices = @transform_2, window_bounds = array<i64: 2, 8, 512>}]} {
    %c0 = arith.constant 0 : index
    %c0_0 = arith.constant 0 : index
    %c0_1 = arith.constant 0 : index
    %0 = vector.load %arg1[%c0, %c0_0, %c0_1] : memref<2x8x512xf32, #tpu.memory_space<vmem>>, vector<2x2x512xf32>
    %1 = arith.negf %0 : vector<2x2x512xf32>
    %2 = math.exp %1 : vector<2x2x512xf32>
    %cst = arith.constant 1.000000e+00 : f32
    %3 = vector.broadcast %cst : f32 to vector<2x2x512xf32>
    %4 = arith.addf %3, %2 : vector<2x2x512xf32>
    %5 = arith.divf %3, %4 : vector<2x2x512xf32>
    %c0_2 = arith.constant 0 : index
    %c0_3 = arith.constant 0 : index
    %6 = vector.load %arg2[%c0_2, %c0_3] : memref<4x512xf32, #tpu.memory_space<vmem>>, vector<2x512xf32>
    %7 = vector.shape_cast %6 : vector<2x512xf32> to vector<1x2x512xf32>
    %8 = vector.broadcast %7 : vector<1x2x512xf32> to vector<2x2x512xf32>
    %9 = arith.addf %5, %8 : vector<2x2x512xf32>
    %cst_4 = arith.constant 1.000000e+00 : f32
    %10 = vector.broadcast %cst_4 : f32 to vector<2x2x512xf32>
    %11 = arith.mulf %9, %10 : vector<2x2x512xf32>
    %12 = arith.cmpf one, %11, %11 : vector<2x2x512xf32>
    %cst_5 = arith.constant 0.000000e+00 : f32
    %13 = vector.broadcast %cst_5 : f32 to vector<2x2x512xf32>
    %14 = arith.select %12, %13, %11 : vector<2x2x512xi1>, vector<2x2x512xf32>
    %cst_6 = arith.constant -3.40282347E+38 : f32
    %cst_7 = arith.constant 3.40282347E+38 : f32
    %15 = vector.broadcast %cst_6 : f32 to vector<2x2x512xf32>
    %16 = arith.maximumf %15, %14 : vector<2x2x512xf32>
    %17 = vector.broadcast %cst_7 : f32 to vector<2x2x512xf32>
    %18 = arith.minimumf %17, %16 : vector<2x2x512xf32>
    %c0_8 = arith.constant 0 : index
    %c0_9 = arith.constant 0 : index
    %c0_10 = arith.constant 0 : index
    %19 = vector.load %arg3[%c0_8, %c0_9, %c0_10] : memref<2x8x512xf32, #tpu.memory_space<vmem>>, vector<2x2x512xf32>
    tpu.vector_store %arg3[%c0_8, %c0_9, %c0_10], %18 {strides = array<i32>} : memref<2x8x512xf32, #tpu.memory_space<vmem>>, vector<2x2x512xf32>,
    %c0_11 = arith.constant 0 : index
    %c2 = arith.constant 2 : index
    %c0_12 = arith.constant 0 : index
    %20 = vector.load %arg1[%c0_11, %c2, %c0_12] : memref<2x8x512xf32, #tpu.memory_space<vmem>>, vector<2x2x512xf32>
    %21 = math.exp %20 : vector<2x2x512xf32>
    %c2_13 = arith.constant 2 : index
    %c0_14 = arith.constant 0 : index
    %22 = vector.load %arg2[%c2_13, %c0_14] : memref<4x512xf32, #tpu.memory_space<vmem>>, vector<2x512xf32>
    %23 = vector.shape_cast %22 : vector<2x512xf32> to vector<1x2x512xf32>
    %24 = vector.broadcast %23 : vector<1x2x512xf32> to vector<2x2x512xf32>
    %25 = arith.mulf %24, %21 : vector<2x2x512xf32>
    %cst_15 = arith.constant 1.000000e+00 : f32
    %26 = vector.broadcast %cst_15 : f32 to vector<2x2x512xf32>
    %27 = arith.mulf %25, %26 : vector<2x2x512xf32>
    %28 = arith.cmpf one, %27, %27 : vector<2x2x512xf32>
    %cst_16 = arith.constant 0.000000e+00 : f32
    %29 = vector.broadcast %cst_16 : f32 to vector<2x2x512xf32>
    %30 = arith.select %28, %29, %27 : vector<2x2x512xi1>, vector<2x2x512xf32>
    %cst_17 = arith.constant -3.40282347E+38 : f32
    %cst_18 = arith.constant 3.40282347E+38 : f32
    %31 = vector.broadcast %cst_17 : f32 to vector<2x2x512xf32>
    %32 = arith.maximumf %31, %30 : vector<2x2x512xf32>
    %33 = vector.broadcast %cst_18 : f32 to vector<2x2x512xf32>
    %34 = arith.minimumf %33, %32 : vector<2x2x512xf32>
    %c0_19 = arith.constant 0 : index
    %c2_20 = arith.constant 2 : index
    %c0_21 = arith.constant 0 : index
    %35 = vector.load %arg3[%c0_19, %c2_20, %c0_21] : memref<2x8x512xf32, #tpu.memory_space<vmem>>, vector<2x2x512xf32>
    tpu.vector_store %arg3[%c0_19, %c2_20, %c0_21], %34 {strides = array<i32>} : memref<2x8x512xf32, #tpu.memory_space<vmem>>, vector<2x2x512xf32>,
    %c0_22 = arith.constant 0 : index
    %c4 = arith.constant 4 : index
    %c0_23 = arith.constant 0 : index
    %36 = vector.load %arg1[%c0_22, %c4, %c0_23] : memref<2x8x512xf32, #tpu.memory_space<vmem>>, vector<2x4x512xf32>
    %37 = arith.negf %36 : vector<2x4x512xf32>
    %38 = math.exp %37 : vector<2x4x512xf32>
    %cst_24 = arith.constant 1.000000e+00 : f32
    %39 = vector.broadcast %cst_24 : f32 to vector<2x4x512xf32>
    %40 = arith.addf %39, %38 : vector<2x4x512xf32>
    %41 = arith.divf %39, %40 : vector<2x4x512xf32>
    %42 = arith.cmpf one, %41, %41 : vector<2x4x512xf32>
    %cst_25 = arith.constant 0.000000e+00 : f32
    %43 = vector.broadcast %cst_25 : f32 to vector<2x4x512xf32>
    %44 = arith.select %42, %43, %41 : vector<2x4x512xi1>, vector<2x4x512xf32>
    %cst_26 = arith.constant -3.40282347E+38 : f32
    %cst_27 = arith.constant 3.40282347E+38 : f32
    %45 = vector.broadcast %cst_26 : f32 to vector<2x4x512xf32>
    %46 = arith.maximumf %45, %44 : vector<2x4x512xf32>
    %47 = vector.broadcast %cst_27 : f32 to vector<2x4x512xf32>
    %48 = arith.minimumf %47, %46 : vector<2x4x512xf32>
    %c0_28 = arith.constant 0 : index
    %c4_29 = arith.constant 4 : index
    %c0_30 = arith.constant 0 : index
    %49 = vector.load %arg3[%c0_28, %c4_29, %c0_30] : memref<2x8x512xf32, #tpu.memory_space<vmem>>, vector<2x4x512xf32>
    tpu.vector_store %arg3[%c0_28, %c4_29, %c0_30], %48 {strides = array<i32>} : memref<2x8x512xf32, #tpu.memory_space<vmem>>, vector<2x4x512xf32>,
    return
  }
  func.func @transform_0(%arg0: i32) -> (i32, i32, i32) {
    %c0_i32 = arith.constant 0 : i32
    %c0_i32_0 = arith.constant 0 : i32
    %c0_i32_1 = arith.constant 0 : i32
    return %c0_i32, %c0_i32_0, %arg0 : i32, i32, i32
  }
  func.func @transform_1(%arg0: i32) -> (i32, i32) {
    %c0_i32 = arith.constant 0 : i32
    %c0_i32_0 = arith.constant 0 : i32
    return %c0_i32, %arg0 : i32, i32
  }
  func.func @transform_2(%arg0: i32) -> (i32, i32, i32) {
    %c0_i32 = arith.constant 0 : i32
    %c0_i32_0 = arith.constant 0 : i32
    %c0_i32_1 = arith.constant 0 : i32
    return %c0_i32, %c0_i32_0, %arg0 : i32, i32, i32
  }
}

module attributes {stable_mosaic.version = 11 : i64} {
  func.func @_gemm_fused_kernel(%arg0: i32, %arg1: memref<24x16xbf16, #tpu.memory_space<vmem>>, %arg2: memref<16x512xbf16, #tpu.memory_space<vmem>>, %arg3: memref<24x1xf32, #tpu.memory_space<vmem>>, %arg4: memref<24x1xf32, #tpu.memory_space<vmem>>, %arg5: memref<24x512xf32, #tpu.memory_space<vmem>>) attributes {dimension_semantics = [#tpu.dimension_semantics<parallel>], iteration_bounds = array<i64: 1>, scalar_prefetch = 0 : i64, scratch_operands = 0 : i64, tpu.core_type = #tpu.core_type<tc>, window_params = [{pipeline_mode = #tpu.pipeline_mode<synchronous>, transform_indices = @transform_0, window_bounds = array<i64: 24, 16>}, {transform_indices = @transform_1, window_bounds = array<i64: 16, 512>}, {pipeline_mode = #tpu.pipeline_mode<synchronous>, transform_indices = @transform_2, window_bounds = array<i64: 24, 1>}, {pipeline_mode = #tpu.pipeline_mode<synchronous>, transform_indices = @transform_3, window_bounds = array<i64: 24, 1>}, {transform_indices = @transform_4, window_bounds = array<i64: 24, 512>}]} {
    %c0 = arith.constant 0 : index
    %c0_0 = arith.constant 0 : index
    %0 = vector.load %arg1[%c0, %c0_0] : memref<24x16xbf16, #tpu.memory_space<vmem>>, vector<24x16xbf16>
    %c0_1 = arith.constant 0 : index
    %c0_2 = arith.constant 0 : index
    %1 = vector.load %arg2[%c0_1, %c0_2] : memref<16x512xbf16, #tpu.memory_space<vmem>>, vector<16x512xbf16>
    %cst = arith.constant dense<0.000000e+00> : vector<24x512xf32>
    %2 = tpu.matmul %0, %1, %cst {dimension_numbers = #tpu.dot_dimension_numbers<[1], [0], [0], [1], [0, 0, 1, 1], [], []>} : vector<24x16xbf16>, vector<16x512xbf16>, vector<24x512xf32> -> vector<24x512xf32>
    %c0_3 = arith.constant 0 : index
    %c0_4 = arith.constant 0 : index
    %3 = vector.load %arg3[%c0_3, %c0_4] : memref<24x1xf32, #tpu.memory_space<vmem>>, vector<24x1xf32>
    %4 = vector.broadcast %3 : vector<24x1xf32> to vector<24x512xf32>
    %5 = arith.mulf %2, %4 : vector<24x512xf32>
    %c0_5 = arith.constant 0 : index
    %c0_6 = arith.constant 0 : index
    %6 = vector.load %arg4[%c0_5, %c0_6] : memref<24x1xf32, #tpu.memory_space<vmem>>, vector<24x1xf32>
    %7 = vector.broadcast %6 : vector<24x1xf32> to vector<24x512xf32>
    %8 = arith.addf %5, %7 : vector<24x512xf32>
    %c0_7 = arith.constant 0 : index
    %c0_8 = arith.constant 0 : index
    %9 = vector.load %arg5[%c0_7, %c0_8] : memref<24x512xf32, #tpu.memory_space<vmem>>, vector<24x512xf32>
    tpu.vector_store %arg5[%c0_7, %c0_8], %8 {strides = array<i32>} : memref<24x512xf32, #tpu.memory_space<vmem>>, vector<24x512xf32>,
    return
  }
  func.func @transform_0(%arg0: i32) -> (i32, i32) {
    %c0_i32 = arith.constant 0 : i32
    %c0_i32_0 = arith.constant 0 : i32
    %c0_i32_1 = arith.constant 0 : i32
    return %c0_i32, %c0_i32_0 : i32, i32
  }
  func.func @transform_1(%arg0: i32) -> (i32, i32) {
    %c0_i32 = arith.constant 0 : i32
    %c0_i32_0 = arith.constant 0 : i32
    return %c0_i32, %arg0 : i32, i32
  }
  func.func @transform_2(%arg0: i32) -> (i32, i32) {
    %c0_i32 = arith.constant 0 : i32
    %c0_i32_0 = arith.constant 0 : i32
    %c0_i32_1 = arith.constant 0 : i32
    return %c0_i32, %c0_i32_0 : i32, i32
  }
  func.func @transform_3(%arg0: i32) -> (i32, i32) {
    %c0_i32 = arith.constant 0 : i32
    %c0_i32_0 = arith.constant 0 : i32
    %c0_i32_1 = arith.constant 0 : i32
    return %c0_i32, %c0_i32_0 : i32, i32
  }
  func.func @transform_4(%arg0: i32) -> (i32, i32) {
    %c0_i32 = arith.constant 0 : i32
    %c0_i32_0 = arith.constant 0 : i32
    return %c0_i32, %arg0 : i32, i32
  }
}

module attributes {stable_mosaic.version = 11 : i64} {
  func.func @_yolo_kernel(%arg0: i32, %arg1: memref<2x8x256xf32, #tpu.memory_space<vmem>>, %arg2: memref<4x256xf32, #tpu.memory_space<vmem>>, %arg3: memref<2x8x256xf32, #tpu.memory_space<vmem>>) attributes {dimension_semantics = [#tpu.dimension_semantics<parallel>], iteration_bounds = array<i64: 3>, scalar_prefetch = 0 : i64, scratch_operands = 0 : i64, tpu.core_type = #tpu.core_type<tc>, window_params = [{transform_indices = @transform_0, window_bounds = array<i64: 2, 8, 256>}, {transform_indices = @transform_1, window_bounds = array<i64: 4, 256>}, {transform_indices = @transform_2, window_bounds = array<i64: 2, 8, 256>}]} {
    %c0 = arith.constant 0 : index
    %c0_0 = arith.constant 0 : index
    %c0_1 = arith.constant 0 : index
    %0 = vector.load %arg1[%c0, %c0_0, %c0_1] : memref<2x8x256xf32, #tpu.memory_space<vmem>>, vector<2x2x256xf32>
    %1 = arith.negf %0 : vector<2x2x256xf32>
    %2 = math.exp %1 : vector<2x2x256xf32>
    %cst = arith.constant 1.000000e+00 : f32
    %3 = vector.broadcast %cst : f32 to vector<2x2x256xf32>
    %4 = arith.addf %3, %2 : vector<2x2x256xf32>
    %5 = arith.divf %3, %4 : vector<2x2x256xf32>
    %c0_2 = arith.constant 0 : index
    %c0_3 = arith.constant 0 : index
    %6 = vector.load %arg2[%c0_2, %c0_3] : memref<4x256xf32, #tpu.memory_space<vmem>>, vector<2x256xf32>
    %7 = vector.shape_cast %6 : vector<2x256xf32> to vector<1x2x256xf32>
    %8 = vector.broadcast %7 : vector<1x2x256xf32> to vector<2x2x256xf32>
    %9 = arith.addf %5, %8 : vector<2x2x256xf32>
    %cst_4 = arith.constant 2.000000e+00 : f32
    %10 = vector.broadcast %cst_4 : f32 to vector<2x2x256xf32>
    %11 = arith.mulf %9, %10 : vector<2x2x256xf32>
    %12 = arith.cmpf one, %11, %11 : vector<2x2x256xf32>
    %cst_5 = arith.constant 0.000000e+00 : f32
    %13 = vector.broadcast %cst_5 : f32 to vector<2x2x256xf32>
    %14 = arith.select %12, %13, %11 : vector<2x2x256xi1>, vector<2x2x256xf32>
    %cst_6 = arith.constant -3.40282347E+38 : f32
    %cst_7 = arith.constant 3.40282347E+38 : f32
    %15 = vector.broadcast %cst_6 : f32 to vector<2x2x256xf32>
    %16 = arith.maximumf %15, %14 : vector<2x2x256xf32>
    %17 = vector.broadcast %cst_7 : f32 to vector<2x2x256xf32>
    %18 = arith.minimumf %17, %16 : vector<2x2x256xf32>
    %c0_8 = arith.constant 0 : index
    %c0_9 = arith.constant 0 : index
    %c0_10 = arith.constant 0 : index
    %19 = vector.load %arg3[%c0_8, %c0_9, %c0_10] : memref<2x8x256xf32, #tpu.memory_space<vmem>>, vector<2x2x256xf32>
    tpu.vector_store %arg3[%c0_8, %c0_9, %c0_10], %18 {strides = array<i32>} : memref<2x8x256xf32, #tpu.memory_space<vmem>>, vector<2x2x256xf32>,
    %c0_11 = arith.constant 0 : index
    %c2 = arith.constant 2 : index
    %c0_12 = arith.constant 0 : index
    %20 = vector.load %arg1[%c0_11, %c2, %c0_12] : memref<2x8x256xf32, #tpu.memory_space<vmem>>, vector<2x2x256xf32>
    %21 = math.exp %20 : vector<2x2x256xf32>
    %c2_13 = arith.constant 2 : index
    %c0_14 = arith.constant 0 : index
    %22 = vector.load %arg2[%c2_13, %c0_14] : memref<4x256xf32, #tpu.memory_space<vmem>>, vector<2x256xf32>
    %23 = vector.shape_cast %22 : vector<2x256xf32> to vector<1x2x256xf32>
    %24 = vector.broadcast %23 : vector<1x2x256xf32> to vector<2x2x256xf32>
    %25 = arith.mulf %24, %21 : vector<2x2x256xf32>
    %cst_15 = arith.constant 2.000000e+00 : f32
    %26 = vector.broadcast %cst_15 : f32 to vector<2x2x256xf32>
    %27 = arith.mulf %25, %26 : vector<2x2x256xf32>
    %28 = arith.cmpf one, %27, %27 : vector<2x2x256xf32>
    %cst_16 = arith.constant 0.000000e+00 : f32
    %29 = vector.broadcast %cst_16 : f32 to vector<2x2x256xf32>
    %30 = arith.select %28, %29, %27 : vector<2x2x256xi1>, vector<2x2x256xf32>
    %cst_17 = arith.constant -3.40282347E+38 : f32
    %cst_18 = arith.constant 3.40282347E+38 : f32
    %31 = vector.broadcast %cst_17 : f32 to vector<2x2x256xf32>
    %32 = arith.maximumf %31, %30 : vector<2x2x256xf32>
    %33 = vector.broadcast %cst_18 : f32 to vector<2x2x256xf32>
    %34 = arith.minimumf %33, %32 : vector<2x2x256xf32>
    %c0_19 = arith.constant 0 : index
    %c2_20 = arith.constant 2 : index
    %c0_21 = arith.constant 0 : index
    %35 = vector.load %arg3[%c0_19, %c2_20, %c0_21] : memref<2x8x256xf32, #tpu.memory_space<vmem>>, vector<2x2x256xf32>
    tpu.vector_store %arg3[%c0_19, %c2_20, %c0_21], %34 {strides = array<i32>} : memref<2x8x256xf32, #tpu.memory_space<vmem>>, vector<2x2x256xf32>,
    %c0_22 = arith.constant 0 : index
    %c4 = arith.constant 4 : index
    %c0_23 = arith.constant 0 : index
    %36 = vector.load %arg1[%c0_22, %c4, %c0_23] : memref<2x8x256xf32, #tpu.memory_space<vmem>>, vector<2x4x256xf32>
    %37 = arith.negf %36 : vector<2x4x256xf32>
    %38 = math.exp %37 : vector<2x4x256xf32>
    %cst_24 = arith.constant 1.000000e+00 : f32
    %39 = vector.broadcast %cst_24 : f32 to vector<2x4x256xf32>
    %40 = arith.addf %39, %38 : vector<2x4x256xf32>
    %41 = arith.divf %39, %40 : vector<2x4x256xf32>
    %42 = arith.cmpf one, %41, %41 : vector<2x4x256xf32>
    %cst_25 = arith.constant 0.000000e+00 : f32
    %43 = vector.broadcast %cst_25 : f32 to vector<2x4x256xf32>
    %44 = arith.select %42, %43, %41 : vector<2x4x256xi1>, vector<2x4x256xf32>
    %cst_26 = arith.constant -3.40282347E+38 : f32
    %cst_27 = arith.constant 3.40282347E+38 : f32
    %45 = vector.broadcast %cst_26 : f32 to vector<2x4x256xf32>
    %46 = arith.maximumf %45, %44 : vector<2x4x256xf32>
    %47 = vector.broadcast %cst_27 : f32 to vector<2x4x256xf32>
    %48 = arith.minimumf %47, %46 : vector<2x4x256xf32>
    %c0_28 = arith.constant 0 : index
    %c4_29 = arith.constant 4 : index
    %c0_30 = arith.constant 0 : index
    %49 = vector.load %arg3[%c0_28, %c4_29, %c0_30] : memref<2x8x256xf32, #tpu.memory_space<vmem>>, vector<2x4x256xf32>
    tpu.vector_store %arg3[%c0_28, %c4_29, %c0_30], %48 {strides = array<i32>} : memref<2x8x256xf32, #tpu.memory_space<vmem>>, vector<2x4x256xf32>,
    return
  }
  func.func @transform_0(%arg0: i32) -> (i32, i32, i32) {
    %c0_i32 = arith.constant 0 : i32
    %c0_i32_0 = arith.constant 0 : i32
    %c0_i32_1 = arith.constant 0 : i32
    return %c0_i32, %c0_i32_0, %arg0 : i32, i32, i32
  }
  func.func @transform_1(%arg0: i32) -> (i32, i32) {
    %c0_i32 = arith.constant 0 : i32
    %c0_i32_0 = arith.constant 0 : i32
    return %c0_i32, %arg0 : i32, i32
  }
  func.func @transform_2(%arg0: i32) -> (i32, i32, i32) {
    %c0_i32 = arith.constant 0 : i32
    %c0_i32_0 = arith.constant 0 : i32
    %c0_i32_1 = arith.constant 0 : i32
    return %c0_i32, %c0_i32_0, %arg0 : i32, i32, i32
  }
}

</mosaic_0001>

<llo_original>
// kernel: yolo3_forward.10
$region0: #{yolo3_forward.10}
  #allocation0 [shape = 'u32[]', space=smem, size = 0x4, offset = 0x4, fixed_abs, tag = 'smem constant byte address 0x4 - core index']
  #allocation1 [shape = 'u32[72,128]{1,0:T(1,128)}', space=vmem, size = 0x9000, scoped, tag = 'internal scratch']
  %s0 = inlined_call_operand.hbm [shape: bf16[8,27], index: 0, kind: input, shape index: {}]
  %s1 = inlined_call_operand.vmem [shape: bf16[27,2048], index: 1, kind: input, shape index: {}]
  %s2 = inlined_call_operand.vmem [shape: f32[8,1], index: 2, kind: input, shape index: {}]
  %s3 = inlined_call_operand.vmem [shape: f32[8,1], index: 3, kind: input, shape index: {}]
  %s4 = inlined_call_operand.vmem [shape: f32[8,2048], index: 4, kind: output, shape index: {}]
  %s5 = sld [smem:[#allocation0]]
  $region76: #{yolo3_forward.10} parent=0
    _
  %s7 = ssub.s32 1, %s5
  %s8 = scalar_select 0, %s7, %s5
  $region1: #{yolo3_forward.10} parent=0
    #allocation2 [shape = 'u8[2048]{0}', space=vmem, size = 0x800, scoped, tag = 'input window, operand 0, single buffered']
    #allocation3 [shape = 's32[2]{0}', space=sflag, size = 0x8, scoped, tag = 'scoped memory for yolo3_forward.10']
    #allocation4 [shape = 'u8[65536]{0}', space=vmem, size = 0x10000, scoped, tag = 'input window, operand 1']
    %9 = vsyncpa [#allocation3], 0
    loop: start=0, step=1, limit=6
    $region2: #{yolo3_forward.10} parent=1 // loop_pre_header
      _
    $region3: #{yolo3_forward.10} parent=1 // loop_header
      %s11 = sphi 0, %s15
      %p12 = scmp.ge.s32.totalorder %s11, 6
      %s19 = sphi 0, %s19
      %s21 = sphi 0, %s19
      %s22 = sphi 0, %s21
      %s36 = sphi 0, %s22
      %s42 = sphi 0, %s44
      %s45 = sphi 0, %s42
      %s46 = sphi 0, %s45
      %s62 = sphi 0, %s46
      %s66 = sphi 0, %s66
      %s68 = sphi 0, %s66
      %s69 = sphi 0, %s68
      %s83 = sphi 0, %s69
      %s87 = sphi 0, %s87
      %s89 = sphi 0, %s87
      %s90 = sphi 0, %s89
      %s104 = sphi 0, %s90
      %s110 = sphi 0, %s112
      %s113 = sphi 0, %s110
      %s114 = sphi 0, %s113
      %s130 = sphi 0, %s114
    $region4: #{yolo3_forward.10} parent=1 // loop_header_branch
      %14 = sbr.rel (%p12) target = $region8
    $region5: #{yolo3_forward.10} parent=1 // loop_body
      %s16 = ssub.s32 %s11, 1
      %s17 = ssub.s32 %s11, 2
      %s18 = sadd.s32 %s11, 1
      %s20 = sadd.s32 %s19, 1
      %p23 = scmp.eq.s32.totalorder %s11, 3
      %p24 = scmp.ne.s32.totalorder %s19, %s21
      %p25 = scmp.eq.s32.totalorder %s11, 0
      %p26 = por %p24, %p25
      %p27 = scmp.ne.s32.totalorder %s19, %s21
      %p28 = scmp.eq.s32.totalorder %s16, 3
      %p29 = por %p27, %p28
      %p30 = scmp.ne.s32.totalorder %s21, %s22
      %p31 = scmp.eq.s32.totalorder %s16, 0
      %p32 = por %p30, %p31
      %p33 = scmp.ne.s32.totalorder %s21, %s22
      %p34 = scmp.eq.s32.totalorder %s17, 3
      %p35 = por %p33, %p34
      %p37 = scmp.ne.s32.totalorder %s22, %s36
      %p38 = scmp.eq.s32.totalorder %s17, 0
      %p39 = por %p37, %p38
      %s40 = ssub.s32 %s11, %s18
      %p41 = scmp.eq.s32.totalorder %s40, 0
      %s43 = sadd.s32 %s42, 1
      %s44 = scalar_select %p41, %s42, %s43
      %p47 = pneg %p41
      %p48 = scmp.eq.s32.totalorder %s11, 3
      %p49 = por %p47, %p48
      %p50 = scmp.ne.s32.totalorder %s42, %s45
      %p51 = scmp.eq.s32.totalorder %s11, 0
      %p52 = por %p50, %p51
      %p53 = scmp.ne.s32.totalorder %s42, %s45
      %p54 = scmp.eq.s32.totalorder %s16, 3
      %p55 = por %p53, %p54
      %p56 = scmp.ne.s32.totalorder %s45, %s46
      %p57 = scmp.eq.s32.totalorder %s16, 0
      %p58 = por %p56, %p57
      %p59 = scmp.ne.s32.totalorder %s45, %s46
      %p60 = scmp.eq.s32.totalorder %s17, 3
      %p61 = por %p59, %p60
      %p63 = scmp.ne.s32.totalorder %s46, %s62
      %p64 = scmp.eq.s32.totalorder %s17, 0
      %p65 = por %p63, %p64
      %s67 = sadd.s32 %s66, 1
      %p70 = scmp.eq.s32.totalorder %s11, 3
      %p71 = scmp.ne.s32.totalorder %s66, %s68
      %p72 = scmp.eq.s32.totalorder %s11, 0
      %p73 = por %p71, %p72
      %p74 = scmp.ne.s32.totalorder %s66, %s68
      %p75 = scmp.eq.s32.totalorder %s16, 3
      %p76 = por %p74, %p75
      %p77 = scmp.ne.s32.totalorder %s68, %s69
      %p78 = scmp.eq.s32.totalorder %s16, 0
      %p79 = por %p77, %p78
      %p80 = scmp.ne.s32.totalorder %s68, %s69
      %p81 = scmp.eq.s32.totalorder %s17, 3
      %p82 = por %p80, %p81
      %p84 = scmp.ne.s32.totalorder %s69, %s83
      %p85 = scmp.eq.s32.totalorder %s17, 0
      %p86 = por %p84, %p85
      %s88 = sadd.s32 %s87, 1
      %p91 = scmp.eq.s32.totalorder %s11, 3
      %p92 = scmp.ne.s32.totalorder %s87, %s89
      %p93 = scmp.eq.s32.totalorder %s11, 0
      %p94 = por %p92, %p93
      %p95 = scmp.ne.s32.totalorder %s87, %s89
      %p96 = scmp.eq.s32.totalorder %s16, 3
      %p97 = por %p95, %p96
      %p98 = scmp.ne.s32.totalorder %s89, %s90
      %p99 = scmp.eq.s32.totalorder %s16, 0
      %p100 = por %p98, %p99
      %p101 = scmp.ne.s32.totalorder %s89, %s90
      %p102 = scmp.eq.s32.totalorder %s17, 3
      %p103 = por %p101, %p102
      %p105 = scmp.ne.s32.totalorder %s90, %s104
      %p106 = scmp.eq.s32.totalorder %s17, 0
      %p107 = por %p105, %p106
      %s108 = ssub.s32 %s11, %s18
      %p109 = scmp.eq.s32.totalorder %s108, 0
      %s111 = sadd.s32 %s110, 1
      %s112 = scalar_select %p109, %s110, %s111
      %p115 = pneg %p109
      %p116 = scmp.eq.s32.totalorder %s11, 3
      %p117 = por %p115, %p116
      %p118 = scmp.ne.s32.totalorder %s110, %s113
      %p119 = scmp.eq.s32.totalorder %s11, 0
      %p120 = por %p118, %p119
      %p121 = scmp.ne.s32.totalorder %s110, %s113
      %p122 = scmp.eq.s32.totalorder %s16, 3
      %p123 = por %p121, %p122
      %p124 = scmp.ne.s32.totalorder %s113, %s114
      %p125 = scmp.eq.s32.totalorder %s16, 0
      %p126 = por %p124, %p125
      %p127 = scmp.ne.s32.totalorder %s113, %s114
      %p128 = scmp.eq.s32.totalorder %s17, 3
      %p129 = por %p127, %p128
      %p131 = scmp.ne.s32.totalorder %s114, %s130
      %p132 = scmp.eq.s32.totalorder %s17, 0
      %p133 = por %p131, %p132
      %p134 = scmp.le.s32.totalorder 1, %s11
      %p135 = scmp.lt.s32.totalorder %s11, 5
      %p136 = pnand %p134, %p135
      %p137 = pneg %p136
      // Predicated region
      $region9: #{yolo3_forward.10} parent=5 // pred_check
        _
      $region10: #{yolo3_forward.10} parent=5 // pred_check_branch
        %139 = sbr.rel (%p136) target = $region12
      $region11: #{yolo3_forward.10} parent=5 // pred_region
        %s140 = ssub.s32 %s11, 1
        // Predicated region
        $region13: #{yolo3_forward.10} parent=11 // pred_check
          %p141 = pneg %p32
        $region14: #{yolo3_forward.10} parent=11 // pred_check_branch
          %143 = sbr.rel (%p141) target = $region16
        $region15: #{yolo3_forward.10} parent=11 // pred_region
          %145 = vsyncadd [#allocation3], 0
          %s147 = sshll.u32 %s0, 4
          %s148 = int_to_ptr.hbm [resolvable:$true] %s147
          %s149 = sshll.u32 [#allocation2], 4
          %s150 = int_to_ptr.vmem [resolvable:$true] %s149
          %152 = dma.hbm_to_vmem [thread:$0]  %s148, 64, %s150, [#allocation3]
        $region16: #{yolo3_forward.10} parent=11 // pred_fallthru
          _
        // Predicated region
        $region17: #{yolo3_forward.10} parent=11 // pred_check
          %p153 = pneg %p79
        $region18: #{yolo3_forward.10} parent=11 // pred_check_branch
          %155 = sbr.rel (%p153) target = $region20
        $region19: #{yolo3_forward.10} parent=11 // pred_region
          _
        $region20: #{yolo3_forward.10} parent=11 // pred_fallthru
          _
        // Predicated region
        $region21: #{yolo3_forward.10} parent=11 // pred_check
          %p156 = pneg %p100
        $region22: #{yolo3_forward.10} parent=11 // pred_check_branch
          %158 = sbr.rel (%p156) target = $region24
        $region23: #{yolo3_forward.10} parent=11 // pred_region
          _
        $region24: #{yolo3_forward.10} parent=11 // pred_fallthru
          _
      $region12: #{yolo3_forward.10} parent=5 // pred_fallthru
        _
      %p159 = scmp.lt.s32.totalorder %s11, 4
      // Predicated region
      $region25: #{yolo3_forward.10} parent=5 // pred_check
        %p160 = pneg %p159
      $region26: #{yolo3_forward.10} parent=5 // pred_check_branch
        %162 = sbr.rel (%p160) target = $region28
      $region27: #{yolo3_forward.10} parent=5 // pred_region
        // Predicated region
        $region29: #{yolo3_forward.10} parent=27 // pred_check
          %p163 = pneg %p52
        $region30: #{yolo3_forward.10} parent=27 // pred_check_branch
          %165 = sbr.rel (%p163) target = $region32
        $region31: #{yolo3_forward.10} parent=27 // pred_region
          %s166 = sand.u32 %s42, 1
          %s167 = sand.u32 %s42, 1
          %s168 = smul.addr %s167, 64
          %s169 = scalar_lea.vmem [#allocation4], %s168
          %s170 = smul.u32 4, %s11
          %s171 = smul.addr %s170, 4
          %s172 = scalar_lea.vmem %s1, %s171
          // Predicated region
          $region33: #{yolo3_forward.10} parent=31 // pred_check
            _
          $region34: #{yolo3_forward.10} parent=31 // pred_check_branch
            %174 = sbr.rel (0) target = $region36
          $region35: #{yolo3_forward.10} parent=31 // pred_region
            // Predicated region
            $region37: #{yolo3_forward.10} parent=35 // pred_check
              _
            $region38: #{yolo3_forward.10} parent=35 // pred_check_branch
              %176 = sbr.rel (0) target = $region40
            $region39: #{yolo3_forward.10} parent=35 // pred_region
              loop: start=0, step=1, limit=1
              $region41: #{yolo3_forward.10} parent=39 // loop_pre_header
                _
              $region42: #{yolo3_forward.10} parent=39 // loop_header
                %s178 = sphi 0, %s182
                %p179 = scmp.ge.s32.totalorder %s178, 1
                %s183 = sphi %s172, %s172
                %s184 = sphi %s169, %s169
              $region43: #{yolo3_forward.10} parent=39 // loop_header_branch
                %181 = sbr.rel (%p179) target = $region47
              $region44: #{yolo3_forward.10} parent=39 // loop_body
                %v185 = vld [vmem:[%s183] sm:$0xff]
                %186 = vst [vmem:[%s184] sm:$0xff] %v185
                %v187 = vld [vmem:[%s183 + $0x8] sm:$0xff]
                %188 = vst [vmem:[%s184 + $0x8] sm:$0xff] %v187
                %v189 = vld [vmem:[%s183 + $0x40] sm:$0xff]
                %190 = vst [vmem:[%s184 + $0x10] sm:$0xff] %v189
                %v191 = vld [vmem:[%s183 + $0x48] sm:$0xff]
                %192 = vst [vmem:[%s184 + $0x18] sm:$0xff] %v191
                %v193 = vld [vmem:[%s183 + $0x80] sm:$0xff]
                %194 = vst [vmem:[%s184 + $0x20] sm:$0xff] %v193
                %v195 = vld [vmem:[%s183 + $0x88] sm:$0xff]
                %196 = vst [vmem:[%s184 + $0x28] sm:$0xff] %v195
                %v197 = vld [vmem:[%s183 + $0xc0] sm:$0xff]
                %198 = vst [vmem:[%s184 + $0x30] sm:$0xff] %v197
                %v199 = vld [vmem:[%s183 + $0xc8] sm:$0xff]
                %200 = vst [vmem:[%s184 + $0x38] sm:$0xff] %v199
              $region45: #{yolo3_forward.10} parent=39 // loop_footer
                %s182 = sadd.s32 1, %s178
              $region46: #{yolo3_forward.10} parent=39 // loop_footer_branch
                %177 = sbr.rel target = $region42
              $region47: #{yolo3_forward.10} parent=39 // loop_exit
                _
            $region40: #{yolo3_forward.10} parent=35 // pred_fallthru
              _
            // Predicated region
            $region48: #{yolo3_forward.10} parent=35 // pred_check
              _
            $region49: #{yolo3_forward.10} parent=35 // pred_check_branch
              %202 = sbr.rel target = $region51
            $region50: #{yolo3_forward.10} parent=35 // pred_region
              _
            $region51: #{yolo3_forward.10} parent=35 // pred_fallthru
              _
          $region36: #{yolo3_forward.10} parent=31 // pred_fallthru
            _
          %203 = vnop
        $region32: #{yolo3_forward.10} parent=27 // pred_fallthru
          _
      $region28: #{yolo3_forward.10} parent=5 // pred_fallthru
        _
      %p204 = scmp.le.s32.totalorder 1, %s11
      %p205 = scmp.lt.s32.totalorder %s11, 5
      %p206 = pnand %p204, %p205
      %p207 = pneg %p206
      // Predicated region
      $region52: #{yolo3_forward.10} parent=5 // pred_check
        _
      $region53: #{yolo3_forward.10} parent=5 // pred_check_branch
        %209 = sbr.rel (%p206) target = $region55
      $region54: #{yolo3_forward.10} parent=5 // pred_region
        %s210 = ssub.s32 %s11, 1
        // Predicated region
        $region56: #{yolo3_forward.10} parent=54 // pred_check
          %p211 = pneg %p32
        $region57: #{yolo3_forward.10} parent=54 // pred_check_branch
          %213 = sbr.rel (%p211) target = $region59
        $region58: #{yolo3_forward.10} parent=54 // pred_region
          %215 = dma.done [#allocation3], 64
        $region59: #{yolo3_forward.10} parent=54 // pred_fallthru
          _
        %s216 = sand.u32 %s45, 1
        %s217 = sand.u32 %s45, 1
        %s218 = smul.addr %s217, 64
        %s219 = scalar_lea.vmem [#allocation4], %s218
        // Predicated region
        $region60: #{yolo3_forward.10} parent=54 // pred_check
          %p220 = pneg %p58
        $region61: #{yolo3_forward.10} parent=54 // pred_check_branch
          %222 = sbr.rel (%p220) target = $region63
        $region62: #{yolo3_forward.10} parent=54 // pred_region
          _
        $region63: #{yolo3_forward.10} parent=54 // pred_fallthru
          _
        %p223 = pneg %p32
        %p224 = pneg %p29
        %s225 = sand.u32 %s45, 1
        %s226 = sand.u32 %s45, 1
        %s227 = smul.addr %s226, 64
        %s228 = scalar_lea.vmem [#allocation4], %s227
        %p229 = pneg %p58
        %p230 = pneg %p55
        %p231 = pneg %p79
        %p232 = pneg %p76
        %p233 = pneg %p100
        %p234 = pneg %p97
        %p235 = pneg %p126
        %p236 = pneg %p123
        %s237 = smul.u32 4, %s16
        %p238 = scmp.lt.s32.totalorder %s237, 15
        %s239 = scalar_select %p238, %s237, 15
        %s240 = smul.addr %s239, 8
        %s241 = scalar_lea.vmem %s4, %s240
        %s242 = smul.u32 4, %s16
        %s243 = smul.u32 4, %s16
        %p244 = scmp.lt.s32.totalorder %s243, 15
        %s245 = scalar_select %p244, %s243, 15
        %s246 = smul.addr %s245, 8
        %s247 = scalar_lea.vmem %s4, %s246
        %s248 = smul.u32 4, %s16
        %v250 = vld [vmem:[#allocation2] sm:$0xf]
        %v251 = vld [vmem:[%s219] sm:$0xff]
        %v252 = vld [vmem:[%s219 + $0x8] sm:$0xff]
        %v253 = vld [vmem:[%s219 + $0x10] sm:$0xff]
        %v254 = vld [vmem:[%s219 + $0x18] sm:$0xff]
        %v255 = vld [vmem:[%s219 + $0x20] sm:$0xff]
        %v256 = vld [vmem:[%s219 + $0x28] sm:$0xff]
        %v257 = vld [vmem:[%s219 + $0x30] sm:$0x33]
        %v258 = vld [vmem:[%s219 + $0x38] sm:$0x33]
        %v267 = vunpack.c.l.b16 %v251
        %v268 = vunpack.c.h.b16 %v251
        %v269 = vunpack.c.l.b16 %v252
        %v270 = vunpack.c.h.b16 %v252
        %v271 = vunpack.c.l.b16 %v253
        %v272 = vunpack.c.h.b16 %v253
        %v273 = vunpack.c.l.b16 %v254
        %v274 = vunpack.c.h.b16 %v254
        %v275 = vunpack.c.l.b16 %v255
        %v276 = vunpack.c.h.b16 %v255
        %v277 = vunpack.c.l.b16 %v256
        %v278 = vunpack.c.h.b16 %v256
        %v279 = vunpack.c.l.b16 %v257
        %v280 = vunpack.c.h.b16 %v257
        %v281 = vunpack.c.l.b16 %v258
        %v282 = vunpack.c.h.b16 %v258
        %v283 = vpack.c.b16 %v271, %v267
        %v284 = vpack.c.b16 %v272, %v268
        %v285 = vpack.c.b16 %v273, %v269
        %v286 = vpack.c.b16 %v274, %v270
        %v287 = vpack.c.b16 %v279, %v275
        %v288 = vpack.c.b16 %v280, %v276
        %v289 = vpack.c.b16 %v281, %v277
        %v290 = vpack.c.b16 %v282, %v278
        %vm295 = vcmask 220160
        %v297 = vsel %vm295, %v250, 0
        %vm299 = vcmask 1044480
        %vm300 = vcmask 1045504
        %v301 = vsel %vm299, 4294967295, 65535
        %v302 = vsel %vm300, %v301, 0
        %v304 = vand.u32 %v287, %v302
        %v307 = vand.u32 %v288, %v302
        %v310 = vand.u32 %v289, %v302
        %v313 = vand.u32 %v290, %v302
        %315 = vmatpush.bf16.msra.mxu0 0
        %316 = vmatpush.bf16.msra.mxu0 0
        %317 = vmatpush.bf16.msra.mxu0 0
        %318 = vmatpush.bf16.msra.mxu0 0
        %319 = vmatpush.bf16.msra.mxu0 0
        %320 = vmatpush.bf16.msra.mxu0 0
        %321 = vmatpush.bf16.msra.mxu0 %v304
        %322 = vmatpush.bf16.msra.mxu0 %v283
        %323 = vmatmul.bf16.gmra.mxu0 %v297
        %v324 = vpop.f32.mrf.mxu0
        %v325 = vadd.f32 0.0, %v324
        %v326 = vpop.f32.mrf.mxu0
        %327 = vdwg.mxu0
        %328 = vmatpush.bf16.msra.mxu0 0
        %329 = vmatpush.bf16.msra.mxu0 0
        %330 = vmatpush.bf16.msra.mxu0 0
        %331 = vmatpush.bf16.msra.mxu0 0
        %332 = vmatpush.bf16.msra.mxu0 0
        %333 = vmatpush.bf16.msra.mxu0 0
        %334 = vmatpush.bf16.msra.mxu0 %v307
        %335 = vmatpush.bf16.msra.mxu0 %v284
        %336 = vmatmul.bf16.gmra.mxu0 %v297
        %v337 = vpop.f32.mrf.mxu0
        %v338 = vadd.f32 0.0, %v337
        %v339 = vpop.f32.mrf.mxu0
        %340 = vdwg.mxu0
        %341 = vmatpush.bf16.msra.mxu0 0
        %342 = vmatpush.bf16.msra.mxu0 0
        %343 = vmatpush.bf16.msra.mxu0 0
        %344 = vmatpush.bf16.msra.mxu0 0
        %345 = vmatpush.bf16.msra.mxu0 0
        %346 = vmatpush.bf16.msra.mxu0 0
        %347 = vmatpush.bf16.msra.mxu0 %v310
        %348 = vmatpush.bf16.msra.mxu0 %v285
        %349 = vmatmul.bf16.gmra.mxu0 %v297
        %v350 = vpop.f32.mrf.mxu0
        %v351 = vadd.f32 0.0, %v350
        %v352 = vpop.f32.mrf.mxu0
        %353 = vdwg.mxu0
        %354 = vmatpush.bf16.msra.mxu0 0
        %355 = vmatpush.bf16.msra.mxu0 0
        %356 = vmatpush.bf16.msra.mxu0 0
        %357 = vmatpush.bf16.msra.mxu0 0
        %358 = vmatpush.bf16.msra.mxu0 0
        %359 = vmatpush.bf16.msra.mxu0 0
        %360 = vmatpush.bf16.msra.mxu0 %v313
        %361 = vmatpush.bf16.msra.mxu0 %v286
        %362 = vmatmul.bf16.gmra.mxu0 %v297
        %v363 = vpop.f32.mrf.mxu0
        %v364 = vadd.f32 0.0, %v363
        %v365 = vpop.f32.mrf.mxu0
        %366 = vdwg.mxu0
        %v367 = vld [vmem:[%s2] sm:$0xff]
        %369 = vset.pattern.permute.xlu0 0
        %370 = vperm.xlu0 %369, %v367
        %v371 = vpop.permute.xlu0 %370
        %v373 = vmul.f32 %v325, %v371
        %v374 = vmul.f32 %v338, %v371
        %v375 = vmul.f32 %v351, %v371
        %v376 = vmul.f32 %v364, %v371
        %v377 = vld [vmem:[%s3] sm:$0xff]
        %379 = vset.pattern.permute.xlu0 0
        %380 = vperm.xlu0 %379, %v377
        %v381 = vpop.permute.xlu0 %380
        %v383 = vadd.f32 %v373, %v381
        %v384 = vadd.f32 %v374, %v381
        %v385 = vadd.f32 %v375, %v381
        %v386 = vadd.f32 %v376, %v381
        %vm387 = vcmp.ge.f32.partialorder %v383, 0.0
        %vm388 = vcmp.ge.f32.partialorder %v384, 0.0
        %vm389 = vcmp.ge.f32.partialorder %v385, 0.0
        %vm390 = vcmp.ge.f32.partialorder %v386, 0.0
        %v391 = vmul.f32 %v383, 0.1
        %v392 = vmul.f32 %v384, 0.1
        %v393 = vmul.f32 %v385, 0.1
        %v394 = vmul.f32 %v386, 0.1
        %v395 = vsel %vm387, %v383, %v391
        %v396 = vsel %vm388, %v384, %v392
        %v397 = vsel %vm389, %v385, %v393
        %v398 = vsel %vm390, %v386, %v394
        %399 = vst [vmem:[%s247] sm:$0xff] %v395
        %400 = vst [vmem:[%s247 + $0x8] sm:$0xff] %v396
        %401 = vst [vmem:[%s247 + $0x10] sm:$0xff] %v397
        %402 = vst [vmem:[%s247 + $0x18] sm:$0xff] %v398
        %s403 = smul.u32 4, %s16
        %p404 = scmp.lt.s32.totalorder %s403, 15
        %s405 = scalar_select %p404, %s403, 15
        %s406 = smul.addr %s405, 8
        %s407 = scalar_lea.vmem %s4, %s406
        // Predicated region
        $region64: #{yolo3_forward.10} parent=54 // pred_check
          %p408 = pneg %p123
        $region65: #{yolo3_forward.10} parent=54 // pred_check_branch
          %410 = sbr.rel (%p408) target = $region67
        $region66: #{yolo3_forward.10} parent=54 // pred_region
          %s411 = smul.u32 4, %s16
        $region67: #{yolo3_forward.10} parent=54 // pred_fallthru
          _
      $region55: #{yolo3_forward.10} parent=5 // pred_fallthru
        _
      %p412 = scmp.le.s32.totalorder 2, %s11
      // Predicated region
      $region68: #{yolo3_forward.10} parent=5 // pred_check
        %p413 = pneg %p412
      $region69: #{yolo3_forward.10} parent=5 // pred_check_branch
        %415 = sbr.rel (%p413) target = $region71
      $region70: #{yolo3_forward.10} parent=5 // pred_region
        %s416 = ssub.s32 %s11, 2
        // Predicated region
        $region72: #{yolo3_forward.10} parent=70 // pred_check
          %p417 = pneg %p129
        $region73: #{yolo3_forward.10} parent=70 // pred_check_branch
          %419 = sbr.rel (%p417) target = $region75
        $region74: #{yolo3_forward.10} parent=70 // pred_region
          %s420 = smul.u32 4, %s17
          %p421 = scmp.lt.s32.totalorder %s420, 15
          %s422 = scalar_select %p421, %s420, 15
          %s423 = smul.addr %s422, 8
          %s424 = scalar_lea.vmem %s4, %s423
        $region75: #{yolo3_forward.10} parent=70 // pred_fallthru
          _
      $region71: #{yolo3_forward.10} parent=5 // pred_fallthru
        _
    $region6: #{yolo3_forward.10} parent=1 // loop_footer
      %s15 = sadd.s32 1, %s11
    $region7: #{yolo3_forward.10} parent=1 // loop_footer_branch
      %10 = sbr.rel target = $region3
    $region8: #{yolo3_forward.10} parent=1 // loop_exit
      _
    %425 = vsyncpa [#allocation3], 1
    %s426 = scalar_lea.sflag [#allocation3], 1
    %427 = vsyncpa %s426, 1

// kernel: yolo3_forward.11
$region0: #{yolo3_forward.11}
  #allocation0 [shape = 'u32[]', space=smem, size = 0x4, offset = 0x4, fixed_abs, tag = 'smem constant byte address 0x4 - core index']
  #allocation1 [shape = 'u32[72,128]{1,0:T(1,128)}', space=vmem, size = 0x9000, scoped, tag = 'internal scratch']
  %s0 = inlined_call_operand.vmem [shape: bf16[16,72], index: 0, kind: input, shape index: {}]
  %s1 = inlined_call_operand.vmem [shape: bf16[72,512], index: 1, kind: input, shape index: {}]
  %s2 = inlined_call_operand.vmem [shape: f32[16,1], index: 2, kind: input, shape index: {}]
  %s3 = inlined_call_operand.vmem [shape: f32[16,1], index: 3, kind: input, shape index: {}]
  %s4 = inlined_call_operand.vmem [shape: f32[16,512], index: 4, kind: output, shape index: {}]
  %s5 = sld [smem:[#allocation0]]
  $region26: #{yolo3_forward.11} parent=0
    _
  %s7 = ssub.s32 1, %s5
  %s8 = scalar_select 0, %s7, %s5
  // Predicated region
  $region2: #{yolo3_forward.11} parent=0 // pred_check
    _
  $region3: #{yolo3_forward.11} parent=0 // pred_check_branch
    %10 = sbr.rel (0) target = $region5
  $region4: #{yolo3_forward.11} parent=0 // pred_region
    _
  $region5: #{yolo3_forward.11} parent=0 // pred_fallthru
    _
  // Predicated region
  $region6: #{yolo3_forward.11} parent=0 // pred_check
    _
  $region7: #{yolo3_forward.11} parent=0 // pred_check_branch
    %12 = sbr.rel (0) target = $region9
  $region8: #{yolo3_forward.11} parent=0 // pred_region
    _
  $region9: #{yolo3_forward.11} parent=0 // pred_fallthru
    _
  // Predicated region
  $region10: #{yolo3_forward.11} parent=0 // pred_check
    _
  $region11: #{yolo3_forward.11} parent=0 // pred_check_branch
    %14 = sbr.rel (0) target = $region13
  $region12: #{yolo3_forward.11} parent=0 // pred_region
    _
  $region13: #{yolo3_forward.11} parent=0 // pred_fallthru
    _
  // Predicated region
  $region14: #{yolo3_forward.11} parent=0 // pred_check
    _
  $region15: #{yolo3_forward.11} parent=0 // pred_check_branch
    %16 = sbr.rel (0) target = $region17
  $region16: #{yolo3_forward.11} parent=0 // pred_region
    _
  $region17: #{yolo3_forward.11} parent=0 // pred_fallthru
    _
  %v18 = vld [vmem:[%s0] sm:$0xf]
  %v19 = vld [vmem:[%s0 + $0x4] sm:$0xf]
  %v20 = vld [vmem:[%s1] sm:$0xff]
  %v21 = vld [vmem:[%s1 + $0x8] sm:$0xff]
  %v22 = vld [vmem:[%s1 + $0x10] sm:$0xff]
  %v23 = vld [vmem:[%s1 + $0x18] sm:$0xff]
  %v24 = vld [vmem:[%s1 + $0x20] sm:$0xff]
  %v25 = vld [vmem:[%s1 + $0x28] sm:$0xff]
  %v26 = vld [vmem:[%s1 + $0x30] sm:$0xff]
  %v27 = vld [vmem:[%s1 + $0x38] sm:$0xff]
  %v28 = vld [vmem:[%s1 + $0x40] sm:$0xff]
  %v29 = vld [vmem:[%s1 + $0x48] sm:$0xff]
  %v30 = vld [vmem:[%s1 + $0x50] sm:$0xff]
  %v31 = vld [vmem:[%s1 + $0x58] sm:$0xff]
  %v32 = vld [vmem:[%s1 + $0x60] sm:$0xff]
  %v33 = vld [vmem:[%s1 + $0x68] sm:$0xff]
  %v34 = vld [vmem:[%s1 + $0x70] sm:$0xff]
  %v35 = vld [vmem:[%s1 + $0x78] sm:$0xff]
  %v36 = vld [vmem:[%s1 + $0x80] sm:$0xff]
  %v37 = vld [vmem:[%s1 + $0x88] sm:$0xff]
  %v40 = vunpack.c.l.b16 %v18
  %v41 = vunpack.c.l.b16 %v19
  %v42 = vpack.c.b16 %v41, %v40
  %v61 = vunpack.c.l.b16 %v20
  %v62 = vunpack.c.h.b16 %v20
  %v63 = vunpack.c.l.b16 %v21
  %v64 = vunpack.c.h.b16 %v21
  %v65 = vunpack.c.l.b16 %v22
  %v66 = vunpack.c.h.b16 %v22
  %v67 = vunpack.c.l.b16 %v23
  %v68 = vunpack.c.h.b16 %v23
  %v69 = vunpack.c.l.b16 %v24
  %v70 = vunpack.c.h.b16 %v24
  %v71 = vunpack.c.l.b16 %v25
  %v72 = vunpack.c.h.b16 %v25
  %v73 = vunpack.c.l.b16 %v26
  %v74 = vunpack.c.h.b16 %v26
  %v75 = vunpack.c.l.b16 %v27
  %v76 = vunpack.c.h.b16 %v27
  %v77 = vunpack.c.l.b16 %v28
  %v78 = vunpack.c.h.b16 %v28
  %v79 = vunpack.c.l.b16 %v29
  %v80 = vunpack.c.h.b16 %v29
  %v81 = vunpack.c.l.b16 %v30
  %v82 = vunpack.c.h.b16 %v30
  %v83 = vunpack.c.l.b16 %v31
  %v84 = vunpack.c.h.b16 %v31
  %v85 = vunpack.c.l.b16 %v32
  %v86 = vunpack.c.h.b16 %v32
  %v87 = vunpack.c.l.b16 %v33
  %v88 = vunpack.c.h.b16 %v33
  %v89 = vunpack.c.l.b16 %v34
  %v90 = vunpack.c.h.b16 %v34
  %v91 = vunpack.c.l.b16 %v35
  %v92 = vunpack.c.h.b16 %v35
  %v93 = vunpack.c.l.b16 %v36
  %v94 = vunpack.c.h.b16 %v36
  %v95 = vunpack.c.l.b16 %v37
  %v96 = vunpack.c.h.b16 %v37
  %v97 = vpack.c.b16 %v65, %v61
  %v98 = vpack.c.b16 %v66, %v62
  %v99 = vpack.c.b16 %v67, %v63
  %v100 = vpack.c.b16 %v68, %v64
  %v101 = vpack.c.b16 %v73, %v69
  %v102 = vpack.c.b16 %v74, %v70
  %v103 = vpack.c.b16 %v75, %v71
  %v104 = vpack.c.b16 %v76, %v72
  %v105 = vpack.c.b16 %v81, %v77
  %v106 = vpack.c.b16 %v82, %v78
  %v107 = vpack.c.b16 %v83, %v79
  %v108 = vpack.c.b16 %v84, %v80
  %v109 = vpack.c.b16 %v89, %v85
  %v110 = vpack.c.b16 %v90, %v86
  %v111 = vpack.c.b16 %v91, %v87
  %v112 = vpack.c.b16 %v92, %v88
  %v113 = vpack.c.b16 %v93, %v93
  %v114 = vpack.c.b16 %v94, %v94
  %v115 = vpack.c.b16 %v95, %v95
  %v116 = vpack.c.b16 %v96, %v96
  %vm133 = vcmask 588800
  %v135 = vsel %vm133, %v42, 0
  %vm137 = vcmask 1043456
  %v139 = vsel %vm137, %v113, 0
  %v142 = vsel %vm137, %v114, 0
  %v145 = vsel %vm137, %v115, 0
  %v148 = vsel %vm137, %v116, 0
  %150 = vmatpush.bf16.msra.mxu0 0
  %151 = vmatpush.bf16.msra.mxu0 0
  %152 = vmatpush.bf16.msra.mxu0 0
  %153 = vmatpush.bf16.msra.mxu0 %v139
  %154 = vmatpush.bf16.msra.mxu0 %v109
  %155 = vmatpush.bf16.msra.mxu0 %v105
  %156 = vmatpush.bf16.msra.mxu0 %v101
  %157 = vmatpush.bf16.msra.mxu0 %v97
  %158 = vmatmul.bf16.gmra.mxu0 %v135
  %v159 = vpop.f32.mrf.mxu0
  %v160 = vadd.f32 0.0, %v159
  %v161 = vpop.f32.mrf.mxu0
  %v162 = vadd.f32 0.0, %v161
  %163 = vdwg.mxu0
  %164 = vmatpush.bf16.msra.mxu0 0
  %165 = vmatpush.bf16.msra.mxu0 0
  %166 = vmatpush.bf16.msra.mxu0 0
  %167 = vmatpush.bf16.msra.mxu0 %v142
  %168 = vmatpush.bf16.msra.mxu0 %v110
  %169 = vmatpush.bf16.msra.mxu0 %v106
  %170 = vmatpush.bf16.msra.mxu0 %v102
  %171 = vmatpush.bf16.msra.mxu0 %v98
  %172 = vmatmul.bf16.gmra.mxu0 %v135
  %v173 = vpop.f32.mrf.mxu0
  %v174 = vadd.f32 0.0, %v173
  %v175 = vpop.f32.mrf.mxu0
  %v176 = vadd.f32 0.0, %v175
  %177 = vdwg.mxu0
  %178 = vmatpush.bf16.msra.mxu0 0
  %179 = vmatpush.bf16.msra.mxu0 0
  %180 = vmatpush.bf16.msra.mxu0 0
  %181 = vmatpush.bf16.msra.mxu0 %v145
  %182 = vmatpush.bf16.msra.mxu0 %v111
  %183 = vmatpush.bf16.msra.mxu0 %v107
  %184 = vmatpush.bf16.msra.mxu0 %v103
  %185 = vmatpush.bf16.msra.mxu0 %v99
  %186 = vmatmul.bf16.gmra.mxu0 %v135
  %v187 = vpop.f32.mrf.mxu0
  %v188 = vadd.f32 0.0, %v187
  %v189 = vpop.f32.mrf.mxu0
  %v190 = vadd.f32 0.0, %v189
  %191 = vdwg.mxu0
  %192 = vmatpush.bf16.msra.mxu0 0
  %193 = vmatpush.bf16.msra.mxu0 0
  %194 = vmatpush.bf16.msra.mxu0 0
  %195 = vmatpush.bf16.msra.mxu0 %v148
  %196 = vmatpush.bf16.msra.mxu0 %v112
  %197 = vmatpush.bf16.msra.mxu0 %v108
  %198 = vmatpush.bf16.msra.mxu0 %v104
  %199 = vmatpush.bf16.msra.mxu0 %v100
  %200 = vmatmul.bf16.gmra.mxu0 %v135
  %v201 = vpop.f32.mrf.mxu0
  %v202 = vadd.f32 0.0, %v201
  %v203 = vpop.f32.mrf.mxu0
  %v204 = vadd.f32 0.0, %v203
  %205 = vdwg.mxu0
  %v206 = vld [vmem:[%s2] sm:$0xff]
  %v207 = vld [vmem:[%s2 + $0x8] sm:$0xff]
  %209 = vset.pattern.permute.xlu0 0
  %210 = vperm.xlu0 %209, %v206
  %v211 = vpop.permute.xlu0 %210
  %214 = vset.pattern.permute.xlu0 0
  %215 = vperm.xlu0 %214, %v207
  %v216 = vpop.permute.xlu0 %215
  %v218 = vmul.f32 %v160, %v211
  %v219 = vmul.f32 %v174, %v211
  %v220 = vmul.f32 %v188, %v211
  %v221 = vmul.f32 %v202, %v211
  %v222 = vmul.f32 %v162, %v216
  %v223 = vmul.f32 %v176, %v216
  %v224 = vmul.f32 %v190, %v216
  %v225 = vmul.f32 %v204, %v216
  %v226 = vld [vmem:[%s3] sm:$0xff]
  %v227 = vld [vmem:[%s3 + $0x8] sm:$0xff]
  %229 = vset.pattern.permute.xlu0 0
  %230 = vperm.xlu0 %229, %v226
  %v231 = vpop.permute.xlu0 %230
  %234 = vset.pattern.permute.xlu0 0
  %235 = vperm.xlu0 %234, %v227
  %v236 = vpop.permute.xlu0 %235
  %v238 = vadd.f32 %v218, %v231
  %v239 = vadd.f32 %v219, %v231
  %v240 = vadd.f32 %v220, %v231
  %v241 = vadd.f32 %v221, %v231
  %v242 = vadd.f32 %v222, %v236
  %v243 = vadd.f32 %v223, %v236
  %v244 = vadd.f32 %v224, %v236
  %v245 = vadd.f32 %v225, %v236
  %vm246 = vcmp.ge.f32.partialorder %v238, 0.0
  %vm247 = vcmp.ge.f32.partialorder %v239, 0.0
  %vm248 = vcmp.ge.f32.partialorder %v240, 0.0
  %vm249 = vcmp.ge.f32.partialorder %v241, 0.0
  %vm250 = vcmp.ge.f32.partialorder %v242, 0.0
  %vm251 = vcmp.ge.f32.partialorder %v243, 0.0
  %vm252 = vcmp.ge.f32.partialorder %v244, 0.0
  %vm253 = vcmp.ge.f32.partialorder %v245, 0.0
  %v254 = vmul.f32 %v238, 0.1
  %v255 = vmul.f32 %v239, 0.1
  %v256 = vmul.f32 %v240, 0.1
  %v257 = vmul.f32 %v241, 0.1
  %v258 = vmul.f32 %v242, 0.1
  %v259 = vmul.f32 %v243, 0.1
  %v260 = vmul.f32 %v244, 0.1
  %v261 = vmul.f32 %v245, 0.1
  %v262 = vsel %vm246, %v238, %v254
  %v263 = vsel %vm247, %v239, %v255
  %v264 = vsel %vm248, %v240, %v256
  %v265 = vsel %vm249, %v241, %v257
  %v266 = vsel %vm250, %v242, %v258
  %v267 = vsel %vm251, %v243, %v259
  %v268 = vsel %vm252, %v244, %v260
  %v269 = vsel %vm253, %v245, %v261
  %270 = vst [vmem:[%s4] sm:$0xff] %v262
  %271 = vst [vmem:[%s4 + $0x8] sm:$0xff] %v263
  %272 = vst [vmem:[%s4 + $0x10] sm:$0xff] %v264
  %273 = vst [vmem:[%s4 + $0x18] sm:$0xff] %v265
  %274 = vst [vmem:[%s4 + $0x20] sm:$0xff] %v266
  %275 = vst [vmem:[%s4 + $0x28] sm:$0xff] %v267
  %276 = vst [vmem:[%s4 + $0x30] sm:$0xff] %v268
  %277 = vst [vmem:[%s4 + $0x38] sm:$0xff] %v269
  // Predicated region
  $region18: #{yolo3_forward.11} parent=0 // pred_check
    _
  $region19: #{yolo3_forward.11} parent=0 // pred_check_branch
    %279 = sbr.rel (0) target = $region21
  $region20: #{yolo3_forward.11} parent=0 // pred_region
    _
  $region21: #{yolo3_forward.11} parent=0 // pred_fallthru
    _
  // Predicated region
  $region22: #{yolo3_forward.11} parent=0 // pred_check
    _
  $region23: #{yolo3_forward.11} parent=0 // pred_check_branch
    %281 = sbr.rel (0) target = $region25
  $region24: #{yolo3_forward.11} parent=0 // pred_region
    _
  $region25: #{yolo3_forward.11} parent=0 // pred_fallthru
    _

// kernel: yolo3_forward.12
$region0: #{yolo3_forward.12}
  #allocation0 [shape = 'u32[]', space=smem, size = 0x4, offset = 0x4, fixed_abs, tag = 'smem constant byte address 0x4 - core index']
  #allocation1 [shape = 'u32[72,128]{1,0:T(1,128)}', space=vmem, size = 0x9000, scoped, tag = 'internal scratch']
  %s0 = inlined_call_operand.vmem [shape: bf16[8,16], index: 0, kind: input, shape index: {}]
  %s1 = inlined_call_operand.vmem [shape: bf16[16,512], index: 1, kind: input, shape index: {}]
  %s2 = inlined_call_operand.vmem [shape: f32[8,1], index: 2, kind: input, shape index: {}]
  %s3 = inlined_call_operand.vmem [shape: f32[8,1], index: 3, kind: input, shape index: {}]
  %s4 = inlined_call_operand.vmem [shape: f32[8,512], index: 4, kind: output, shape index: {}]
  %s5 = sld [smem:[#allocation0]]
  $region26: #{yolo3_forward.12} parent=0
    _
  %s7 = ssub.s32 1, %s5
  %s8 = scalar_select 0, %s7, %s5
  // Predicated region
  $region2: #{yolo3_forward.12} parent=0 // pred_check
    _
  $region3: #{yolo3_forward.12} parent=0 // pred_check_branch
    %10 = sbr.rel (0) target = $region5
  $region4: #{yolo3_forward.12} parent=0 // pred_region
    _
  $region5: #{yolo3_forward.12} parent=0 // pred_fallthru
    _
  // Predicated region
  $region6: #{yolo3_forward.12} parent=0 // pred_check
    _
  $region7: #{yolo3_forward.12} parent=0 // pred_check_branch
    %12 = sbr.rel (0) target = $region9
  $region8: #{yolo3_forward.12} parent=0 // pred_region
    _
  $region9: #{yolo3_forward.12} parent=0 // pred_fallthru
    _
  // Predicated region
  $region10: #{yolo3_forward.12} parent=0 // pred_check
    _
  $region11: #{yolo3_forward.12} parent=0 // pred_check_branch
    %14 = sbr.rel (0) target = $region13
  $region12: #{yolo3_forward.12} parent=0 // pred_region
    _
  $region13: #{yolo3_forward.12} parent=0 // pred_fallthru
    _
  // Predicated region
  $region14: #{yolo3_forward.12} parent=0 // pred_check
    _
  $region15: #{yolo3_forward.12} parent=0 // pred_check_branch
    %16 = sbr.rel (0) target = $region17
  $region16: #{yolo3_forward.12} parent=0 // pred_region
    _
  $region17: #{yolo3_forward.12} parent=0 // pred_fallthru
    _
  %v18 = vld [vmem:[%s0] sm:$0xf]
  %v19 = vld [vmem:[%s1] sm:$0xff]
  %v20 = vld [vmem:[%s1 + $0x8] sm:$0xff]
  %v21 = vld [vmem:[%s1 + $0x10] sm:$0xff]
  %v22 = vld [vmem:[%s1 + $0x18] sm:$0xff]
  %v27 = vunpack.c.l.b16 %v19
  %v28 = vunpack.c.h.b16 %v19
  %v29 = vunpack.c.l.b16 %v20
  %v30 = vunpack.c.h.b16 %v20
  %v31 = vunpack.c.l.b16 %v21
  %v32 = vunpack.c.h.b16 %v21
  %v33 = vunpack.c.l.b16 %v22
  %v34 = vunpack.c.h.b16 %v22
  %v35 = vpack.c.b16 %v31, %v27
  %v36 = vpack.c.b16 %v32, %v28
  %v37 = vpack.c.b16 %v33, %v29
  %v38 = vpack.c.b16 %v34, %v30
  %vm43 = vcmask 130048
  %v45 = vsel %vm43, %v18, 0
  %47 = vmatpush.bf16.msra.mxu0 0
  %48 = vmatpush.bf16.msra.mxu0 0
  %49 = vmatpush.bf16.msra.mxu0 0
  %50 = vmatpush.bf16.msra.mxu0 0
  %51 = vmatpush.bf16.msra.mxu0 0
  %52 = vmatpush.bf16.msra.mxu0 0
  %53 = vmatpush.bf16.msra.mxu0 0
  %54 = vmatpush.bf16.msra.mxu0 %v35
  %55 = vmatmul.bf16.gmra.mxu0 %v45
  %v56 = vpop.f32.mrf.mxu0
  %v57 = vadd.f32 0.0, %v56
  %v58 = vpop.f32.mrf.mxu0
  %59 = vdwg.mxu0
  %60 = vmatpush.bf16.msra.mxu0 0
  %61 = vmatpush.bf16.msra.mxu0 0
  %62 = vmatpush.bf16.msra.mxu0 0
  %63 = vmatpush.bf16.msra.mxu0 0
  %64 = vmatpush.bf16.msra.mxu0 0
  %65 = vmatpush.bf16.msra.mxu0 0
  %66 = vmatpush.bf16.msra.mxu0 0
  %67 = vmatpush.bf16.msra.mxu0 %v36
  %68 = vmatmul.bf16.gmra.mxu0 %v45
  %v69 = vpop.f32.mrf.mxu0
  %v70 = vadd.f32 0.0, %v69
  %v71 = vpop.f32.mrf.mxu0
  %72 = vdwg.mxu0
  %73 = vmatpush.bf16.msra.mxu0 0
  %74 = vmatpush.bf16.msra.mxu0 0
  %75 = vmatpush.bf16.msra.mxu0 0
  %76 = vmatpush.bf16.msra.mxu0 0
  %77 = vmatpush.bf16.msra.mxu0 0
  %78 = vmatpush.bf16.msra.mxu0 0
  %79 = vmatpush.bf16.msra.mxu0 0
  %80 = vmatpush.bf16.msra.mxu0 %v37
  %81 = vmatmul.bf16.gmra.mxu0 %v45
  %v82 = vpop.f32.mrf.mxu0
  %v83 = vadd.f32 0.0, %v82
  %v84 = vpop.f32.mrf.mxu0
  %85 = vdwg.mxu0
  %86 = vmatpush.bf16.msra.mxu0 0
  %87 = vmatpush.bf16.msra.mxu0 0
  %88 = vmatpush.bf16.msra.mxu0 0
  %89 = vmatpush.bf16.msra.mxu0 0
  %90 = vmatpush.bf16.msra.mxu0 0
  %91 = vmatpush.bf16.msra.mxu0 0
  %92 = vmatpush.bf16.msra.mxu0 0
  %93 = vmatpush.bf16.msra.mxu0 %v38
  %94 = vmatmul.bf16.gmra.mxu0 %v45
  %v95 = vpop.f32.mrf.mxu0
  %v96 = vadd.f32 0.0, %v95
  %v97 = vpop.f32.mrf.mxu0
  %98 = vdwg.mxu0
  %v99 = vld [vmem:[%s2] sm:$0xff]
  %101 = vset.pattern.permute.xlu0 0
  %102 = vperm.xlu0 %101, %v99
  %v103 = vpop.permute.xlu0 %102
  %v105 = vmul.f32 %v57, %v103
  %v106 = vmul.f32 %v70, %v103
  %v107 = vmul.f32 %v83, %v103
  %v108 = vmul.f32 %v96, %v103
  %v109 = vld [vmem:[%s3] sm:$0xff]
  %111 = vset.pattern.permute.xlu0 0
  %112 = vperm.xlu0 %111, %v109
  %v113 = vpop.permute.xlu0 %112
  %v115 = vadd.f32 %v105, %v113
  %v116 = vadd.f32 %v106, %v113
  %v117 = vadd.f32 %v107, %v113
  %v118 = vadd.f32 %v108, %v113
  %vm119 = vcmp.ge.f32.partialorder %v115, 0.0
  %vm120 = vcmp.ge.f32.partialorder %v116, 0.0
  %vm121 = vcmp.ge.f32.partialorder %v117, 0.0
  %vm122 = vcmp.ge.f32.partialorder %v118, 0.0
  %v123 = vmul.f32 %v115, 0.1
  %v124 = vmul.f32 %v116, 0.1
  %v125 = vmul.f32 %v117, 0.1
  %v126 = vmul.f32 %v118, 0.1
  %v127 = vsel %vm119, %v115, %v123
  %v128 = vsel %vm120, %v116, %v124
  %v129 = vsel %vm121, %v117, %v125
  %v130 = vsel %vm122, %v118, %v126
  %131 = vst [vmem:[%s4] sm:$0xff] %v127
  %132 = vst [vmem:[%s4 + $0x8] sm:$0xff] %v128
  %133 = vst [vmem:[%s4 + $0x10] sm:$0xff] %v129
  %134 = vst [vmem:[%s4 + $0x18] sm:$0xff] %v130
  // Predicated region
  $region18: #{yolo3_forward.12} parent=0 // pred_check
    _
  $region19: #{yolo3_forward.12} parent=0 // pred_check_branch
    %136 = sbr.rel (0) target = $region21
  $region20: #{yolo3_forward.12} parent=0 // pred_region
    _
  $region21: #{yolo3_forward.12} parent=0 // pred_fallthru
    _
  // Predicated region
  $region22: #{yolo3_forward.12} parent=0 // pred_check
    _
  $region23: #{yolo3_forward.12} parent=0 // pred_check_branch
    %138 = sbr.rel (0) target = $region25
  $region24: #{yolo3_forward.12} parent=0 // pred_region
    _
  $region25: #{yolo3_forward.12} parent=0 // pred_fallthru
    _

// kernel: yolo3_forward.18
$region0: #{yolo3_forward.18}
  #allocation0 [shape = 'u32[]', space=smem, size = 0x4, offset = 0x4, fixed_abs, tag = 'smem constant byte address 0x4 - core index']
  #allocation1 [shape = 'u32[72,128]{1,0:T(1,128)}', space=vmem, size = 0x9000, scoped, tag = 'internal scratch']
  %s0 = inlined_call_operand.vmem [shape: bf16[24,16], index: 0, kind: input, shape index: {}]
  %s1 = inlined_call_operand.vmem [shape: bf16[16,2048], index: 1, kind: input, shape index: {}]
  %s2 = inlined_call_operand.vmem [shape: f32[24,1], index: 2, kind: input, shape index: {}]
  %s3 = inlined_call_operand.vmem [shape: f32[24,1], index: 3, kind: input, shape index: {}]
  %s4 = inlined_call_operand.vmem [shape: f32[24,2048], index: 4, kind: output, shape index: {}]
  %s5 = sld [smem:[#allocation0]]
  $region91: #{yolo3_forward.18} parent=0
    _
  %s7 = ssub.s32 1, %s5
  %s8 = scalar_select 0, %s7, %s5
  $region1: #{yolo3_forward.18} parent=0
    #allocation2 [shape = 'u8[32768]{0}', space=vmem, size = 0x8000, scoped, tag = 'input window, operand 1']
    #allocation3 [shape = 'u8[98304]{0}', space=vmem, size = 0x18000, scoped, tag = 'output window, operand 0']
    loop: start=0, step=1, limit=6
    $region2: #{yolo3_forward.18} parent=1 // loop_pre_header
      _
    $region3: #{yolo3_forward.18} parent=1 // loop_header
      %s10 = sphi 0, %s14
      %p11 = scmp.ge.s32.totalorder %s10, 6
      %s18 = sphi 0, %s18
      %s20 = sphi 0, %s18
      %s21 = sphi 0, %s20
      %s35 = sphi 0, %s21
      %s41 = sphi 0, %s43
      %s44 = sphi 0, %s41
      %s45 = sphi 0, %s44
      %s61 = sphi 0, %s45
      %s65 = sphi 0, %s65
      %s67 = sphi 0, %s65
      %s68 = sphi 0, %s67
      %s82 = sphi 0, %s68
      %s86 = sphi 0, %s86
      %s88 = sphi 0, %s86
      %s89 = sphi 0, %s88
      %s103 = sphi 0, %s89
      %s109 = sphi 0, %s111
      %s112 = sphi 0, %s109
      %s113 = sphi 0, %s112
      %s129 = sphi 0, %s113
    $region4: #{yolo3_forward.18} parent=1 // loop_header_branch
      %13 = sbr.rel (%p11) target = $region8
    $region5: #{yolo3_forward.18} parent=1 // loop_body
      %s15 = ssub.s32 %s10, 1
      %s16 = ssub.s32 %s10, 2
      %s17 = sadd.s32 %s10, 1
      %s19 = sadd.s32 %s18, 1
      %p22 = scmp.eq.s32.totalorder %s10, 3
      %p23 = scmp.ne.s32.totalorder %s18, %s20
      %p24 = scmp.eq.s32.totalorder %s10, 0
      %p25 = por %p23, %p24
      %p26 = scmp.ne.s32.totalorder %s18, %s20
      %p27 = scmp.eq.s32.totalorder %s15, 3
      %p28 = por %p26, %p27
      %p29 = scmp.ne.s32.totalorder %s20, %s21
      %p30 = scmp.eq.s32.totalorder %s15, 0
      %p31 = por %p29, %p30
      %p32 = scmp.ne.s32.totalorder %s20, %s21
      %p33 = scmp.eq.s32.totalorder %s16, 3
      %p34 = por %p32, %p33
      %p36 = scmp.ne.s32.totalorder %s21, %s35
      %p37 = scmp.eq.s32.totalorder %s16, 0
      %p38 = por %p36, %p37
      %s39 = ssub.s32 %s10, %s17
      %p40 = scmp.eq.s32.totalorder %s39, 0
      %s42 = sadd.s32 %s41, 1
      %s43 = scalar_select %p40, %s41, %s42
      %p46 = pneg %p40
      %p47 = scmp.eq.s32.totalorder %s10, 3
      %p48 = por %p46, %p47
      %p49 = scmp.ne.s32.totalorder %s41, %s44
      %p50 = scmp.eq.s32.totalorder %s10, 0
      %p51 = por %p49, %p50
      %p52 = scmp.ne.s32.totalorder %s41, %s44
      %p53 = scmp.eq.s32.totalorder %s15, 3
      %p54 = por %p52, %p53
      %p55 = scmp.ne.s32.totalorder %s44, %s45
      %p56 = scmp.eq.s32.totalorder %s15, 0
      %p57 = por %p55, %p56
      %p58 = scmp.ne.s32.totalorder %s44, %s45
      %p59 = scmp.eq.s32.totalorder %s16, 3
      %p60 = por %p58, %p59
      %p62 = scmp.ne.s32.totalorder %s45, %s61
      %p63 = scmp.eq.s32.totalorder %s16, 0
      %p64 = por %p62, %p63
      %s66 = sadd.s32 %s65, 1
      %p69 = scmp.eq.s32.totalorder %s10, 3
      %p70 = scmp.ne.s32.totalorder %s65, %s67
      %p71 = scmp.eq.s32.totalorder %s10, 0
      %p72 = por %p70, %p71
      %p73 = scmp.ne.s32.totalorder %s65, %s67
      %p74 = scmp.eq.s32.totalorder %s15, 3
      %p75 = por %p73, %p74
      %p76 = scmp.ne.s32.totalorder %s67, %s68
      %p77 = scmp.eq.s32.totalorder %s15, 0
      %p78 = por %p76, %p77
      %p79 = scmp.ne.s32.totalorder %s67, %s68
      %p80 = scmp.eq.s32.totalorder %s16, 3
      %p81 = por %p79, %p80
      %p83 = scmp.ne.s32.totalorder %s68, %s82
      %p84 = scmp.eq.s32.totalorder %s16, 0
      %p85 = por %p83, %p84
      %s87 = sadd.s32 %s86, 1
      %p90 = scmp.eq.s32.totalorder %s10, 3
      %p91 = scmp.ne.s32.totalorder %s86, %s88
      %p92 = scmp.eq.s32.totalorder %s10, 0
      %p93 = por %p91, %p92
      %p94 = scmp.ne.s32.totalorder %s86, %s88
      %p95 = scmp.eq.s32.totalorder %s15, 3
      %p96 = por %p94, %p95
      %p97 = scmp.ne.s32.totalorder %s88, %s89
      %p98 = scmp.eq.s32.totalorder %s15, 0
      %p99 = por %p97, %p98
      %p100 = scmp.ne.s32.totalorder %s88, %s89
      %p101 = scmp.eq.s32.totalorder %s16, 3
      %p102 = por %p100, %p101
      %p104 = scmp.ne.s32.totalorder %s89, %s103
      %p105 = scmp.eq.s32.totalorder %s16, 0
      %p106 = por %p104, %p105
      %s107 = ssub.s32 %s10, %s17
      %p108 = scmp.eq.s32.totalorder %s107, 0
      %s110 = sadd.s32 %s109, 1
      %s111 = scalar_select %p108, %s109, %s110
      %p114 = pneg %p108
      %p115 = scmp.eq.s32.totalorder %s10, 3
      %p116 = por %p114, %p115
      %p117 = scmp.ne.s32.totalorder %s109, %s112
      %p118 = scmp.eq.s32.totalorder %s10, 0
      %p119 = por %p117, %p118
      %p120 = scmp.ne.s32.totalorder %s109, %s112
      %p121 = scmp.eq.s32.totalorder %s15, 3
      %p122 = por %p120, %p121
      %p123 = scmp.ne.s32.totalorder %s112, %s113
      %p124 = scmp.eq.s32.totalorder %s15, 0
      %p125 = por %p123, %p124
      %p126 = scmp.ne.s32.totalorder %s112, %s113
      %p127 = scmp.eq.s32.totalorder %s16, 3
      %p128 = por %p126, %p127
      %p130 = scmp.ne.s32.totalorder %s113, %s129
      %p131 = scmp.eq.s32.totalorder %s16, 0
      %p132 = por %p130, %p131
      %p133 = scmp.le.s32.totalorder 1, %s10
      %p134 = scmp.lt.s32.totalorder %s10, 5
      %p135 = pnand %p133, %p134
      %p136 = pneg %p135
      // Predicated region
      $region9: #{yolo3_forward.18} parent=5 // pred_check
        _
      $region10: #{yolo3_forward.18} parent=5 // pred_check_branch
        %138 = sbr.rel (%p135) target = $region12
      $region11: #{yolo3_forward.18} parent=5 // pred_region
        %s139 = ssub.s32 %s10, 1
        // Predicated region
        $region13: #{yolo3_forward.18} parent=11 // pred_check
          %p140 = pneg %p31
        $region14: #{yolo3_forward.18} parent=11 // pred_check_branch
          %142 = sbr.rel (%p140) target = $region16
        $region15: #{yolo3_forward.18} parent=11 // pred_region
          _
        $region16: #{yolo3_forward.18} parent=11 // pred_fallthru
          _
        // Predicated region
        $region17: #{yolo3_forward.18} parent=11 // pred_check
          %p143 = pneg %p78
        $region18: #{yolo3_forward.18} parent=11 // pred_check_branch
          %145 = sbr.rel (%p143) target = $region20
        $region19: #{yolo3_forward.18} parent=11 // pred_region
          _
        $region20: #{yolo3_forward.18} parent=11 // pred_fallthru
          _
        // Predicated region
        $region21: #{yolo3_forward.18} parent=11 // pred_check
          %p146 = pneg %p99
        $region22: #{yolo3_forward.18} parent=11 // pred_check_branch
          %148 = sbr.rel (%p146) target = $region24
        $region23: #{yolo3_forward.18} parent=11 // pred_region
          _
        $region24: #{yolo3_forward.18} parent=11 // pred_fallthru
          _
      $region12: #{yolo3_forward.18} parent=5 // pred_fallthru
        _
      %p149 = scmp.lt.s32.totalorder %s10, 4
      // Predicated region
      $region25: #{yolo3_forward.18} parent=5 // pred_check
        %p150 = pneg %p149
      $region26: #{yolo3_forward.18} parent=5 // pred_check_branch
        %152 = sbr.rel (%p150) target = $region28
      $region27: #{yolo3_forward.18} parent=5 // pred_region
        // Predicated region
        $region29: #{yolo3_forward.18} parent=27 // pred_check
          %p153 = pneg %p51
        $region30: #{yolo3_forward.18} parent=27 // pred_check_branch
          %155 = sbr.rel (%p153) target = $region32
        $region31: #{yolo3_forward.18} parent=27 // pred_region
          %s156 = sand.u32 %s41, 1
          %s157 = sand.u32 %s41, 1
          %s158 = smul.addr %s157, 32
          %s159 = scalar_lea.vmem [#allocation2], %s158
          %s160 = smul.u32 4, %s10
          %s161 = smul.addr %s160, 4
          %s162 = scalar_lea.vmem %s1, %s161
          // Predicated region
          $region33: #{yolo3_forward.18} parent=31 // pred_check
            _
          $region34: #{yolo3_forward.18} parent=31 // pred_check_branch
            %164 = sbr.rel (0) target = $region36
          $region35: #{yolo3_forward.18} parent=31 // pred_region
            // Predicated region
            $region37: #{yolo3_forward.18} parent=35 // pred_check
              _
            $region38: #{yolo3_forward.18} parent=35 // pred_check_branch
              %166 = sbr.rel (0) target = $region40
            $region39: #{yolo3_forward.18} parent=35 // pred_region
              loop: start=0, step=1, limit=1
              $region41: #{yolo3_forward.18} parent=39 // loop_pre_header
                _
              $region42: #{yolo3_forward.18} parent=39 // loop_header
                %s168 = sphi 0, %s172
                %p169 = scmp.ge.s32.totalorder %s168, 1
                %s173 = sphi %s162, %s162
                %s174 = sphi %s159, %s159
              $region43: #{yolo3_forward.18} parent=39 // loop_header_branch
                %171 = sbr.rel (%p169) target = $region47
              $region44: #{yolo3_forward.18} parent=39 // loop_body
                %v175 = vld [vmem:[%s173] sm:$0xff]
                %176 = vst [vmem:[%s174] sm:$0xff] %v175
                %v177 = vld [vmem:[%s173 + $0x8] sm:$0xff]
                %178 = vst [vmem:[%s174 + $0x8] sm:$0xff] %v177
                %v179 = vld [vmem:[%s173 + $0x40] sm:$0xff]
                %180 = vst [vmem:[%s174 + $0x10] sm:$0xff] %v179
                %v181 = vld [vmem:[%s173 + $0x48] sm:$0xff]
                %182 = vst [vmem:[%s174 + $0x18] sm:$0xff] %v181
              $region45: #{yolo3_forward.18} parent=39 // loop_footer
                %s172 = sadd.s32 1, %s168
              $region46: #{yolo3_forward.18} parent=39 // loop_footer_branch
                %167 = sbr.rel target = $region42
              $region47: #{yolo3_forward.18} parent=39 // loop_exit
                _
            $region40: #{yolo3_forward.18} parent=35 // pred_fallthru
              _
            // Predicated region
            $region48: #{yolo3_forward.18} parent=35 // pred_check
              _
            $region49: #{yolo3_forward.18} parent=35 // pred_check_branch
              %184 = sbr.rel target = $region51
            $region50: #{yolo3_forward.18} parent=35 // pred_region
              _
            $region51: #{yolo3_forward.18} parent=35 // pred_fallthru
              _
          $region36: #{yolo3_forward.18} parent=31 // pred_fallthru
            _
          %185 = vnop
        $region32: #{yolo3_forward.18} parent=27 // pred_fallthru
          _
      $region28: #{yolo3_forward.18} parent=5 // pred_fallthru
        _
      %p186 = scmp.le.s32.totalorder 1, %s10
      %p187 = scmp.lt.s32.totalorder %s10, 5
      %p188 = pnand %p186, %p187
      %p189 = pneg %p188
      // Predicated region
      $region52: #{yolo3_forward.18} parent=5 // pred_check
        _
      $region53: #{yolo3_forward.18} parent=5 // pred_check_branch
        %191 = sbr.rel (%p188) target = $region55
      $region54: #{yolo3_forward.18} parent=5 // pred_region
        %s192 = ssub.s32 %s10, 1
        %s193 = sand.u32 %s44, 1
        %s194 = sand.u32 %s44, 1
        %s195 = smul.addr %s194, 32
        %s196 = scalar_lea.vmem [#allocation2], %s195
        // Predicated region
        $region56: #{yolo3_forward.18} parent=54 // pred_check
          %p197 = pneg %p57
        $region57: #{yolo3_forward.18} parent=54 // pred_check_branch
          %199 = sbr.rel (%p197) target = $region59
        $region58: #{yolo3_forward.18} parent=54 // pred_region
          _
        $region59: #{yolo3_forward.18} parent=54 // pred_fallthru
          _
        %p200 = pneg %p31
        %p201 = pneg %p28
        %s202 = sand.u32 %s44, 1
        %s203 = sand.u32 %s44, 1
        %s204 = smul.addr %s203, 32
        %s205 = scalar_lea.vmem [#allocation2], %s204
        %p206 = pneg %p57
        %p207 = pneg %p54
        %p208 = pneg %p78
        %p209 = pneg %p75
        %p210 = pneg %p99
        %p211 = pneg %p96
        %p212 = pneg %p125
        %p213 = pneg %p122
        %s214 = sand.u32 %s112, 1
        %s215 = sand.u32 %s112, 1
        %s216 = smul.addr %s215, 96
        %s217 = scalar_lea.vmem [#allocation3], %s216
        %s218 = smul.u32 4, %s15
        %s219 = smul.u32 4, %s15
        %v221 = vld [vmem:[%s0] sm:$0xf]
        %v222 = vld [vmem:[%s0 + $0x4] sm:$0xf]
        %v223 = vld [vmem:[%s0 + $0x8] sm:$0xf]
        %v224 = vld [vmem:[%s196] sm:$0xff]
        %v225 = vld [vmem:[%s196 + $0x8] sm:$0xff]
        %v226 = vld [vmem:[%s196 + $0x10] sm:$0xff]
        %v227 = vld [vmem:[%s196 + $0x18] sm:$0xff]
        %v231 = vunpack.c.l.b16 %v221
        %v232 = vunpack.c.l.b16 %v222
        %v233 = vunpack.c.l.b16 %v223
        %v234 = vpack.c.b16 %v232, %v231
        %v235 = vpack.c.b16 %v233, %v233
        %v240 = vunpack.c.l.b16 %v224
        %v241 = vunpack.c.h.b16 %v224
        %v242 = vunpack.c.l.b16 %v225
        %v243 = vunpack.c.h.b16 %v225
        %v244 = vunpack.c.l.b16 %v226
        %v245 = vunpack.c.h.b16 %v226
        %v246 = vunpack.c.l.b16 %v227
        %v247 = vunpack.c.h.b16 %v227
        %v248 = vpack.c.b16 %v244, %v240
        %v249 = vpack.c.b16 %v245, %v241
        %v250 = vpack.c.b16 %v246, %v242
        %v251 = vpack.c.b16 %v247, %v243
        %vm256 = vcmask 130048
        %v258 = vsel %vm256, %v234, 0
        %v261 = vsel %vm256, %v235, 0
        %263 = vmatpush.bf16.msra.mxu0 0
        %264 = vmatpush.bf16.msra.mxu0 0
        %265 = vmatpush.bf16.msra.mxu0 0
        %266 = vmatpush.bf16.msra.mxu0 0
        %267 = vmatpush.bf16.msra.mxu0 0
        %268 = vmatpush.bf16.msra.mxu0 0
        %269 = vmatpush.bf16.msra.mxu0 0
        %270 = vmatpush.bf16.msra.mxu0 %v248
        %271 = vmatmul.bf16.gmra.mxu0 %v258
        %v272 = vpop.f32.mrf.mxu0
        %v273 = vadd.f32 0.0, %v272
        %v274 = vpop.f32.mrf.mxu0
        %v275 = vadd.f32 0.0, %v274
        %276 = vmatmul.bf16.gmra.mxu0 %v261
        %v277 = vpop.f32.mrf.mxu0
        %v278 = vadd.f32 0.0, %v277
        %v279 = vpop.f32.mrf.mxu0
        %280 = vdwg.mxu0
        %281 = vmatpush.bf16.msra.mxu0 0
        %282 = vmatpush.bf16.msra.mxu0 0
        %283 = vmatpush.bf16.msra.mxu0 0
        %284 = vmatpush.bf16.msra.mxu0 0
        %285 = vmatpush.bf16.msra.mxu0 0
        %286 = vmatpush.bf16.msra.mxu0 0
        %287 = vmatpush.bf16.msra.mxu0 0
        %288 = vmatpush.bf16.msra.mxu0 %v249
        %289 = vmatmul.bf16.gmra.mxu0 %v258
        %v290 = vpop.f32.mrf.mxu0
        %v291 = vadd.f32 0.0, %v290
        %v292 = vpop.f32.mrf.mxu0
        %v293 = vadd.f32 0.0, %v292
        %294 = vmatmul.bf16.gmra.mxu0 %v261
        %v295 = vpop.f32.mrf.mxu0
        %v296 = vadd.f32 0.0, %v295
        %v297 = vpop.f32.mrf.mxu0
        %298 = vdwg.mxu0
        %299 = vmatpush.bf16.msra.mxu0 0
        %300 = vmatpush.bf16.msra.mxu0 0
        %301 = vmatpush.bf16.msra.mxu0 0
        %302 = vmatpush.bf16.msra.mxu0 0
        %303 = vmatpush.bf16.msra.mxu0 0
        %304 = vmatpush.bf16.msra.mxu0 0
        %305 = vmatpush.bf16.msra.mxu0 0
        %306 = vmatpush.bf16.msra.mxu0 %v250
        %307 = vmatmul.bf16.gmra.mxu0 %v258
        %v308 = vpop.f32.mrf.mxu0
        %v309 = vadd.f32 0.0, %v308
        %v310 = vpop.f32.mrf.mxu0
        %v311 = vadd.f32 0.0, %v310
        %312 = vmatmul.bf16.gmra.mxu0 %v261
        %v313 = vpop.f32.mrf.mxu0
        %v314 = vadd.f32 0.0, %v313
        %v315 = vpop.f32.mrf.mxu0
        %316 = vdwg.mxu0
        %317 = vmatpush.bf16.msra.mxu0 0
        %318 = vmatpush.bf16.msra.mxu0 0
        %319 = vmatpush.bf16.msra.mxu0 0
        %320 = vmatpush.bf16.msra.mxu0 0
        %321 = vmatpush.bf16.msra.mxu0 0
        %322 = vmatpush.bf16.msra.mxu0 0
        %323 = vmatpush.bf16.msra.mxu0 0
        %324 = vmatpush.bf16.msra.mxu0 %v251
        %325 = vmatmul.bf16.gmra.mxu0 %v258
        %v326 = vpop.f32.mrf.mxu0
        %v327 = vadd.f32 0.0, %v326
        %v328 = vpop.f32.mrf.mxu0
        %v329 = vadd.f32 0.0, %v328
        %330 = vmatmul.bf16.gmra.mxu0 %v261
        %v331 = vpop.f32.mrf.mxu0
        %v332 = vadd.f32 0.0, %v331
        %v333 = vpop.f32.mrf.mxu0
        %334 = vdwg.mxu0
        %v335 = vld [vmem:[%s2] sm:$0xff]
        %v336 = vld [vmem:[%s2 + $0x8] sm:$0xff]
        %v337 = vld [vmem:[%s2 + $0x10] sm:$0xff]
        %339 = vset.pattern.permute.xlu0 0
        %340 = vperm.xlu0 %339, %v335
        %v341 = vpop.permute.xlu0 %340
        %344 = vset.pattern.permute.xlu0 0
        %345 = vperm.xlu0 %344, %v336
        %v346 = vpop.permute.xlu0 %345
        %349 = vset.pattern.permute.xlu0 0
        %350 = vperm.xlu0 %349, %v337
        %v351 = vpop.permute.xlu0 %350
        %v353 = vmul.f32 %v273, %v341
        %v354 = vmul.f32 %v291, %v341
        %v355 = vmul.f32 %v309, %v341
        %v356 = vmul.f32 %v327, %v341
        %v357 = vmul.f32 %v275, %v346
        %v358 = vmul.f32 %v293, %v346
        %v359 = vmul.f32 %v311, %v346
        %v360 = vmul.f32 %v329, %v346
        %v361 = vmul.f32 %v278, %v351
        %v362 = vmul.f32 %v296, %v351
        %v363 = vmul.f32 %v314, %v351
        %v364 = vmul.f32 %v332, %v351
        %v365 = vld [vmem:[%s3] sm:$0xff]
        %v366 = vld [vmem:[%s3 + $0x8] sm:$0xff]
        %v367 = vld [vmem:[%s3 + $0x10] sm:$0xff]
        %369 = vset.pattern.permute.xlu0 0
        %370 = vperm.xlu0 %369, %v365
        %v371 = vpop.permute.xlu0 %370
        %374 = vset.pattern.permute.xlu0 0
        %375 = vperm.xlu0 %374, %v366
        %v376 = vpop.permute.xlu0 %375
        %379 = vset.pattern.permute.xlu0 0
        %380 = vperm.xlu0 %379, %v367
        %v381 = vpop.permute.xlu0 %380
        %v383 = vadd.f32 %v353, %v371
        %v384 = vadd.f32 %v354, %v371
        %v385 = vadd.f32 %v355, %v371
        %v386 = vadd.f32 %v356, %v371
        %v387 = vadd.f32 %v357, %v376
        %v388 = vadd.f32 %v358, %v376
        %v389 = vadd.f32 %v359, %v376
        %v390 = vadd.f32 %v360, %v376
        %v391 = vadd.f32 %v361, %v381
        %v392 = vadd.f32 %v362, %v381
        %v393 = vadd.f32 %v363, %v381
        %v394 = vadd.f32 %v364, %v381
        %395 = vst [vmem:[%s217] sm:$0xff] %v383
        %396 = vst [vmem:[%s217 + $0x8] sm:$0xff] %v384
        %397 = vst [vmem:[%s217 + $0x10] sm:$0xff] %v385
        %398 = vst [vmem:[%s217 + $0x18] sm:$0xff] %v386
        %399 = vst [vmem:[%s217 + $0x20] sm:$0xff] %v387
        %400 = vst [vmem:[%s217 + $0x28] sm:$0xff] %v388
        %401 = vst [vmem:[%s217 + $0x30] sm:$0xff] %v389
        %402 = vst [vmem:[%s217 + $0x38] sm:$0xff] %v390
        %403 = vst [vmem:[%s217 + $0x40] sm:$0xff] %v391
        %404 = vst [vmem:[%s217 + $0x48] sm:$0xff] %v392
        %405 = vst [vmem:[%s217 + $0x50] sm:$0xff] %v393
        %406 = vst [vmem:[%s217 + $0x58] sm:$0xff] %v394
        %s407 = sand.u32 %s112, 1
        %s408 = sand.u32 %s112, 1
        %s409 = smul.addr %s408, 96
        %s410 = scalar_lea.vmem [#allocation3], %s409
        // Predicated region
        $region60: #{yolo3_forward.18} parent=54 // pred_check
          %p411 = pneg %p122
        $region61: #{yolo3_forward.18} parent=54 // pred_check_branch
          %413 = sbr.rel (%p411) target = $region63
        $region62: #{yolo3_forward.18} parent=54 // pred_region
          %s414 = smul.u32 4, %s15
          %s415 = smul.addr %s414, 8
          %s416 = scalar_lea.vmem %s4, %s415
          // Predicated region
          $region64: #{yolo3_forward.18} parent=62 // pred_check
            _
          $region65: #{yolo3_forward.18} parent=62 // pred_check_branch
            %418 = sbr.rel (0) target = $region67
          $region66: #{yolo3_forward.18} parent=62 // pred_region
            // Predicated region
            $region68: #{yolo3_forward.18} parent=66 // pred_check
              _
            $region69: #{yolo3_forward.18} parent=66 // pred_check_branch
              %420 = sbr.rel (0) target = $region71
            $region70: #{yolo3_forward.18} parent=66 // pred_region
              loop: start=0, step=1, limit=1
              $region72: #{yolo3_forward.18} parent=70 // loop_pre_header
                _
              $region73: #{yolo3_forward.18} parent=70 // loop_header
                %s422 = sphi 0, %s426
                %p423 = scmp.ge.s32.totalorder %s422, 1
                %s427 = sphi %s410, %s410
                %s428 = sphi %s416, %s416
              $region74: #{yolo3_forward.18} parent=70 // loop_header_branch
                %425 = sbr.rel (%p423) target = $region78
              $region75: #{yolo3_forward.18} parent=70 // loop_body
                %v429 = vld [vmem:[%s427] sm:$0xff]
                %430 = vst [vmem:[%s428] sm:$0xff] %v429
                %v431 = vld [vmem:[%s427 + $0x8] sm:$0xff]
                %432 = vst [vmem:[%s428 + $0x8] sm:$0xff] %v431
                %v433 = vld [vmem:[%s427 + $0x10] sm:$0xff]
                %434 = vst [vmem:[%s428 + $0x10] sm:$0xff] %v433
                %v435 = vld [vmem:[%s427 + $0x18] sm:$0xff]
                %436 = vst [vmem:[%s428 + $0x18] sm:$0xff] %v435
                %v437 = vld [vmem:[%s427 + $0x20] sm:$0xff]
                %438 = vst [vmem:[%s428 + $0x80] sm:$0xff] %v437
                %v439 = vld [vmem:[%s427 + $0x28] sm:$0xff]
                %440 = vst [vmem:[%s428 + $0x88] sm:$0xff] %v439
                %v441 = vld [vmem:[%s427 + $0x30] sm:$0xff]
                %442 = vst [vmem:[%s428 + $0x90] sm:$0xff] %v441
                %v443 = vld [vmem:[%s427 + $0x38] sm:$0xff]
                %444 = vst [vmem:[%s428 + $0x98] sm:$0xff] %v443
                %v445 = vld [vmem:[%s427 + $0x40] sm:$0xff]
                %446 = vst [vmem:[%s428 + $0x100] sm:$0xff] %v445
                %v447 = vld [vmem:[%s427 + $0x48] sm:$0xff]
                %448 = vst [vmem:[%s428 + $0x108] sm:$0xff] %v447
                %v449 = vld [vmem:[%s427 + $0x50] sm:$0xff]
                %450 = vst [vmem:[%s428 + $0x110] sm:$0xff] %v449
                %v451 = vld [vmem:[%s427 + $0x58] sm:$0xff]
                %452 = vst [vmem:[%s428 + $0x118] sm:$0xff] %v451
              $region76: #{yolo3_forward.18} parent=70 // loop_footer
                %s426 = sadd.s32 1, %s422
              $region77: #{yolo3_forward.18} parent=70 // loop_footer_branch
                %421 = sbr.rel target = $region73
              $region78: #{yolo3_forward.18} parent=70 // loop_exit
                _
            $region71: #{yolo3_forward.18} parent=66 // pred_fallthru
              _
            // Predicated region
            $region79: #{yolo3_forward.18} parent=66 // pred_check
              _
            $region80: #{yolo3_forward.18} parent=66 // pred_check_branch
              %454 = sbr.rel target = $region82
            $region81: #{yolo3_forward.18} parent=66 // pred_region
              _
            $region82: #{yolo3_forward.18} parent=66 // pred_fallthru
              _
          $region67: #{yolo3_forward.18} parent=62 // pred_fallthru
            _
          %455 = vnop
        $region63: #{yolo3_forward.18} parent=54 // pred_fallthru
          _
      $region55: #{yolo3_forward.18} parent=5 // pred_fallthru
        _
      %p456 = scmp.le.s32.totalorder 2, %s10
      // Predicated region
      $region83: #{yolo3_forward.18} parent=5 // pred_check
        %p457 = pneg %p456
      $region84: #{yolo3_forward.18} parent=5 // pred_check_branch
        %459 = sbr.rel (%p457) target = $region86
      $region85: #{yolo3_forward.18} parent=5 // pred_region
        %s460 = ssub.s32 %s10, 2
        // Predicated region
        $region87: #{yolo3_forward.18} parent=85 // pred_check
          %p461 = pneg %p128
        $region88: #{yolo3_forward.18} parent=85 // pred_check_branch
          %463 = sbr.rel (%p461) target = $region90
        $region89: #{yolo3_forward.18} parent=85 // pred_region
          %s464 = sand.u32 %s113, 1
          %s465 = sand.u32 %s113, 1
          %s466 = smul.addr %s465, 96
          %s467 = scalar_lea.vmem [#allocation3], %s466
        $region90: #{yolo3_forward.18} parent=85 // pred_fallthru
          _
      $region86: #{yolo3_forward.18} parent=5 // pred_fallthru
        _
    $region6: #{yolo3_forward.18} parent=1 // loop_footer
      %s14 = sadd.s32 1, %s10
    $region7: #{yolo3_forward.18} parent=1 // loop_footer_branch
      %9 = sbr.rel target = $region3
    $region8: #{yolo3_forward.18} parent=1 // loop_exit
      _

// kernel: yolo3_forward.13
$region0: #{yolo3_forward.13}
  #allocation0 [shape = 'u32[]', space=smem, size = 0x4, offset = 0x4, fixed_abs, tag = 'smem constant byte address 0x4 - core index']
  #allocation1 [shape = 'u32[72,128]{1,0:T(1,128)}', space=vmem, size = 0x9000, scoped, tag = 'internal scratch']
  %s0 = inlined_call_operand.vmem [shape: bf16[16,72], index: 0, kind: input, shape index: {}]
  %s1 = inlined_call_operand.vmem [shape: bf16[72,512], index: 1, kind: input, shape index: {}]
  %s2 = inlined_call_operand.vmem [shape: f32[16,1], index: 2, kind: input, shape index: {}]
  %s3 = inlined_call_operand.vmem [shape: f32[16,1], index: 3, kind: input, shape index: {}]
  %s4 = inlined_call_operand.vmem [shape: f32[16,512], index: 4, kind: input, shape index: {}]
  %s5 = inlined_call_operand.vmem [shape: f32[16,512], index: 5, kind: output, shape index: {}]
  %s6 = sld [smem:[#allocation0]]
  $region30: #{yolo3_forward.13} parent=0
    _
  %s8 = ssub.s32 1, %s6
  %s9 = scalar_select 0, %s8, %s6
  // Predicated region
  $region2: #{yolo3_forward.13} parent=0 // pred_check
    _
  $region3: #{yolo3_forward.13} parent=0 // pred_check_branch
    %11 = sbr.rel (0) target = $region5
  $region4: #{yolo3_forward.13} parent=0 // pred_region
    _
  $region5: #{yolo3_forward.13} parent=0 // pred_fallthru
    _
  // Predicated region
  $region6: #{yolo3_forward.13} parent=0 // pred_check
    _
  $region7: #{yolo3_forward.13} parent=0 // pred_check_branch
    %13 = sbr.rel (0) target = $region9
  $region8: #{yolo3_forward.13} parent=0 // pred_region
    _
  $region9: #{yolo3_forward.13} parent=0 // pred_fallthru
    _
  // Predicated region
  $region10: #{yolo3_forward.13} parent=0 // pred_check
    _
  $region11: #{yolo3_forward.13} parent=0 // pred_check_branch
    %15 = sbr.rel (0) target = $region13
  $region12: #{yolo3_forward.13} parent=0 // pred_region
    _
  $region13: #{yolo3_forward.13} parent=0 // pred_fallthru
    _
  // Predicated region
  $region14: #{yolo3_forward.13} parent=0 // pred_check
    _
  $region15: #{yolo3_forward.13} parent=0 // pred_check_branch
    %17 = sbr.rel (0) target = $region17
  $region16: #{yolo3_forward.13} parent=0 // pred_region
    _
  $region17: #{yolo3_forward.13} parent=0 // pred_fallthru
    _
  // Predicated region
  $region18: #{yolo3_forward.13} parent=0 // pred_check
    _
  $region19: #{yolo3_forward.13} parent=0 // pred_check_branch
    %19 = sbr.rel (0) target = $region21
  $region20: #{yolo3_forward.13} parent=0 // pred_region
    _
  $region21: #{yolo3_forward.13} parent=0 // pred_fallthru
    _
  %v21 = vld [vmem:[%s0] sm:$0xf]
  %v22 = vld [vmem:[%s0 + $0x4] sm:$0xf]
  %v23 = vld [vmem:[%s1] sm:$0xff]
  %v24 = vld [vmem:[%s1 + $0x8] sm:$0xff]
  %v25 = vld [vmem:[%s1 + $0x10] sm:$0xff]
  %v26 = vld [vmem:[%s1 + $0x18] sm:$0xff]
  %v27 = vld [vmem:[%s1 + $0x20] sm:$0xff]
  %v28 = vld [vmem:[%s1 + $0x28] sm:$0xff]
  %v29 = vld [vmem:[%s1 + $0x30] sm:$0xff]
  %v30 = vld [vmem:[%s1 + $0x38] sm:$0xff]
  %v31 = vld [vmem:[%s1 + $0x40] sm:$0xff]
  %v32 = vld [vmem:[%s1 + $0x48] sm:$0xff]
  %v33 = vld [vmem:[%s1 + $0x50] sm:$0xff]
  %v34 = vld [vmem:[%s1 + $0x58] sm:$0xff]
  %v35 = vld [vmem:[%s1 + $0x60] sm:$0xff]
  %v36 = vld [vmem:[%s1 + $0x68] sm:$0xff]
  %v37 = vld [vmem:[%s1 + $0x70] sm:$0xff]
  %v38 = vld [vmem:[%s1 + $0x78] sm:$0xff]
  %v39 = vld [vmem:[%s1 + $0x80] sm:$0xff]
  %v40 = vld [vmem:[%s1 + $0x88] sm:$0xff]
  %v43 = vunpack.c.l.b16 %v21
  %v44 = vunpack.c.l.b16 %v22
  %v45 = vpack.c.b16 %v44, %v43
  %v64 = vunpack.c.l.b16 %v23
  %v65 = vunpack.c.h.b16 %v23
  %v66 = vunpack.c.l.b16 %v24
  %v67 = vunpack.c.h.b16 %v24
  %v68 = vunpack.c.l.b16 %v25
  %v69 = vunpack.c.h.b16 %v25
  %v70 = vunpack.c.l.b16 %v26
  %v71 = vunpack.c.h.b16 %v26
  %v72 = vunpack.c.l.b16 %v27
  %v73 = vunpack.c.h.b16 %v27
  %v74 = vunpack.c.l.b16 %v28
  %v75 = vunpack.c.h.b16 %v28
  %v76 = vunpack.c.l.b16 %v29
  %v77 = vunpack.c.h.b16 %v29
  %v78 = vunpack.c.l.b16 %v30
  %v79 = vunpack.c.h.b16 %v30
  %v80 = vunpack.c.l.b16 %v31
  %v81 = vunpack.c.h.b16 %v31
  %v82 = vunpack.c.l.b16 %v32
  %v83 = vunpack.c.h.b16 %v32
  %v84 = vunpack.c.l.b16 %v33
  %v85 = vunpack.c.h.b16 %v33
  %v86 = vunpack.c.l.b16 %v34
  %v87 = vunpack.c.h.b16 %v34
  %v88 = vunpack.c.l.b16 %v35
  %v89 = vunpack.c.h.b16 %v35
  %v90 = vunpack.c.l.b16 %v36
  %v91 = vunpack.c.h.b16 %v36
  %v92 = vunpack.c.l.b16 %v37
  %v93 = vunpack.c.h.b16 %v37
  %v94 = vunpack.c.l.b16 %v38
  %v95 = vunpack.c.h.b16 %v38
  %v96 = vunpack.c.l.b16 %v39
  %v97 = vunpack.c.h.b16 %v39
  %v98 = vunpack.c.l.b16 %v40
  %v99 = vunpack.c.h.b16 %v40
  %v100 = vpack.c.b16 %v68, %v64
  %v101 = vpack.c.b16 %v69, %v65
  %v102 = vpack.c.b16 %v70, %v66
  %v103 = vpack.c.b16 %v71, %v67
  %v104 = vpack.c.b16 %v76, %v72
  %v105 = vpack.c.b16 %v77, %v73
  %v106 = vpack.c.b16 %v78, %v74
  %v107 = vpack.c.b16 %v79, %v75
  %v108 = vpack.c.b16 %v84, %v80
  %v109 = vpack.c.b16 %v85, %v81
  %v110 = vpack.c.b16 %v86, %v82
  %v111 = vpack.c.b16 %v87, %v83
  %v112 = vpack.c.b16 %v92, %v88
  %v113 = vpack.c.b16 %v93, %v89
  %v114 = vpack.c.b16 %v94, %v90
  %v115 = vpack.c.b16 %v95, %v91
  %v116 = vpack.c.b16 %v96, %v96
  %v117 = vpack.c.b16 %v97, %v97
  %v118 = vpack.c.b16 %v98, %v98
  %v119 = vpack.c.b16 %v99, %v99
  %vm136 = vcmask 588800
  %v138 = vsel %vm136, %v45, 0
  %vm140 = vcmask 1043456
  %v142 = vsel %vm140, %v116, 0
  %v145 = vsel %vm140, %v117, 0
  %v148 = vsel %vm140, %v118, 0
  %v151 = vsel %vm140, %v119, 0
  %153 = vmatpush.bf16.msra.mxu0 0
  %154 = vmatpush.bf16.msra.mxu0 0
  %155 = vmatpush.bf16.msra.mxu0 0
  %156 = vmatpush.bf16.msra.mxu0 %v142
  %157 = vmatpush.bf16.msra.mxu0 %v112
  %158 = vmatpush.bf16.msra.mxu0 %v108
  %159 = vmatpush.bf16.msra.mxu0 %v104
  %160 = vmatpush.bf16.msra.mxu0 %v100
  %161 = vmatmul.bf16.gmra.mxu0 %v138
  %v162 = vpop.f32.mrf.mxu0
  %v163 = vadd.f32 0.0, %v162
  %v164 = vpop.f32.mrf.mxu0
  %v165 = vadd.f32 0.0, %v164
  %166 = vdwg.mxu0
  %167 = vmatpush.bf16.msra.mxu0 0
  %168 = vmatpush.bf16.msra.mxu0 0
  %169 = vmatpush.bf16.msra.mxu0 0
  %170 = vmatpush.bf16.msra.mxu0 %v145
  %171 = vmatpush.bf16.msra.mxu0 %v113
  %172 = vmatpush.bf16.msra.mxu0 %v109
  %173 = vmatpush.bf16.msra.mxu0 %v105
  %174 = vmatpush.bf16.msra.mxu0 %v101
  %175 = vmatmul.bf16.gmra.mxu0 %v138
  %v176 = vpop.f32.mrf.mxu0
  %v177 = vadd.f32 0.0, %v176
  %v178 = vpop.f32.mrf.mxu0
  %v179 = vadd.f32 0.0, %v178
  %180 = vdwg.mxu0
  %181 = vmatpush.bf16.msra.mxu0 0
  %182 = vmatpush.bf16.msra.mxu0 0
  %183 = vmatpush.bf16.msra.mxu0 0
  %184 = vmatpush.bf16.msra.mxu0 %v148
  %185 = vmatpush.bf16.msra.mxu0 %v114
  %186 = vmatpush.bf16.msra.mxu0 %v110
  %187 = vmatpush.bf16.msra.mxu0 %v106
  %188 = vmatpush.bf16.msra.mxu0 %v102
  %189 = vmatmul.bf16.gmra.mxu0 %v138
  %v190 = vpop.f32.mrf.mxu0
  %v191 = vadd.f32 0.0, %v190
  %v192 = vpop.f32.mrf.mxu0
  %v193 = vadd.f32 0.0, %v192
  %194 = vdwg.mxu0
  %195 = vmatpush.bf16.msra.mxu0 0
  %196 = vmatpush.bf16.msra.mxu0 0
  %197 = vmatpush.bf16.msra.mxu0 0
  %198 = vmatpush.bf16.msra.mxu0 %v151
  %199 = vmatpush.bf16.msra.mxu0 %v115
  %200 = vmatpush.bf16.msra.mxu0 %v111
  %201 = vmatpush.bf16.msra.mxu0 %v107
  %202 = vmatpush.bf16.msra.mxu0 %v103
  %203 = vmatmul.bf16.gmra.mxu0 %v138
  %v204 = vpop.f32.mrf.mxu0
  %v205 = vadd.f32 0.0, %v204
  %v206 = vpop.f32.mrf.mxu0
  %v207 = vadd.f32 0.0, %v206
  %208 = vdwg.mxu0
  %v209 = vld [vmem:[%s2] sm:$0xff]
  %v210 = vld [vmem:[%s2 + $0x8] sm:$0xff]
  %212 = vset.pattern.permute.xlu0 0
  %213 = vperm.xlu0 %212, %v209
  %v214 = vpop.permute.xlu0 %213
  %217 = vset.pattern.permute.xlu0 0
  %218 = vperm.xlu0 %217, %v210
  %v219 = vpop.permute.xlu0 %218
  %v221 = vmul.f32 %v163, %v214
  %v222 = vmul.f32 %v177, %v214
  %v223 = vmul.f32 %v191, %v214
  %v224 = vmul.f32 %v205, %v214
  %v225 = vmul.f32 %v165, %v219
  %v226 = vmul.f32 %v179, %v219
  %v227 = vmul.f32 %v193, %v219
  %v228 = vmul.f32 %v207, %v219
  %v229 = vld [vmem:[%s3] sm:$0xff]
  %v230 = vld [vmem:[%s3 + $0x8] sm:$0xff]
  %232 = vset.pattern.permute.xlu0 0
  %233 = vperm.xlu0 %232, %v229
  %v234 = vpop.permute.xlu0 %233
  %237 = vset.pattern.permute.xlu0 0
  %238 = vperm.xlu0 %237, %v230
  %v239 = vpop.permute.xlu0 %238
  %v241 = vadd.f32 %v221, %v234
  %v242 = vadd.f32 %v222, %v234
  %v243 = vadd.f32 %v223, %v234
  %v244 = vadd.f32 %v224, %v234
  %v245 = vadd.f32 %v225, %v239
  %v246 = vadd.f32 %v226, %v239
  %v247 = vadd.f32 %v227, %v239
  %v248 = vadd.f32 %v228, %v239
  %vm249 = vcmp.ge.f32.partialorder %v241, 0.0
  %vm250 = vcmp.ge.f32.partialorder %v242, 0.0
  %vm251 = vcmp.ge.f32.partialorder %v243, 0.0
  %vm252 = vcmp.ge.f32.partialorder %v244, 0.0
  %vm253 = vcmp.ge.f32.partialorder %v245, 0.0
  %vm254 = vcmp.ge.f32.partialorder %v246, 0.0
  %vm255 = vcmp.ge.f32.partialorder %v247, 0.0
  %vm256 = vcmp.ge.f32.partialorder %v248, 0.0
  %v257 = vmul.f32 %v241, 0.1
  %v258 = vmul.f32 %v242, 0.1
  %v259 = vmul.f32 %v243, 0.1
  %v260 = vmul.f32 %v244, 0.1
  %v261 = vmul.f32 %v245, 0.1
  %v262 = vmul.f32 %v246, 0.1
  %v263 = vmul.f32 %v247, 0.1
  %v264 = vmul.f32 %v248, 0.1
  %v265 = vsel %vm249, %v241, %v257
  %v266 = vsel %vm250, %v242, %v258
  %v267 = vsel %vm251, %v243, %v259
  %v268 = vsel %vm252, %v244, %v260
  %v269 = vsel %vm253, %v245, %v261
  %v270 = vsel %vm254, %v246, %v262
  %v271 = vsel %vm255, %v247, %v263
  %v272 = vsel %vm256, %v248, %v264
  %v273 = vld [vmem:[%s4] sm:$0xff]
  %v274 = vld [vmem:[%s4 + $0x8] sm:$0xff]
  %v275 = vld [vmem:[%s4 + $0x10] sm:$0xff]
  %v276 = vld [vmem:[%s4 + $0x18] sm:$0xff]
  %v277 = vld [vmem:[%s4 + $0x20] sm:$0xff]
  %v278 = vld [vmem:[%s4 + $0x28] sm:$0xff]
  %v279 = vld [vmem:[%s4 + $0x30] sm:$0xff]
  %v280 = vld [vmem:[%s4 + $0x38] sm:$0xff]
  %v281 = vadd.f32 %v265, %v273
  %v282 = vadd.f32 %v266, %v274
  %v283 = vadd.f32 %v267, %v275
  %v284 = vadd.f32 %v268, %v276
  %v285 = vadd.f32 %v269, %v277
  %v286 = vadd.f32 %v270, %v278
  %v287 = vadd.f32 %v271, %v279
  %v288 = vadd.f32 %v272, %v280
  %289 = vst [vmem:[%s5] sm:$0xff] %v281
  %290 = vst [vmem:[%s5 + $0x8] sm:$0xff] %v282
  %291 = vst [vmem:[%s5 + $0x10] sm:$0xff] %v283
  %292 = vst [vmem:[%s5 + $0x18] sm:$0xff] %v284
  %293 = vst [vmem:[%s5 + $0x20] sm:$0xff] %v285
  %294 = vst [vmem:[%s5 + $0x28] sm:$0xff] %v286
  %295 = vst [vmem:[%s5 + $0x30] sm:$0xff] %v287
  %296 = vst [vmem:[%s5 + $0x38] sm:$0xff] %v288
  // Predicated region
  $region22: #{yolo3_forward.13} parent=0 // pred_check
    _
  $region23: #{yolo3_forward.13} parent=0 // pred_check_branch
    %298 = sbr.rel (0) target = $region25
  $region24: #{yolo3_forward.13} parent=0 // pred_region
    _
  $region25: #{yolo3_forward.13} parent=0 // pred_fallthru
    _
  // Predicated region
  $region26: #{yolo3_forward.13} parent=0 // pred_check
    _
  $region27: #{yolo3_forward.13} parent=0 // pred_check_branch
    %300 = sbr.rel (0) target = $region29
  $region28: #{yolo3_forward.13} parent=0 // pred_region
    _
  $region29: #{yolo3_forward.13} parent=0 // pred_fallthru
    _

// kernel: yolo3_forward.17
$region0: #{yolo3_forward.17}
  #allocation0 [shape = 'u32[]', space=smem, size = 0x4, offset = 0x4, fixed_abs, tag = 'smem constant byte address 0x4 - core index']
  #allocation1 [shape = 'u32[72,128]{1,0:T(1,128)}', space=vmem, size = 0x9000, scoped, tag = 'internal scratch']
  %s0 = inlined_call_operand.vmem [shape: bf16[8,512], index: 0, kind: input, shape index: {}]
  %s1 = inlined_call_operand.vmem [shape: bf16[512,2048], index: 1, kind: input, shape index: {}]
  %s2 = inlined_call_operand.vmem [shape: f32[8,2048], index: 2, kind: output, shape index: {}]
  %s3 = sld [smem:[#allocation0]]
  $region64: #{yolo3_forward.17} parent=0
    _
  %s5 = ssub.s32 1, %s3
  %s6 = scalar_select 0, %s5, %s3
  $region1: #{yolo3_forward.17} parent=0
    #allocation2 [shape = 'u8[1048576]{0}', space=vmem, size = 0x100000, scoped, tag = 'input window, operand 1']
    loop: start=0, step=1, limit=6
    $region2: #{yolo3_forward.17} parent=1 // loop_pre_header
      _
    $region3: #{yolo3_forward.17} parent=1 // loop_header
      %s8 = sphi 0, %s12
      %p9 = scmp.ge.s32.totalorder %s8, 6
      %s16 = sphi 0, %s16
      %s18 = sphi 0, %s16
      %s19 = sphi 0, %s18
      %s33 = sphi 0, %s19
      %s39 = sphi 0, %s41
      %s42 = sphi 0, %s39
      %s43 = sphi 0, %s42
      %s59 = sphi 0, %s43
      %s65 = sphi 0, %s67
      %s68 = sphi 0, %s65
      %s69 = sphi 0, %s68
      %s85 = sphi 0, %s69
    $region4: #{yolo3_forward.17} parent=1 // loop_header_branch
      %11 = sbr.rel (%p9) target = $region8
    $region5: #{yolo3_forward.17} parent=1 // loop_body
      %s13 = ssub.s32 %s8, 1
      %s14 = ssub.s32 %s8, 2
      %s15 = sadd.s32 %s8, 1
      %s17 = sadd.s32 %s16, 1
      %p20 = scmp.eq.s32.totalorder %s8, 3
      %p21 = scmp.ne.s32.totalorder %s16, %s18
      %p22 = scmp.eq.s32.totalorder %s8, 0
      %p23 = por %p21, %p22
      %p24 = scmp.ne.s32.totalorder %s16, %s18
      %p25 = scmp.eq.s32.totalorder %s13, 3
      %p26 = por %p24, %p25
      %p27 = scmp.ne.s32.totalorder %s18, %s19
      %p28 = scmp.eq.s32.totalorder %s13, 0
      %p29 = por %p27, %p28
      %p30 = scmp.ne.s32.totalorder %s18, %s19
      %p31 = scmp.eq.s32.totalorder %s14, 3
      %p32 = por %p30, %p31
      %p34 = scmp.ne.s32.totalorder %s19, %s33
      %p35 = scmp.eq.s32.totalorder %s14, 0
      %p36 = por %p34, %p35
      %s37 = ssub.s32 %s8, %s15
      %p38 = scmp.eq.s32.totalorder %s37, 0
      %s40 = sadd.s32 %s39, 1
      %s41 = scalar_select %p38, %s39, %s40
      %p44 = pneg %p38
      %p45 = scmp.eq.s32.totalorder %s8, 3
      %p46 = por %p44, %p45
      %p47 = scmp.ne.s32.totalorder %s39, %s42
      %p48 = scmp.eq.s32.totalorder %s8, 0
      %p49 = por %p47, %p48
      %p50 = scmp.ne.s32.totalorder %s39, %s42
      %p51 = scmp.eq.s32.totalorder %s13, 3
      %p52 = por %p50, %p51
      %p53 = scmp.ne.s32.totalorder %s42, %s43
      %p54 = scmp.eq.s32.totalorder %s13, 0
      %p55 = por %p53, %p54
      %p56 = scmp.ne.s32.totalorder %s42, %s43
      %p57 = scmp.eq.s32.totalorder %s14, 3
      %p58 = por %p56, %p57
      %p60 = scmp.ne.s32.totalorder %s43, %s59
      %p61 = scmp.eq.s32.totalorder %s14, 0
      %p62 = por %p60, %p61
      %s63 = ssub.s32 %s8, %s15
      %p64 = scmp.eq.s32.totalorder %s63, 0
      %s66 = sadd.s32 %s65, 1
      %s67 = scalar_select %p64, %s65, %s66
      %p70 = pneg %p64
      %p71 = scmp.eq.s32.totalorder %s8, 3
      %p72 = por %p70, %p71
      %p73 = scmp.ne.s32.totalorder %s65, %s68
      %p74 = scmp.eq.s32.totalorder %s8, 0
      %p75 = por %p73, %p74
      %p76 = scmp.ne.s32.totalorder %s65, %s68
      %p77 = scmp.eq.s32.totalorder %s13, 3
      %p78 = por %p76, %p77
      %p79 = scmp.ne.s32.totalorder %s68, %s69
      %p80 = scmp.eq.s32.totalorder %s13, 0
      %p81 = por %p79, %p80
      %p82 = scmp.ne.s32.totalorder %s68, %s69
      %p83 = scmp.eq.s32.totalorder %s14, 3
      %p84 = por %p82, %p83
      %p86 = scmp.ne.s32.totalorder %s69, %s85
      %p87 = scmp.eq.s32.totalorder %s14, 0
      %p88 = por %p86, %p87
      %p89 = scmp.le.s32.totalorder 1, %s8
      %p90 = scmp.lt.s32.totalorder %s8, 5
      %p91 = pnand %p89, %p90
      %p92 = pneg %p91
      // Predicated region
      $region9: #{yolo3_forward.17} parent=5 // pred_check
        _
      $region10: #{yolo3_forward.17} parent=5 // pred_check_branch
        %94 = sbr.rel (%p91) target = $region12
      $region11: #{yolo3_forward.17} parent=5 // pred_region
        %s95 = ssub.s32 %s8, 1
        // Predicated region
        $region13: #{yolo3_forward.17} parent=11 // pred_check
          %p96 = pneg %p29
        $region14: #{yolo3_forward.17} parent=11 // pred_check_branch
          %98 = sbr.rel (%p96) target = $region16
        $region15: #{yolo3_forward.17} parent=11 // pred_region
          _
        $region16: #{yolo3_forward.17} parent=11 // pred_fallthru
          _
      $region12: #{yolo3_forward.17} parent=5 // pred_fallthru
        _
      %p99 = scmp.lt.s32.totalorder %s8, 4
      // Predicated region
      $region17: #{yolo3_forward.17} parent=5 // pred_check
        %p100 = pneg %p99
      $region18: #{yolo3_forward.17} parent=5 // pred_check_branch
        %102 = sbr.rel (%p100) target = $region20
      $region19: #{yolo3_forward.17} parent=5 // pred_region
        // Predicated region
        $region21: #{yolo3_forward.17} parent=19 // pred_check
          %p103 = pneg %p49
        $region22: #{yolo3_forward.17} parent=19 // pred_check_branch
          %105 = sbr.rel (%p103) target = $region24
        $region23: #{yolo3_forward.17} parent=19 // pred_region
          %s106 = sand.u32 %s39, 1
          %s107 = sand.u32 %s39, 1
          %s108 = smul.addr %s107, 1024
          %s109 = scalar_lea.vmem [#allocation2], %s108
          %s110 = smul.u32 4, %s8
          %s111 = smul.addr %s110, 4
          %s112 = scalar_lea.vmem %s1, %s111
          // Predicated region
          $region25: #{yolo3_forward.17} parent=23 // pred_check
            _
          $region26: #{yolo3_forward.17} parent=23 // pred_check_branch
            %114 = sbr.rel (0) target = $region28
          $region27: #{yolo3_forward.17} parent=23 // pred_region
            // Predicated region
            $region29: #{yolo3_forward.17} parent=27 // pred_check
              _
            $region30: #{yolo3_forward.17} parent=27 // pred_check_branch
              %116 = sbr.rel (0) target = $region32
            $region31: #{yolo3_forward.17} parent=27 // pred_region
              loop: start=0, step=1, limit=1
              $region33: #{yolo3_forward.17} parent=31 // loop_pre_header
                _
              $region34: #{yolo3_forward.17} parent=31 // loop_header
                %s118 = sphi 0, %s122
                %p119 = scmp.ge.s32.totalorder %s118, 1
                %s123 = sphi %s112, %s112
                %s124 = sphi %s109, %s109
              $region35: #{yolo3_forward.17} parent=31 // loop_header_branch
                %121 = sbr.rel (%p119) target = $region39
              $region36: #{yolo3_forward.17} parent=31 // loop_body
                %v125 = vld [vmem:[%s123] sm:$0xff]
                %126 = vst [vmem:[%s124] sm:$0xff] %v125
                %v127 = vld [vmem:[%s123 + $0x8] sm:$0xff]
                %128 = vst [vmem:[%s124 + $0x8] sm:$0xff] %v127
                %v129 = vld [vmem:[%s123 + $0x40] sm:$0xff]
                %130 = vst [vmem:[%s124 + $0x10] sm:$0xff] %v129
                %v131 = vld [vmem:[%s123 + $0x48] sm:$0xff]
                %132 = vst [vmem:[%s124 + $0x18] sm:$0xff] %v131
                %v133 = vld [vmem:[%s123 + $0x80] sm:$0xff]
                %134 = vst [vmem:[%s124 + $0x20] sm:$0xff] %v133
                %v135 = vld [vmem:[%s123 + $0x88] sm:$0xff]
                %136 = vst [vmem:[%s124 + $0x28] sm:$0xff] %v135
                %v137 = vld [vmem:[%s123 + $0xc0] sm:$0xff]
                %138 = vst [vmem:[%s124 + $0x30] sm:$0xff] %v137
                %v139 = vld [vmem:[%s123 + $0xc8] sm:$0xff]
                %140 = vst [vmem:[%s124 + $0x38] sm:$0xff] %v139
                %v141 = vld [vmem:[%s123 + $0x100] sm:$0xff]
                %142 = vst [vmem:[%s124 + $0x40] sm:$0xff] %v141
                %v143 = vld [vmem:[%s123 + $0x108] sm:$0xff]
                %144 = vst [vmem:[%s124 + $0x48] sm:$0xff] %v143
                %v145 = vld [vmem:[%s123 + $0x140] sm:$0xff]
                %146 = vst [vmem:[%s124 + $0x50] sm:$0xff] %v145
                %v147 = vld [vmem:[%s123 + $0x148] sm:$0xff]
                %148 = vst [vmem:[%s124 + $0x58] sm:$0xff] %v147
                %v149 = vld [vmem:[%s123 + $0x180] sm:$0xff]
                %150 = vst [vmem:[%s124 + $0x60] sm:$0xff] %v149
                %v151 = vld [vmem:[%s123 + $0x188] sm:$0xff]
                %152 = vst [vmem:[%s124 + $0x68] sm:$0xff] %v151
                %v153 = vld [vmem:[%s123 + $0x1c0] sm:$0xff]
                %154 = vst [vmem:[%s124 + $0x70] sm:$0xff] %v153
                %v155 = vld [vmem:[%s123 + $0x1c8] sm:$0xff]
                %156 = vst [vmem:[%s124 + $0x78] sm:$0xff] %v155
                %v157 = vld [vmem:[%s123 + $0x200] sm:$0xff]
                %158 = vst [vmem:[%s124 + $0x80] sm:$0xff] %v157
                %v159 = vld [vmem:[%s123 + $0x208] sm:$0xff]
                %160 = vst [vmem:[%s124 + $0x88] sm:$0xff] %v159
                %v161 = vld [vmem:[%s123 + $0x240] sm:$0xff]
                %162 = vst [vmem:[%s124 + $0x90] sm:$0xff] %v161
                %v163 = vld [vmem:[%s123 + $0x248] sm:$0xff]
                %164 = vst [vmem:[%s124 + $0x98] sm:$0xff] %v163
                %v165 = vld [vmem:[%s123 + $0x280] sm:$0xff]
                %166 = vst [vmem:[%s124 + $0xa0] sm:$0xff] %v165
                %v167 = vld [vmem:[%s123 + $0x288] sm:$0xff]
                %168 = vst [vmem:[%s124 + $0xa8] sm:$0xff] %v167
                %v169 = vld [vmem:[%s123 + $0x2c0] sm:$0xff]
                %170 = vst [vmem:[%s124 + $0xb0] sm:$0xff] %v169
                %v171 = vld [vmem:[%s123 + $0x2c8] sm:$0xff]
                %172 = vst [vmem:[%s124 + $0xb8] sm:$0xff] %v171
                %v173 = vld [vmem:[%s123 + $0x300] sm:$0xff]
                %174 = vst [vmem:[%s124 + $0xc0] sm:$0xff] %v173
                %v175 = vld [vmem:[%s123 + $0x308] sm:$0xff]
                %176 = vst [vmem:[%s124 + $0xc8] sm:$0xff] %v175
                %v177 = vld [vmem:[%s123 + $0x340] sm:$0xff]
                %178 = vst [vmem:[%s124 + $0xd0] sm:$0xff] %v177
                %v179 = vld [vmem:[%s123 + $0x348] sm:$0xff]
                %180 = vst [vmem:[%s124 + $0xd8] sm:$0xff] %v179
                %v181 = vld [vmem:[%s123 + $0x380] sm:$0xff]
                %182 = vst [vmem:[%s124 + $0xe0] sm:$0xff] %v181
                %v183 = vld [vmem:[%s123 + $0x388] sm:$0xff]
                %184 = vst [vmem:[%s124 + $0xe8] sm:$0xff] %v183
                %v185 = vld [vmem:[%s123 + $0x3c0] sm:$0xff]
                %186 = vst [vmem:[%s124 + $0xf0] sm:$0xff] %v185
                %v187 = vld [vmem:[%s123 + $0x3c8] sm:$0xff]
                %188 = vst [vmem:[%s124 + $0xf8] sm:$0xff] %v187
                %v189 = vld [vmem:[%s123 + $0x400] sm:$0xff]
                %190 = vst [vmem:[%s124 + $0x100] sm:$0xff] %v189
                %v191 = vld [vmem:[%s123 + $0x408] sm:$0xff]
                %192 = vst [vmem:[%s124 + $0x108] sm:$0xff] %v191
                %v193 = vld [vmem:[%s123 + $0x440] sm:$0xff]
                %194 = vst [vmem:[%s124 + $0x110] sm:$0xff] %v193
                %v195 = vld [vmem:[%s123 + $0x448] sm:$0xff]
                %196 = vst [vmem:[%s124 + $0x118] sm:$0xff] %v195
                %v197 = vld [vmem:[%s123 + $0x480] sm:$0xff]
                %198 = vst [vmem:[%s124 + $0x120] sm:$0xff] %v197
                %v199 = vld [vmem:[%s123 + $0x488] sm:$0xff]
                %200 = vst [vmem:[%s124 + $0x128] sm:$0xff] %v199
                %v201 = vld [vmem:[%s123 + $0x4c0] sm:$0xff]
                %202 = vst [vmem:[%s124 + $0x130] sm:$0xff] %v201
                %v203 = vld [vmem:[%s123 + $0x4c8] sm:$0xff]
                %204 = vst [vmem:[%s124 + $0x138] sm:$0xff] %v203
                %v205 = vld [vmem:[%s123 + $0x500] sm:$0xff]
                %206 = vst [vmem:[%s124 + $0x140] sm:$0xff] %v205
                %v207 = vld [vmem:[%s123 + $0x508] sm:$0xff]
                %208 = vst [vmem:[%s124 + $0x148] sm:$0xff] %v207
                %v209 = vld [vmem:[%s123 + $0x540] sm:$0xff]
                %210 = vst [vmem:[%s124 + $0x150] sm:$0xff] %v209
                %v211 = vld [vmem:[%s123 + $0x548] sm:$0xff]
                %212 = vst [vmem:[%s124 + $0x158] sm:$0xff] %v211
                %v213 = vld [vmem:[%s123 + $0x580] sm:$0xff]
                %214 = vst [vmem:[%s124 + $0x160] sm:$0xff] %v213
                %v215 = vld [vmem:[%s123 + $0x588] sm:$0xff]
                %216 = vst [vmem:[%s124 + $0x168] sm:$0xff] %v215
                %v217 = vld [vmem:[%s123 + $0x5c0] sm:$0xff]
                %218 = vst [vmem:[%s124 + $0x170] sm:$0xff] %v217
                %v219 = vld [vmem:[%s123 + $0x5c8] sm:$0xff]
                %220 = vst [vmem:[%s124 + $0x178] sm:$0xff] %v219
                %v221 = vld [vmem:[%s123 + $0x600] sm:$0xff]
                %222 = vst [vmem:[%s124 + $0x180] sm:$0xff] %v221
                %v223 = vld [vmem:[%s123 + $0x608] sm:$0xff]
                %224 = vst [vmem:[%s124 + $0x188] sm:$0xff] %v223
                %v225 = vld [vmem:[%s123 + $0x640] sm:$0xff]
                %226 = vst [vmem:[%s124 + $0x190] sm:$0xff] %v225
                %v227 = vld [vmem:[%s123 + $0x648] sm:$0xff]
                %228 = vst [vmem:[%s124 + $0x198] sm:$0xff] %v227
                %v229 = vld [vmem:[%s123 + $0x680] sm:$0xff]
                %230 = vst [vmem:[%s124 + $0x1a0] sm:$0xff] %v229
                %v231 = vld [vmem:[%s123 + $0x688] sm:$0xff]
                %232 = vst [vmem:[%s124 + $0x1a8] sm:$0xff] %v231
                %v233 = vld [vmem:[%s123 + $0x6c0] sm:$0xff]
                %234 = vst [vmem:[%s124 + $0x1b0] sm:$0xff] %v233
                %v235 = vld [vmem:[%s123 + $0x6c8] sm:$0xff]
                %236 = vst [vmem:[%s124 + $0x1b8] sm:$0xff] %v235
                %v237 = vld [vmem:[%s123 + $0x700] sm:$0xff]
                %238 = vst [vmem:[%s124 + $0x1c0] sm:$0xff] %v237
                %v239 = vld [vmem:[%s123 + $0x708] sm:$0xff]
                %240 = vst [vmem:[%s124 + $0x1c8] sm:$0xff] %v239
                %v241 = vld [vmem:[%s123 + $0x740] sm:$0xff]
                %242 = vst [vmem:[%s124 + $0x1d0] sm:$0xff] %v241
                %v243 = vld [vmem:[%s123 + $0x748] sm:$0xff]
                %244 = vst [vmem:[%s124 + $0x1d8] sm:$0xff] %v243
                %v245 = vld [vmem:[%s123 + $0x780] sm:$0xff]
                %246 = vst [vmem:[%s124 + $0x1e0] sm:$0xff] %v245
                %v247 = vld [vmem:[%s123 + $0x788] sm:$0xff]
                %248 = vst [vmem:[%s124 + $0x1e8] sm:$0xff] %v247
                %v249 = vld [vmem:[%s123 + $0x7c0] sm:$0xff]
                %250 = vst [vmem:[%s124 + $0x1f0] sm:$0xff] %v249
                %v251 = vld [vmem:[%s123 + $0x7c8] sm:$0xff]
                %252 = vst [vmem:[%s124 + $0x1f8] sm:$0xff] %v251
                %v253 = vld [vmem:[%s123 + $0x800] sm:$0xff]
                %254 = vst [vmem:[%s124 + $0x200] sm:$0xff] %v253
                %v255 = vld [vmem:[%s123 + $0x808] sm:$0xff]
                %256 = vst [vmem:[%s124 + $0x208] sm:$0xff] %v255
                %v257 = vld [vmem:[%s123 + $0x840] sm:$0xff]
                %258 = vst [vmem:[%s124 + $0x210] sm:$0xff] %v257
                %v259 = vld [vmem:[%s123 + $0x848] sm:$0xff]
                %260 = vst [vmem:[%s124 + $0x218] sm:$0xff] %v259
                %v261 = vld [vmem:[%s123 + $0x880] sm:$0xff]
                %262 = vst [vmem:[%s124 + $0x220] sm:$0xff] %v261
                %v263 = vld [vmem:[%s123 + $0x888] sm:$0xff]
                %264 = vst [vmem:[%s124 + $0x228] sm:$0xff] %v263
                %v265 = vld [vmem:[%s123 + $0x8c0] sm:$0xff]
                %266 = vst [vmem:[%s124 + $0x230] sm:$0xff] %v265
                %v267 = vld [vmem:[%s123 + $0x8c8] sm:$0xff]
                %268 = vst [vmem:[%s124 + $0x238] sm:$0xff] %v267
                %v269 = vld [vmem:[%s123 + $0x900] sm:$0xff]
                %270 = vst [vmem:[%s124 + $0x240] sm:$0xff] %v269
                %v271 = vld [vmem:[%s123 + $0x908] sm:$0xff]
                %272 = vst [vmem:[%s124 + $0x248] sm:$0xff] %v271
                %v273 = vld [vmem:[%s123 + $0x940] sm:$0xff]
                %274 = vst [vmem:[%s124 + $0x250] sm:$0xff] %v273
                %v275 = vld [vmem:[%s123 + $0x948] sm:$0xff]
                %276 = vst [vmem:[%s124 + $0x258] sm:$0xff] %v275
                %v277 = vld [vmem:[%s123 + $0x980] sm:$0xff]
                %278 = vst [vmem:[%s124 + $0x260] sm:$0xff] %v277
                %v279 = vld [vmem:[%s123 + $0x988] sm:$0xff]
                %280 = vst [vmem:[%s124 + $0x268] sm:$0xff] %v279
                %v281 = vld [vmem:[%s123 + $0x9c0] sm:$0xff]
                %282 = vst [vmem:[%s124 + $0x270] sm:$0xff] %v281
                %v283 = vld [vmem:[%s123 + $0x9c8] sm:$0xff]
                %284 = vst [vmem:[%s124 + $0x278] sm:$0xff] %v283
                %v285 = vld [vmem:[%s123 + $0xa00] sm:$0xff]
                %286 = vst [vmem:[%s124 + $0x280] sm:$0xff] %v285
                %v287 = vld [vmem:[%s123 + $0xa08] sm:$0xff]
                %288 = vst [vmem:[%s124 + $0x288] sm:$0xff] %v287
                %v289 = vld [vmem:[%s123 + $0xa40] sm:$0xff]
                %290 = vst [vmem:[%s124 + $0x290] sm:$0xff] %v289
                %v291 = vld [vmem:[%s123 + $0xa48] sm:$0xff]
                %292 = vst [vmem:[%s124 + $0x298] sm:$0xff] %v291
                %v293 = vld [vmem:[%s123 + $0xa80] sm:$0xff]
                %294 = vst [vmem:[%s124 + $0x2a0] sm:$0xff] %v293
                %v295 = vld [vmem:[%s123 + $0xa88] sm:$0xff]
                %296 = vst [vmem:[%s124 + $0x2a8] sm:$0xff] %v295
                %v297 = vld [vmem:[%s123 + $0xac0] sm:$0xff]
                %298 = vst [vmem:[%s124 + $0x2b0] sm:$0xff] %v297
                %v299 = vld [vmem:[%s123 + $0xac8] sm:$0xff]
                %300 = vst [vmem:[%s124 + $0x2b8] sm:$0xff] %v299
                %v301 = vld [vmem:[%s123 + $0xb00] sm:$0xff]
                %302 = vst [vmem:[%s124 + $0x2c0] sm:$0xff] %v301
                %v303 = vld [vmem:[%s123 + $0xb08] sm:$0xff]
                %304 = vst [vmem:[%s124 + $0x2c8] sm:$0xff] %v303
                %v305 = vld [vmem:[%s123 + $0xb40] sm:$0xff]
                %306 = vst [vmem:[%s124 + $0x2d0] sm:$0xff] %v305
                %v307 = vld [vmem:[%s123 + $0xb48] sm:$0xff]
                %308 = vst [vmem:[%s124 + $0x2d8] sm:$0xff] %v307
                %v309 = vld [vmem:[%s123 + $0xb80] sm:$0xff]
                %310 = vst [vmem:[%s124 + $0x2e0] sm:$0xff] %v309
                %v311 = vld [vmem:[%s123 + $0xb88] sm:$0xff]
                %312 = vst [vmem:[%s124 + $0x2e8] sm:$0xff] %v311
                %v313 = vld [vmem:[%s123 + $0xbc0] sm:$0xff]
                %314 = vst [vmem:[%s124 + $0x2f0] sm:$0xff] %v313
                %v315 = vld [vmem:[%s123 + $0xbc8] sm:$0xff]
                %316 = vst [vmem:[%s124 + $0x2f8] sm:$0xff] %v315
                %v317 = vld [vmem:[%s123 + $0xc00] sm:$0xff]
                %318 = vst [vmem:[%s124 + $0x300] sm:$0xff] %v317
                %v319 = vld [vmem:[%s123 + $0xc08] sm:$0xff]
                %320 = vst [vmem:[%s124 + $0x308] sm:$0xff] %v319
                %v321 = vld [vmem:[%s123 + $0xc40] sm:$0xff]
                %322 = vst [vmem:[%s124 + $0x310] sm:$0xff] %v321
                %v323 = vld [vmem:[%s123 + $0xc48] sm:$0xff]
                %324 = vst [vmem:[%s124 + $0x318] sm:$0xff] %v323
                %v325 = vld [vmem:[%s123 + $0xc80] sm:$0xff]
                %326 = vst [vmem:[%s124 + $0x320] sm:$0xff] %v325
                %v327 = vld [vmem:[%s123 + $0xc88] sm:$0xff]
                %328 = vst [vmem:[%s124 + $0x328] sm:$0xff] %v327
                %v329 = vld [vmem:[%s123 + $0xcc0] sm:$0xff]
                %330 = vst [vmem:[%s124 + $0x330] sm:$0xff] %v329
                %v331 = vld [vmem:[%s123 + $0xcc8] sm:$0xff]
                %332 = vst [vmem:[%s124 + $0x338] sm:$0xff] %v331
                %v333 = vld [vmem:[%s123 + $0xd00] sm:$0xff]
                %334 = vst [vmem:[%s124 + $0x340] sm:$0xff] %v333
                %v335 = vld [vmem:[%s123 + $0xd08] sm:$0xff]
                %336 = vst [vmem:[%s124 + $0x348] sm:$0xff] %v335
                %v337 = vld [vmem:[%s123 + $0xd40] sm:$0xff]
                %338 = vst [vmem:[%s124 + $0x350] sm:$0xff] %v337
                %v339 = vld [vmem:[%s123 + $0xd48] sm:$0xff]
                %340 = vst [vmem:[%s124 + $0x358] sm:$0xff] %v339
                %v341 = vld [vmem:[%s123 + $0xd80] sm:$0xff]
                %342 = vst [vmem:[%s124 + $0x360] sm:$0xff] %v341
                %v343 = vld [vmem:[%s123 + $0xd88] sm:$0xff]
                %344 = vst [vmem:[%s124 + $0x368] sm:$0xff] %v343
                %v345 = vld [vmem:[%s123 + $0xdc0] sm:$0xff]
                %346 = vst [vmem:[%s124 + $0x370] sm:$0xff] %v345
                %v347 = vld [vmem:[%s123 + $0xdc8] sm:$0xff]
                %348 = vst [vmem:[%s124 + $0x378] sm:$0xff] %v347
                %v349 = vld [vmem:[%s123 + $0xe00] sm:$0xff]
                %350 = vst [vmem:[%s124 + $0x380] sm:$0xff] %v349
                %v351 = vld [vmem:[%s123 + $0xe08] sm:$0xff]
                %352 = vst [vmem:[%s124 + $0x388] sm:$0xff] %v351
                %v353 = vld [vmem:[%s123 + $0xe40] sm:$0xff]
                %354 = vst [vmem:[%s124 + $0x390] sm:$0xff] %v353
                %v355 = vld [vmem:[%s123 + $0xe48] sm:$0xff]
                %356 = vst [vmem:[%s124 + $0x398] sm:$0xff] %v355
                %v357 = vld [vmem:[%s123 + $0xe80] sm:$0xff]
                %358 = vst [vmem:[%s124 + $0x3a0] sm:$0xff] %v357
                %v359 = vld [vmem:[%s123 + $0xe88] sm:$0xff]
                %360 = vst [vmem:[%s124 + $0x3a8] sm:$0xff] %v359
                %v361 = vld [vmem:[%s123 + $0xec0] sm:$0xff]
                %362 = vst [vmem:[%s124 + $0x3b0] sm:$0xff] %v361
                %v363 = vld [vmem:[%s123 + $0xec8] sm:$0xff]
                %364 = vst [vmem:[%s124 + $0x3b8] sm:$0xff] %v363
                %v365 = vld [vmem:[%s123 + $0xf00] sm:$0xff]
                %366 = vst [vmem:[%s124 + $0x3c0] sm:$0xff] %v365
                %v367 = vld [vmem:[%s123 + $0xf08] sm:$0xff]
                %368 = vst [vmem:[%s124 + $0x3c8] sm:$0xff] %v367
                %v369 = vld [vmem:[%s123 + $0xf40] sm:$0xff]
                %370 = vst [vmem:[%s124 + $0x3d0] sm:$0xff] %v369
                %v371 = vld [vmem:[%s123 + $0xf48] sm:$0xff]
                %372 = vst [vmem:[%s124 + $0x3d8] sm:$0xff] %v371
                %v373 = vld [vmem:[%s123 + $0xf80] sm:$0xff]
                %374 = vst [vmem:[%s124 + $0x3e0] sm:$0xff] %v373
                %v375 = vld [vmem:[%s123 + $0xf88] sm:$0xff]
                %376 = vst [vmem:[%s124 + $0x3e8] sm:$0xff] %v375
                %v377 = vld [vmem:[%s123 + $0xfc0] sm:$0xff]
                %378 = vst [vmem:[%s124 + $0x3f0] sm:$0xff] %v377
                %v379 = vld [vmem:[%s123 + $0xfc8] sm:$0xff]
                %380 = vst [vmem:[%s124 + $0x3f8] sm:$0xff] %v379
              $region37: #{yolo3_forward.17} parent=31 // loop_footer
                %s122 = sadd.s32 1, %s118
              $region38: #{yolo3_forward.17} parent=31 // loop_footer_branch
                %117 = sbr.rel target = $region34
              $region39: #{yolo3_forward.17} parent=31 // loop_exit
                _
            $region32: #{yolo3_forward.17} parent=27 // pred_fallthru
              _
            // Predicated region
            $region40: #{yolo3_forward.17} parent=27 // pred_check
              _
            $region41: #{yolo3_forward.17} parent=27 // pred_check_branch
              %382 = sbr.rel target = $region43
            $region42: #{yolo3_forward.17} parent=27 // pred_region
              _
            $region43: #{yolo3_forward.17} parent=27 // pred_fallthru
              _
          $region28: #{yolo3_forward.17} parent=23 // pred_fallthru
            _
          %383 = vnop
        $region24: #{yolo3_forward.17} parent=19 // pred_fallthru
          _
      $region20: #{yolo3_forward.17} parent=5 // pred_fallthru
        _
      %p384 = scmp.le.s32.totalorder 1, %s8
      %p385 = scmp.lt.s32.totalorder %s8, 5
      %p386 = pnand %p384, %p385
      %p387 = pneg %p386
      // Predicated region
      $region44: #{yolo3_forward.17} parent=5 // pred_check
        _
      $region45: #{yolo3_forward.17} parent=5 // pred_check_branch
        %389 = sbr.rel (%p386) target = $region47
      $region46: #{yolo3_forward.17} parent=5 // pred_region
        %s390 = ssub.s32 %s8, 1
        %s391 = sand.u32 %s42, 1
        %s392 = sand.u32 %s42, 1
        %s393 = smul.addr %s392, 1024
        %s394 = scalar_lea.vmem [#allocation2], %s393
        // Predicated region
        $region48: #{yolo3_forward.17} parent=46 // pred_check
          %p395 = pneg %p55
        $region49: #{yolo3_forward.17} parent=46 // pred_check_branch
          %397 = sbr.rel (%p395) target = $region51
        $region50: #{yolo3_forward.17} parent=46 // pred_region
          _
        $region51: #{yolo3_forward.17} parent=46 // pred_fallthru
          _
        %p398 = pneg %p29
        %p399 = pneg %p26
        %s400 = sand.u32 %s42, 1
        %s401 = sand.u32 %s42, 1
        %s402 = smul.addr %s401, 1024
        %s403 = scalar_lea.vmem [#allocation2], %s402
        %p404 = pneg %p55
        %p405 = pneg %p52
        %p406 = pneg %p81
        %p407 = pneg %p78
        %s408 = smul.u32 4, %s13
        %p409 = scmp.lt.s32.totalorder %s408, 15
        %s410 = scalar_select %p409, %s408, 15
        %s411 = smul.addr %s410, 8
        %s412 = scalar_lea.vmem %s2, %s411
        %s413 = smul.u32 4, %s13
        %s414 = smul.u32 4, %s13
        %p415 = scmp.lt.s32.totalorder %s414, 15
        %s416 = scalar_select %p415, %s414, 15
        %s417 = smul.addr %s416, 8
        %s418 = scalar_lea.vmem %s2, %s417
        %s419 = smul.u32 4, %s13
        %v420 = vld [vmem:[%s0] sm:$0xff]
        %v421 = vld [vmem:[%s0 + $0x8] sm:$0xff]
        %v422 = vld [vmem:[%s394] sm:$0xff]
        %v423 = vld [vmem:[%s394 + $0x8] sm:$0xff]
        %v424 = vld [vmem:[%s394 + $0x10] sm:$0xff]
        %v425 = vld [vmem:[%s394 + $0x18] sm:$0xff]
        %v426 = vld [vmem:[%s394 + $0x20] sm:$0xff]
        %v427 = vld [vmem:[%s394 + $0x28] sm:$0xff]
        %v428 = vld [vmem:[%s394 + $0x30] sm:$0xff]
        %v429 = vld [vmem:[%s394 + $0x38] sm:$0xff]
        %v430 = vld [vmem:[%s394 + $0x40] sm:$0xff]
        %v431 = vld [vmem:[%s394 + $0x48] sm:$0xff]
        %v432 = vld [vmem:[%s394 + $0x50] sm:$0xff]
        %v433 = vld [vmem:[%s394 + $0x58] sm:$0xff]
        %v434 = vld [vmem:[%s394 + $0x60] sm:$0xff]
        %v435 = vld [vmem:[%s394 + $0x68] sm:$0xff]
        %v436 = vld [vmem:[%s394 + $0x70] sm:$0xff]
        %v437 = vld [vmem:[%s394 + $0x78] sm:$0xff]
        %v438 = vld [vmem:[%s394 + $0x80] sm:$0xff]
        %v439 = vld [vmem:[%s394 + $0x88] sm:$0xff]
        %v440 = vld [vmem:[%s394 + $0x90] sm:$0xff]
        %v441 = vld [vmem:[%s394 + $0x98] sm:$0xff]
        %v442 = vld [vmem:[%s394 + $0xa0] sm:$0xff]
        %v443 = vld [vmem:[%s394 + $0xa8] sm:$0xff]
        %v444 = vld [vmem:[%s394 + $0xb0] sm:$0xff]
        %v445 = vld [vmem:[%s394 + $0xb8] sm:$0xff]
        %v446 = vld [vmem:[%s394 + $0xc0] sm:$0xff]
        %v447 = vld [vmem:[%s394 + $0xc8] sm:$0xff]
        %v448 = vld [vmem:[%s394 + $0xd0] sm:$0xff]
        %v449 = vld [vmem:[%s394 + $0xd8] sm:$0xff]
        %v450 = vld [vmem:[%s394 + $0xe0] sm:$0xff]
        %v451 = vld [vmem:[%s394 + $0xe8] sm:$0xff]
        %v452 = vld [vmem:[%s394 + $0xf0] sm:$0xff]
        %v453 = vld [vmem:[%s394 + $0xf8] sm:$0xff]
        %v454 = vld [vmem:[%s394 + $0x100] sm:$0xff]
        %v455 = vld [vmem:[%s394 + $0x108] sm:$0xff]
        %v456 = vld [vmem:[%s394 + $0x110] sm:$0xff]
        %v457 = vld [vmem:[%s394 + $0x118] sm:$0xff]
        %v458 = vld [vmem:[%s394 + $0x120] sm:$0xff]
        %v459 = vld [vmem:[%s394 + $0x128] sm:$0xff]
        %v460 = vld [vmem:[%s394 + $0x130] sm:$0xff]
        %v461 = vld [vmem:[%s394 + $0x138] sm:$0xff]
        %v462 = vld [vmem:[%s394 + $0x140] sm:$0xff]
        %v463 = vld [vmem:[%s394 + $0x148] sm:$0xff]
        %v464 = vld [vmem:[%s394 + $0x150] sm:$0xff]
        %v465 = vld [vmem:[%s394 + $0x158] sm:$0xff]
        %v466 = vld [vmem:[%s394 + $0x160] sm:$0xff]
        %v467 = vld [vmem:[%s394 + $0x168] sm:$0xff]
        %v468 = vld [vmem:[%s394 + $0x170] sm:$0xff]
        %v469 = vld [vmem:[%s394 + $0x178] sm:$0xff]
        %v470 = vld [vmem:[%s394 + $0x180] sm:$0xff]
        %v471 = vld [vmem:[%s394 + $0x188] sm:$0xff]
        %v472 = vld [vmem:[%s394 + $0x190] sm:$0xff]
        %v473 = vld [vmem:[%s394 + $0x198] sm:$0xff]
        %v474 = vld [vmem:[%s394 + $0x1a0] sm:$0xff]
        %v475 = vld [vmem:[%s394 + $0x1a8] sm:$0xff]
        %v476 = vld [vmem:[%s394 + $0x1b0] sm:$0xff]
        %v477 = vld [vmem:[%s394 + $0x1b8] sm:$0xff]
        %v478 = vld [vmem:[%s394 + $0x1c0] sm:$0xff]
        %v479 = vld [vmem:[%s394 + $0x1c8] sm:$0xff]
        %v480 = vld [vmem:[%s394 + $0x1d0] sm:$0xff]
        %v481 = vld [vmem:[%s394 + $0x1d8] sm:$0xff]
        %v482 = vld [vmem:[%s394 + $0x1e0] sm:$0xff]
        %v483 = vld [vmem:[%s394 + $0x1e8] sm:$0xff]
        %v484 = vld [vmem:[%s394 + $0x1f0] sm:$0xff]
        %v485 = vld [vmem:[%s394 + $0x1f8] sm:$0xff]
        %v486 = vld [vmem:[%s394 + $0x200] sm:$0xff]
        %v487 = vld [vmem:[%s394 + $0x208] sm:$0xff]
        %v488 = vld [vmem:[%s394 + $0x210] sm:$0xff]
        %v489 = vld [vmem:[%s394 + $0x218] sm:$0xff]
        %v490 = vld [vmem:[%s394 + $0x220] sm:$0xff]
        %v491 = vld [vmem:[%s394 + $0x228] sm:$0xff]
        %v492 = vld [vmem:[%s394 + $0x230] sm:$0xff]
        %v493 = vld [vmem:[%s394 + $0x238] sm:$0xff]
        %v494 = vld [vmem:[%s394 + $0x240] sm:$0xff]
        %v495 = vld [vmem:[%s394 + $0x248] sm:$0xff]
        %v496 = vld [vmem:[%s394 + $0x250] sm:$0xff]
        %v497 = vld [vmem:[%s394 + $0x258] sm:$0xff]
        %v498 = vld [vmem:[%s394 + $0x260] sm:$0xff]
        %v499 = vld [vmem:[%s394 + $0x268] sm:$0xff]
        %v500 = vld [vmem:[%s394 + $0x270] sm:$0xff]
        %v501 = vld [vmem:[%s394 + $0x278] sm:$0xff]
        %v502 = vld [vmem:[%s394 + $0x280] sm:$0xff]
        %v503 = vld [vmem:[%s394 + $0x288] sm:$0xff]
        %v504 = vld [vmem:[%s394 + $0x290] sm:$0xff]
        %v505 = vld [vmem:[%s394 + $0x298] sm:$0xff]
        %v506 = vld [vmem:[%s394 + $0x2a0] sm:$0xff]
        %v507 = vld [vmem:[%s394 + $0x2a8] sm:$0xff]
        %v508 = vld [vmem:[%s394 + $0x2b0] sm:$0xff]
        %v509 = vld [vmem:[%s394 + $0x2b8] sm:$0xff]
        %v510 = vld [vmem:[%s394 + $0x2c0] sm:$0xff]
        %v511 = vld [vmem:[%s394 + $0x2c8] sm:$0xff]
        %v512 = vld [vmem:[%s394 + $0x2d0] sm:$0xff]
        %v513 = vld [vmem:[%s394 + $0x2d8] sm:$0xff]
        %v514 = vld [vmem:[%s394 + $0x2e0] sm:$0xff]
        %v515 = vld [vmem:[%s394 + $0x2e8] sm:$0xff]
        %v516 = vld [vmem:[%s394 + $0x2f0] sm:$0xff]
        %v517 = vld [vmem:[%s394 + $0x2f8] sm:$0xff]
        %v518 = vld [vmem:[%s394 + $0x300] sm:$0xff]
        %v519 = vld [vmem:[%s394 + $0x308] sm:$0xff]
        %v520 = vld [vmem:[%s394 + $0x310] sm:$0xff]
        %v521 = vld [vmem:[%s394 + $0x318] sm:$0xff]
        %v522 = vld [vmem:[%s394 + $0x320] sm:$0xff]
        %v523 = vld [vmem:[%s394 + $0x328] sm:$0xff]
        %v524 = vld [vmem:[%s394 + $0x330] sm:$0xff]
        %v525 = vld [vmem:[%s394 + $0x338] sm:$0xff]
        %v526 = vld [vmem:[%s394 + $0x340] sm:$0xff]
        %v527 = vld [vmem:[%s394 + $0x348] sm:$0xff]
        %v528 = vld [vmem:[%s394 + $0x350] sm:$0xff]
        %v529 = vld [vmem:[%s394 + $0x358] sm:$0xff]
        %v530 = vld [vmem:[%s394 + $0x360] sm:$0xff]
        %v531 = vld [vmem:[%s394 + $0x368] sm:$0xff]
        %v532 = vld [vmem:[%s394 + $0x370] sm:$0xff]
        %v533 = vld [vmem:[%s394 + $0x378] sm:$0xff]
        %v534 = vld [vmem:[%s394 + $0x380] sm:$0xff]
        %v535 = vld [vmem:[%s394 + $0x388] sm:$0xff]
        %v536 = vld [vmem:[%s394 + $0x390] sm:$0xff]
        %v537 = vld [vmem:[%s394 + $0x398] sm:$0xff]
        %v538 = vld [vmem:[%s394 + $0x3a0] sm:$0xff]
        %v539 = vld [vmem:[%s394 + $0x3a8] sm:$0xff]
        %v540 = vld [vmem:[%s394 + $0x3b0] sm:$0xff]
        %v541 = vld [vmem:[%s394 + $0x3b8] sm:$0xff]
        %v542 = vld [vmem:[%s394 + $0x3c0] sm:$0xff]
        %v543 = vld [vmem:[%s394 + $0x3c8] sm:$0xff]
        %v544 = vld [vmem:[%s394 + $0x3d0] sm:$0xff]
        %v545 = vld [vmem:[%s394 + $0x3d8] sm:$0xff]
        %v546 = vld [vmem:[%s394 + $0x3e0] sm:$0xff]
        %v547 = vld [vmem:[%s394 + $0x3e8] sm:$0xff]
        %v548 = vld [vmem:[%s394 + $0x3f0] sm:$0xff]
        %v549 = vld [vmem:[%s394 + $0x3f8] sm:$0xff]
        %v552 = vunpack.c.l.b16 %v420
        %v553 = vunpack.c.h.b16 %v420
        %v554 = vunpack.c.l.b16 %v421
        %v555 = vunpack.c.h.b16 %v421
        %v556 = vpack.c.b16 %v552, %v552
        %v557 = vpack.c.b16 %v553, %v553
        %v558 = vpack.c.b16 %v554, %v554
        %v559 = vpack.c.b16 %v555, %v555
        %v692 = vunpack.c.l.b16 %v422
        %v693 = vunpack.c.h.b16 %v422
        %v694 = vunpack.c.l.b16 %v423
        %v695 = vunpack.c.h.b16 %v423
        %v696 = vunpack.c.l.b16 %v424
        %v697 = vunpack.c.h.b16 %v424
        %v698 = vunpack.c.l.b16 %v425
        %v699 = vunpack.c.h.b16 %v425
        %v700 = vunpack.c.l.b16 %v426
        %v701 = vunpack.c.h.b16 %v426
        %v702 = vunpack.c.l.b16 %v427
        %v703 = vunpack.c.h.b16 %v427
        %v704 = vunpack.c.l.b16 %v428
        %v705 = vunpack.c.h.b16 %v428
        %v706 = vunpack.c.l.b16 %v429
        %v707 = vunpack.c.h.b16 %v429
        %v708 = vunpack.c.l.b16 %v430
        %v709 = vunpack.c.h.b16 %v430
        %v710 = vunpack.c.l.b16 %v431
        %v711 = vunpack.c.h.b16 %v431
        %v712 = vunpack.c.l.b16 %v432
        %v713 = vunpack.c.h.b16 %v432
        %v714 = vunpack.c.l.b16 %v433
        %v715 = vunpack.c.h.b16 %v433
        %v716 = vunpack.c.l.b16 %v434
        %v717 = vunpack.c.h.b16 %v434
        %v718 = vunpack.c.l.b16 %v435
        %v719 = vunpack.c.h.b16 %v435
        %v720 = vunpack.c.l.b16 %v436
        %v721 = vunpack.c.h.b16 %v436
        %v722 = vunpack.c.l.b16 %v437
        %v723 = vunpack.c.h.b16 %v437
        %v724 = vunpack.c.l.b16 %v438
        %v725 = vunpack.c.h.b16 %v438
        %v726 = vunpack.c.l.b16 %v439
        %v727 = vunpack.c.h.b16 %v439
        %v728 = vunpack.c.l.b16 %v440
        %v729 = vunpack.c.h.b16 %v440
        %v730 = vunpack.c.l.b16 %v441
        %v731 = vunpack.c.h.b16 %v441
        %v732 = vunpack.c.l.b16 %v442
        %v733 = vunpack.c.h.b16 %v442
        %v734 = vunpack.c.l.b16 %v443
        %v735 = vunpack.c.h.b16 %v443
        %v736 = vunpack.c.l.b16 %v444
        %v737 = vunpack.c.h.b16 %v444
        %v738 = vunpack.c.l.b16 %v445
        %v739 = vunpack.c.h.b16 %v445
        %v740 = vunpack.c.l.b16 %v446
        %v741 = vunpack.c.h.b16 %v446
        %v742 = vunpack.c.l.b16 %v447
        %v743 = vunpack.c.h.b16 %v447
        %v744 = vunpack.c.l.b16 %v448
        %v745 = vunpack.c.h.b16 %v448
        %v746 = vunpack.c.l.b16 %v449
        %v747 = vunpack.c.h.b16 %v449
        %v748 = vunpack.c.l.b16 %v450
        %v749 = vunpack.c.h.b16 %v450
        %v750 = vunpack.c.l.b16 %v451
        %v751 = vunpack.c.h.b16 %v451
        %v752 = vunpack.c.l.b16 %v452
        %v753 = vunpack.c.h.b16 %v452
        %v754 = vunpack.c.l.b16 %v453
        %v755 = vunpack.c.h.b16 %v453
        %v756 = vunpack.c.l.b16 %v454
        %v757 = vunpack.c.h.b16 %v454
        %v758 = vunpack.c.l.b16 %v455
        %v759 = vunpack.c.h.b16 %v455
        %v760 = vunpack.c.l.b16 %v456
        %v761 = vunpack.c.h.b16 %v456
        %v762 = vunpack.c.l.b16 %v457
        %v763 = vunpack.c.h.b16 %v457
        %v764 = vunpack.c.l.b16 %v458
        %v765 = vunpack.c.h.b16 %v458
        %v766 = vunpack.c.l.b16 %v459
        %v767 = vunpack.c.h.b16 %v459
        %v768 = vunpack.c.l.b16 %v460
        %v769 = vunpack.c.h.b16 %v460
        %v770 = vunpack.c.l.b16 %v461
        %v771 = vunpack.c.h.b16 %v461
        %v772 = vunpack.c.l.b16 %v462
        %v773 = vunpack.c.h.b16 %v462
        %v774 = vunpack.c.l.b16 %v463
        %v775 = vunpack.c.h.b16 %v463
        %v776 = vunpack.c.l.b16 %v464
        %v777 = vunpack.c.h.b16 %v464
        %v778 = vunpack.c.l.b16 %v465
        %v779 = vunpack.c.h.b16 %v465
        %v780 = vunpack.c.l.b16 %v466
        %v781 = vunpack.c.h.b16 %v466
        %v782 = vunpack.c.l.b16 %v467
        %v783 = vunpack.c.h.b16 %v467
        %v784 = vunpack.c.l.b16 %v468
        %v785 = vunpack.c.h.b16 %v468
        %v786 = vunpack.c.l.b16 %v469
        %v787 = vunpack.c.h.b16 %v469
        %v788 = vunpack.c.l.b16 %v470
        %v789 = vunpack.c.h.b16 %v470
        %v790 = vunpack.c.l.b16 %v471
        %v791 = vunpack.c.h.b16 %v471
        %v792 = vunpack.c.l.b16 %v472
        %v793 = vunpack.c.h.b16 %v472
        %v794 = vunpack.c.l.b16 %v473
        %v795 = vunpack.c.h.b16 %v473
        %v796 = vunpack.c.l.b16 %v474
        %v797 = vunpack.c.h.b16 %v474
        %v798 = vunpack.c.l.b16 %v475
        %v799 = vunpack.c.h.b16 %v475
        %v800 = vunpack.c.l.b16 %v476
        %v801 = vunpack.c.h.b16 %v476
        %v802 = vunpack.c.l.b16 %v477
        %v803 = vunpack.c.h.b16 %v477
        %v804 = vunpack.c.l.b16 %v478
        %v805 = vunpack.c.h.b16 %v478
        %v806 = vunpack.c.l.b16 %v479
        %v807 = vunpack.c.h.b16 %v479
        %v808 = vunpack.c.l.b16 %v480
        %v809 = vunpack.c.h.b16 %v480
        %v810 = vunpack.c.l.b16 %v481
        %v811 = vunpack.c.h.b16 %v481
        %v812 = vunpack.c.l.b16 %v482
        %v813 = vunpack.c.h.b16 %v482
        %v814 = vunpack.c.l.b16 %v483
        %v815 = vunpack.c.h.b16 %v483
        %v816 = vunpack.c.l.b16 %v484
        %v817 = vunpack.c.h.b16 %v484
        %v818 = vunpack.c.l.b16 %v485
        %v819 = vunpack.c.h.b16 %v485
        %v820 = vunpack.c.l.b16 %v486
        %v821 = vunpack.c.h.b16 %v486
        %v822 = vunpack.c.l.b16 %v487
        %v823 = vunpack.c.h.b16 %v487
        %v824 = vunpack.c.l.b16 %v488
        %v825 = vunpack.c.h.b16 %v488
        %v826 = vunpack.c.l.b16 %v489
        %v827 = vunpack.c.h.b16 %v489
        %v828 = vunpack.c.l.b16 %v490
        %v829 = vunpack.c.h.b16 %v490
        %v830 = vunpack.c.l.b16 %v491
        %v831 = vunpack.c.h.b16 %v491
        %v832 = vunpack.c.l.b16 %v492
        %v833 = vunpack.c.h.b16 %v492
        %v834 = vunpack.c.l.b16 %v493
        %v835 = vunpack.c.h.b16 %v493
        %v836 = vunpack.c.l.b16 %v494
        %v837 = vunpack.c.h.b16 %v494
        %v838 = vunpack.c.l.b16 %v495
        %v839 = vunpack.c.h.b16 %v495
        %v840 = vunpack.c.l.b16 %v496
        %v841 = vunpack.c.h.b16 %v496
        %v842 = vunpack.c.l.b16 %v497
        %v843 = vunpack.c.h.b16 %v497
        %v844 = vunpack.c.l.b16 %v498
        %v845 = vunpack.c.h.b16 %v498
        %v846 = vunpack.c.l.b16 %v499
        %v847 = vunpack.c.h.b16 %v499
        %v848 = vunpack.c.l.b16 %v500
        %v849 = vunpack.c.h.b16 %v500
        %v850 = vunpack.c.l.b16 %v501
        %v851 = vunpack.c.h.b16 %v501
        %v852 = vunpack.c.l.b16 %v502
        %v853 = vunpack.c.h.b16 %v502
        %v854 = vunpack.c.l.b16 %v503
        %v855 = vunpack.c.h.b16 %v503
        %v856 = vunpack.c.l.b16 %v504
        %v857 = vunpack.c.h.b16 %v504
        %v858 = vunpack.c.l.b16 %v505
        %v859 = vunpack.c.h.b16 %v505
        %v860 = vunpack.c.l.b16 %v506
        %v861 = vunpack.c.h.b16 %v506
        %v862 = vunpack.c.l.b16 %v507
        %v863 = vunpack.c.h.b16 %v507
        %v864 = vunpack.c.l.b16 %v508
        %v865 = vunpack.c.h.b16 %v508
        %v866 = vunpack.c.l.b16 %v509
        %v867 = vunpack.c.h.b16 %v509
        %v868 = vunpack.c.l.b16 %v510
        %v869 = vunpack.c.h.b16 %v510
        %v870 = vunpack.c.l.b16 %v511
        %v871 = vunpack.c.h.b16 %v511
        %v872 = vunpack.c.l.b16 %v512
        %v873 = vunpack.c.h.b16 %v512
        %v874 = vunpack.c.l.b16 %v513
        %v875 = vunpack.c.h.b16 %v513
        %v876 = vunpack.c.l.b16 %v514
        %v877 = vunpack.c.h.b16 %v514
        %v878 = vunpack.c.l.b16 %v515
        %v879 = vunpack.c.h.b16 %v515
        %v880 = vunpack.c.l.b16 %v516
        %v881 = vunpack.c.h.b16 %v516
        %v882 = vunpack.c.l.b16 %v517
        %v883 = vunpack.c.h.b16 %v517
        %v884 = vunpack.c.l.b16 %v518
        %v885 = vunpack.c.h.b16 %v518
        %v886 = vunpack.c.l.b16 %v519
        %v887 = vunpack.c.h.b16 %v519
        %v888 = vunpack.c.l.b16 %v520
        %v889 = vunpack.c.h.b16 %v520
        %v890 = vunpack.c.l.b16 %v521
        %v891 = vunpack.c.h.b16 %v521
        %v892 = vunpack.c.l.b16 %v522
        %v893 = vunpack.c.h.b16 %v522
        %v894 = vunpack.c.l.b16 %v523
        %v895 = vunpack.c.h.b16 %v523
        %v896 = vunpack.c.l.b16 %v524
        %v897 = vunpack.c.h.b16 %v524
        %v898 = vunpack.c.l.b16 %v525
        %v899 = vunpack.c.h.b16 %v525
        %v900 = vunpack.c.l.b16 %v526
        %v901 = vunpack.c.h.b16 %v526
        %v902 = vunpack.c.l.b16 %v527
        %v903 = vunpack.c.h.b16 %v527
        %v904 = vunpack.c.l.b16 %v528
        %v905 = vunpack.c.h.b16 %v528
        %v906 = vunpack.c.l.b16 %v529
        %v907 = vunpack.c.h.b16 %v529
        %v908 = vunpack.c.l.b16 %v530
        %v909 = vunpack.c.h.b16 %v530
        %v910 = vunpack.c.l.b16 %v531
        %v911 = vunpack.c.h.b16 %v531
        %v912 = vunpack.c.l.b16 %v532
        %v913 = vunpack.c.h.b16 %v532
        %v914 = vunpack.c.l.b16 %v533
        %v915 = vunpack.c.h.b16 %v533
        %v916 = vunpack.c.l.b16 %v534
        %v917 = vunpack.c.h.b16 %v534
        %v918 = vunpack.c.l.b16 %v535
        %v919 = vunpack.c.h.b16 %v535
        %v920 = vunpack.c.l.b16 %v536
        %v921 = vunpack.c.h.b16 %v536
        %v922 = vunpack.c.l.b16 %v537
        %v923 = vunpack.c.h.b16 %v537
        %v924 = vunpack.c.l.b16 %v538
        %v925 = vunpack.c.h.b16 %v538
        %v926 = vunpack.c.l.b16 %v539
        %v927 = vunpack.c.h.b16 %v539
        %v928 = vunpack.c.l.b16 %v540
        %v929 = vunpack.c.h.b16 %v540
        %v930 = vunpack.c.l.b16 %v541
        %v931 = vunpack.c.h.b16 %v541
        %v932 = vunpack.c.l.b16 %v542
        %v933 = vunpack.c.h.b16 %v542
        %v934 = vunpack.c.l.b16 %v543
        %v935 = vunpack.c.h.b16 %v543
        %v936 = vunpack.c.l.b16 %v544
        %v937 = vunpack.c.h.b16 %v544
        %v938 = vunpack.c.l.b16 %v545
        %v939 = vunpack.c.h.b16 %v545
        %v940 = vunpack.c.l.b16 %v546
        %v941 = vunpack.c.h.b16 %v546
        %v942 = vunpack.c.l.b16 %v547
        %v943 = vunpack.c.h.b16 %v547
        %v944 = vunpack.c.l.b16 %v548
        %v945 = vunpack.c.h.b16 %v548
        %v946 = vunpack.c.l.b16 %v549
        %v947 = vunpack.c.h.b16 %v549
        %v948 = vpack.c.b16 %v696, %v692
        %v949 = vpack.c.b16 %v697, %v693
        %v950 = vpack.c.b16 %v698, %v694
        %v951 = vpack.c.b16 %v699, %v695
        %v952 = vpack.c.b16 %v704, %v700
        %v953 = vpack.c.b16 %v705, %v701
        %v954 = vpack.c.b16 %v706, %v702
        %v955 = vpack.c.b16 %v707, %v703
        %v956 = vpack.c.b16 %v712, %v708
        %v957 = vpack.c.b16 %v713, %v709
        %v958 = vpack.c.b16 %v714, %v710
        %v959 = vpack.c.b16 %v715, %v711
        %v960 = vpack.c.b16 %v720, %v716
        %v961 = vpack.c.b16 %v721, %v717
        %v962 = vpack.c.b16 %v722, %v718
        %v963 = vpack.c.b16 %v723, %v719
        %v964 = vpack.c.b16 %v728, %v724
        %v965 = vpack.c.b16 %v729, %v725
        %v966 = vpack.c.b16 %v730, %v726
        %v967 = vpack.c.b16 %v731, %v727
        %v968 = vpack.c.b16 %v736, %v732
        %v969 = vpack.c.b16 %v737, %v733
        %v970 = vpack.c.b16 %v738, %v734
        %v971 = vpack.c.b16 %v739, %v735
        %v972 = vpack.c.b16 %v744, %v740
        %v973 = vpack.c.b16 %v745, %v741
        %v974 = vpack.c.b16 %v746, %v742
        %v975 = vpack.c.b16 %v747, %v743
        %v976 = vpack.c.b16 %v752, %v748
        %v977 = vpack.c.b16 %v753, %v749
        %v978 = vpack.c.b16 %v754, %v750
        %v979 = vpack.c.b16 %v755, %v751
        %v980 = vpack.c.b16 %v760, %v756
        %v981 = vpack.c.b16 %v761, %v757
        %v982 = vpack.c.b16 %v762, %v758
        %v983 = vpack.c.b16 %v763, %v759
        %v984 = vpack.c.b16 %v768, %v764
        %v985 = vpack.c.b16 %v769, %v765
        %v986 = vpack.c.b16 %v770, %v766
        %v987 = vpack.c.b16 %v771, %v767
        %v988 = vpack.c.b16 %v776, %v772
        %v989 = vpack.c.b16 %v777, %v773
        %v990 = vpack.c.b16 %v778, %v774
        %v991 = vpack.c.b16 %v779, %v775
        %v992 = vpack.c.b16 %v784, %v780
        %v993 = vpack.c.b16 %v785, %v781
        %v994 = vpack.c.b16 %v786, %v782
        %v995 = vpack.c.b16 %v787, %v783
        %v996 = vpack.c.b16 %v792, %v788
        %v997 = vpack.c.b16 %v793, %v789
        %v998 = vpack.c.b16 %v794, %v790
        %v999 = vpack.c.b16 %v795, %v791
        %v1000 = vpack.c.b16 %v800, %v796
        %v1001 = vpack.c.b16 %v801, %v797
        %v1002 = vpack.c.b16 %v802, %v798
        %v1003 = vpack.c.b16 %v803, %v799
        %v1004 = vpack.c.b16 %v808, %v804
        %v1005 = vpack.c.b16 %v809, %v805
        %v1006 = vpack.c.b16 %v810, %v806
        %v1007 = vpack.c.b16 %v811, %v807
        %v1008 = vpack.c.b16 %v816, %v812
        %v1009 = vpack.c.b16 %v817, %v813
        %v1010 = vpack.c.b16 %v818, %v814
        %v1011 = vpack.c.b16 %v819, %v815
        %v1012 = vpack.c.b16 %v824, %v820
        %v1013 = vpack.c.b16 %v825, %v821
        %v1014 = vpack.c.b16 %v826, %v822
        %v1015 = vpack.c.b16 %v827, %v823
        %v1016 = vpack.c.b16 %v832, %v828
        %v1017 = vpack.c.b16 %v833, %v829
        %v1018 = vpack.c.b16 %v834, %v830
        %v1019 = vpack.c.b16 %v835, %v831
        %v1020 = vpack.c.b16 %v840, %v836
        %v1021 = vpack.c.b16 %v841, %v837
        %v1022 = vpack.c.b16 %v842, %v838
        %v1023 = vpack.c.b16 %v843, %v839
        %v1024 = vpack.c.b16 %v848, %v844
        %v1025 = vpack.c.b16 %v849, %v845
        %v1026 = vpack.c.b16 %v850, %v846
        %v1027 = vpack.c.b16 %v851, %v847
        %v1028 = vpack.c.b16 %v856, %v852
        %v1029 = vpack.c.b16 %v857, %v853
        %v1030 = vpack.c.b16 %v858, %v854
        %v1031 = vpack.c.b16 %v859, %v855
        %v1032 = vpack.c.b16 %v864, %v860
        %v1033 = vpack.c.b16 %v865, %v861
        %v1034 = vpack.c.b16 %v866, %v862
        %v1035 = vpack.c.b16 %v867, %v863
        %v1036 = vpack.c.b16 %v872, %v868
        %v1037 = vpack.c.b16 %v873, %v869
        %v1038 = vpack.c.b16 %v874, %v870
        %v1039 = vpack.c.b16 %v875, %v871
        %v1040 = vpack.c.b16 %v880, %v876
        %v1041 = vpack.c.b16 %v881, %v877
        %v1042 = vpack.c.b16 %v882, %v878
        %v1043 = vpack.c.b16 %v883, %v879
        %v1044 = vpack.c.b16 %v888, %v884
        %v1045 = vpack.c.b16 %v889, %v885
        %v1046 = vpack.c.b16 %v890, %v886
        %v1047 = vpack.c.b16 %v891, %v887
        %v1048 = vpack.c.b16 %v896, %v892
        %v1049 = vpack.c.b16 %v897, %v893
        %v1050 = vpack.c.b16 %v898, %v894
        %v1051 = vpack.c.b16 %v899, %v895
        %v1052 = vpack.c.b16 %v904, %v900
        %v1053 = vpack.c.b16 %v905, %v901
        %v1054 = vpack.c.b16 %v906, %v902
        %v1055 = vpack.c.b16 %v907, %v903
        %v1056 = vpack.c.b16 %v912, %v908
        %v1057 = vpack.c.b16 %v913, %v909
        %v1058 = vpack.c.b16 %v914, %v910
        %v1059 = vpack.c.b16 %v915, %v911
        %v1060 = vpack.c.b16 %v920, %v916
        %v1061 = vpack.c.b16 %v921, %v917
        %v1062 = vpack.c.b16 %v922, %v918
        %v1063 = vpack.c.b16 %v923, %v919
        %v1064 = vpack.c.b16 %v928, %v924
        %v1065 = vpack.c.b16 %v929, %v925
        %v1066 = vpack.c.b16 %v930, %v926
        %v1067 = vpack.c.b16 %v931, %v927
        %v1068 = vpack.c.b16 %v936, %v932
        %v1069 = vpack.c.b16 %v937, %v933
        %v1070 = vpack.c.b16 %v938, %v934
        %v1071 = vpack.c.b16 %v939, %v935
        %v1072 = vpack.c.b16 %v944, %v940
        %v1073 = vpack.c.b16 %v945, %v941
        %v1074 = vpack.c.b16 %v946, %v942
        %v1075 = vpack.c.b16 %v947, %v943
        %1204 = vmatpush.bf16.msra.mxu0 %v976
        %1205 = vmatpush.bf16.msra.mxu0 %v972
        %1206 = vmatpush.bf16.msra.mxu0 %v968
        %1207 = vmatpush.bf16.msra.mxu0 %v964
        %1208 = vmatpush.bf16.msra.mxu0 %v960
        %1209 = vmatpush.bf16.msra.mxu0 %v956
        %1210 = vmatpush.bf16.msra.mxu0 %v952
        %1211 = vmatpush.bf16.msra.mxu0 %v948
        %1212 = vmatmul.bf16.gmra.mxu0 %v556
        %v1213 = vpop.f32.mrf.mxu0
        %v1214 = vadd.f32 0.0, %v1213
        %v1215 = vpop.f32.mrf.mxu0
        %1216 = vdwg.mxu0
        %1217 = vmatpush.bf16.msra.mxu0 %v1008
        %1218 = vmatpush.bf16.msra.mxu0 %v1004
        %1219 = vmatpush.bf16.msra.mxu0 %v1000
        %1220 = vmatpush.bf16.msra.mxu0 %v996
        %1221 = vmatpush.bf16.msra.mxu0 %v992
        %1222 = vmatpush.bf16.msra.mxu0 %v988
        %1223 = vmatpush.bf16.msra.mxu0 %v984
        %1224 = vmatpush.bf16.msra.mxu0 %v980
        %1225 = vmatmul.bf16.gmra.mxu0 %v557
        %v1226 = vpop.f32.mrf.mxu0
        %v1227 = vadd.f32 %v1214, %v1226
        %v1228 = vpop.f32.mrf.mxu0
        %1229 = vdwg.mxu0
        %1230 = vmatpush.bf16.msra.mxu0 %v1040
        %1231 = vmatpush.bf16.msra.mxu0 %v1036
        %1232 = vmatpush.bf16.msra.mxu0 %v1032
        %1233 = vmatpush.bf16.msra.mxu0 %v1028
        %1234 = vmatpush.bf16.msra.mxu0 %v1024
        %1235 = vmatpush.bf16.msra.mxu0 %v1020
        %1236 = vmatpush.bf16.msra.mxu0 %v1016
        %1237 = vmatpush.bf16.msra.mxu0 %v1012
        %1238 = vmatmul.bf16.gmra.mxu0 %v558
        %v1239 = vpop.f32.mrf.mxu0
        %v1240 = vadd.f32 %v1227, %v1239
        %v1241 = vpop.f32.mrf.mxu0
        %1242 = vdwg.mxu0
        %1243 = vmatpush.bf16.msra.mxu0 %v1072
        %1244 = vmatpush.bf16.msra.mxu0 %v1068
        %1245 = vmatpush.bf16.msra.mxu0 %v1064
        %1246 = vmatpush.bf16.msra.mxu0 %v1060
        %1247 = vmatpush.bf16.msra.mxu0 %v1056
        %1248 = vmatpush.bf16.msra.mxu0 %v1052
        %1249 = vmatpush.bf16.msra.mxu0 %v1048
        %1250 = vmatpush.bf16.msra.mxu0 %v1044
        %1251 = vmatmul.bf16.gmra.mxu0 %v559
        %v1252 = vpop.f32.mrf.mxu0
        %v1253 = vadd.f32 %v1240, %v1252
        %v1254 = vpop.f32.mrf.mxu0
        %1255 = vdwg.mxu0
        %1256 = vmatpush.bf16.msra.mxu0 %v977
        %1257 = vmatpush.bf16.msra.mxu0 %v973
        %1258 = vmatpush.bf16.msra.mxu0 %v969
        %1259 = vmatpush.bf16.msra.mxu0 %v965
        %1260 = vmatpush.bf16.msra.mxu0 %v961
        %1261 = vmatpush.bf16.msra.mxu0 %v957
        %1262 = vmatpush.bf16.msra.mxu0 %v953
        %1263 = vmatpush.bf16.msra.mxu0 %v949
        %1264 = vmatmul.bf16.gmra.mxu0 %v556
        %v1265 = vpop.f32.mrf.mxu0
        %v1266 = vadd.f32 0.0, %v1265
        %v1267 = vpop.f32.mrf.mxu0
        %1268 = vdwg.mxu0
        %1269 = vmatpush.bf16.msra.mxu0 %v1009
        %1270 = vmatpush.bf16.msra.mxu0 %v1005
        %1271 = vmatpush.bf16.msra.mxu0 %v1001
        %1272 = vmatpush.bf16.msra.mxu0 %v997
        %1273 = vmatpush.bf16.msra.mxu0 %v993
        %1274 = vmatpush.bf16.msra.mxu0 %v989
        %1275 = vmatpush.bf16.msra.mxu0 %v985
        %1276 = vmatpush.bf16.msra.mxu0 %v981
        %1277 = vmatmul.bf16.gmra.mxu0 %v557
        %v1278 = vpop.f32.mrf.mxu0
        %v1279 = vadd.f32 %v1266, %v1278
        %v1280 = vpop.f32.mrf.mxu0
        %1281 = vdwg.mxu0
        %1282 = vmatpush.bf16.msra.mxu0 %v1041
        %1283 = vmatpush.bf16.msra.mxu0 %v1037
        %1284 = vmatpush.bf16.msra.mxu0 %v1033
        %1285 = vmatpush.bf16.msra.mxu0 %v1029
        %1286 = vmatpush.bf16.msra.mxu0 %v1025
        %1287 = vmatpush.bf16.msra.mxu0 %v1021
        %1288 = vmatpush.bf16.msra.mxu0 %v1017
        %1289 = vmatpush.bf16.msra.mxu0 %v1013
        %1290 = vmatmul.bf16.gmra.mxu0 %v558
        %v1291 = vpop.f32.mrf.mxu0
        %v1292 = vadd.f32 %v1279, %v1291
        %v1293 = vpop.f32.mrf.mxu0
        %1294 = vdwg.mxu0
        %1295 = vmatpush.bf16.msra.mxu0 %v1073
        %1296 = vmatpush.bf16.msra.mxu0 %v1069
        %1297 = vmatpush.bf16.msra.mxu0 %v1065
        %1298 = vmatpush.bf16.msra.mxu0 %v1061
        %1299 = vmatpush.bf16.msra.mxu0 %v1057
        %1300 = vmatpush.bf16.msra.mxu0 %v1053
        %1301 = vmatpush.bf16.msra.mxu0 %v1049
        %1302 = vmatpush.bf16.msra.mxu0 %v1045
        %1303 = vmatmul.bf16.gmra.mxu0 %v559
        %v1304 = vpop.f32.mrf.mxu0
        %v1305 = vadd.f32 %v1292, %v1304
        %v1306 = vpop.f32.mrf.mxu0
        %1307 = vdwg.mxu0
        %1308 = vmatpush.bf16.msra.mxu0 %v978
        %1309 = vmatpush.bf16.msra.mxu0 %v974
        %1310 = vmatpush.bf16.msra.mxu0 %v970
        %1311 = vmatpush.bf16.msra.mxu0 %v966
        %1312 = vmatpush.bf16.msra.mxu0 %v962
        %1313 = vmatpush.bf16.msra.mxu0 %v958
        %1314 = vmatpush.bf16.msra.mxu0 %v954
        %1315 = vmatpush.bf16.msra.mxu0 %v950
        %1316 = vmatmul.bf16.gmra.mxu0 %v556
        %v1317 = vpop.f32.mrf.mxu0
        %v1318 = vadd.f32 0.0, %v1317
        %v1319 = vpop.f32.mrf.mxu0
        %1320 = vdwg.mxu0
        %1321 = vmatpush.bf16.msra.mxu0 %v1010
        %1322 = vmatpush.bf16.msra.mxu0 %v1006
        %1323 = vmatpush.bf16.msra.mxu0 %v1002
        %1324 = vmatpush.bf16.msra.mxu0 %v998
        %1325 = vmatpush.bf16.msra.mxu0 %v994
        %1326 = vmatpush.bf16.msra.mxu0 %v990
        %1327 = vmatpush.bf16.msra.mxu0 %v986
        %1328 = vmatpush.bf16.msra.mxu0 %v982
        %1329 = vmatmul.bf16.gmra.mxu0 %v557
        %v1330 = vpop.f32.mrf.mxu0
        %v1331 = vadd.f32 %v1318, %v1330
        %v1332 = vpop.f32.mrf.mxu0
        %1333 = vdwg.mxu0
        %1334 = vmatpush.bf16.msra.mxu0 %v1042
        %1335 = vmatpush.bf16.msra.mxu0 %v1038
        %1336 = vmatpush.bf16.msra.mxu0 %v1034
        %1337 = vmatpush.bf16.msra.mxu0 %v1030
        %1338 = vmatpush.bf16.msra.mxu0 %v1026
        %1339 = vmatpush.bf16.msra.mxu0 %v1022
        %1340 = vmatpush.bf16.msra.mxu0 %v1018
        %1341 = vmatpush.bf16.msra.mxu0 %v1014
        %1342 = vmatmul.bf16.gmra.mxu0 %v558
        %v1343 = vpop.f32.mrf.mxu0
        %v1344 = vadd.f32 %v1331, %v1343
        %v1345 = vpop.f32.mrf.mxu0
        %1346 = vdwg.mxu0
        %1347 = vmatpush.bf16.msra.mxu0 %v1074
        %1348 = vmatpush.bf16.msra.mxu0 %v1070
        %1349 = vmatpush.bf16.msra.mxu0 %v1066
        %1350 = vmatpush.bf16.msra.mxu0 %v1062
        %1351 = vmatpush.bf16.msra.mxu0 %v1058
        %1352 = vmatpush.bf16.msra.mxu0 %v1054
        %1353 = vmatpush.bf16.msra.mxu0 %v1050
        %1354 = vmatpush.bf16.msra.mxu0 %v1046
        %1355 = vmatmul.bf16.gmra.mxu0 %v559
        %v1356 = vpop.f32.mrf.mxu0
        %v1357 = vadd.f32 %v1344, %v1356
        %v1358 = vpop.f32.mrf.mxu0
        %1359 = vdwg.mxu0
        %1360 = vmatpush.bf16.msra.mxu0 %v979
        %1361 = vmatpush.bf16.msra.mxu0 %v975
        %1362 = vmatpush.bf16.msra.mxu0 %v971
        %1363 = vmatpush.bf16.msra.mxu0 %v967
        %1364 = vmatpush.bf16.msra.mxu0 %v963
        %1365 = vmatpush.bf16.msra.mxu0 %v959
        %1366 = vmatpush.bf16.msra.mxu0 %v955
        %1367 = vmatpush.bf16.msra.mxu0 %v951
        %1368 = vmatmul.bf16.gmra.mxu0 %v556
        %v1369 = vpop.f32.mrf.mxu0
        %v1370 = vadd.f32 0.0, %v1369
        %v1371 = vpop.f32.mrf.mxu0
        %1372 = vdwg.mxu0
        %1373 = vmatpush.bf16.msra.mxu0 %v1011
        %1374 = vmatpush.bf16.msra.mxu0 %v1007
        %1375 = vmatpush.bf16.msra.mxu0 %v1003
        %1376 = vmatpush.bf16.msra.mxu0 %v999
        %1377 = vmatpush.bf16.msra.mxu0 %v995
        %1378 = vmatpush.bf16.msra.mxu0 %v991
        %1379 = vmatpush.bf16.msra.mxu0 %v987
        %1380 = vmatpush.bf16.msra.mxu0 %v983
        %1381 = vmatmul.bf16.gmra.mxu0 %v557
        %v1382 = vpop.f32.mrf.mxu0
        %v1383 = vadd.f32 %v1370, %v1382
        %v1384 = vpop.f32.mrf.mxu0
        %1385 = vdwg.mxu0
        %1386 = vmatpush.bf16.msra.mxu0 %v1043
        %1387 = vmatpush.bf16.msra.mxu0 %v1039
        %1388 = vmatpush.bf16.msra.mxu0 %v1035
        %1389 = vmatpush.bf16.msra.mxu0 %v1031
        %1390 = vmatpush.bf16.msra.mxu0 %v1027
        %1391 = vmatpush.bf16.msra.mxu0 %v1023
        %1392 = vmatpush.bf16.msra.mxu0 %v1019
        %1393 = vmatpush.bf16.msra.mxu0 %v1015
        %1394 = vmatmul.bf16.gmra.mxu0 %v558
        %v1395 = vpop.f32.mrf.mxu0
        %v1396 = vadd.f32 %v1383, %v1395
        %v1397 = vpop.f32.mrf.mxu0
        %1398 = vdwg.mxu0
        %1399 = vmatpush.bf16.msra.mxu0 %v1075
        %1400 = vmatpush.bf16.msra.mxu0 %v1071
        %1401 = vmatpush.bf16.msra.mxu0 %v1067
        %1402 = vmatpush.bf16.msra.mxu0 %v1063
        %1403 = vmatpush.bf16.msra.mxu0 %v1059
        %1404 = vmatpush.bf16.msra.mxu0 %v1055
        %1405 = vmatpush.bf16.msra.mxu0 %v1051
        %1406 = vmatpush.bf16.msra.mxu0 %v1047
        %1407 = vmatmul.bf16.gmra.mxu0 %v559
        %v1408 = vpop.f32.mrf.mxu0
        %v1409 = vadd.f32 %v1396, %v1408
        %v1410 = vpop.f32.mrf.mxu0
        %1411 = vdwg.mxu0
        %1412 = vst [vmem:[%s418] sm:$0xff] %v1253
        %1413 = vst [vmem:[%s418 + $0x8] sm:$0xff] %v1305
        %1414 = vst [vmem:[%s418 + $0x10] sm:$0xff] %v1357
        %1415 = vst [vmem:[%s418 + $0x18] sm:$0xff] %v1409
        %s1416 = smul.u32 4, %s13
        %p1417 = scmp.lt.s32.totalorder %s1416, 15
        %s1418 = scalar_select %p1417, %s1416, 15
        %s1419 = smul.addr %s1418, 8
        %s1420 = scalar_lea.vmem %s2, %s1419
        // Predicated region
        $region52: #{yolo3_forward.17} parent=46 // pred_check
          %p1421 = pneg %p78
        $region53: #{yolo3_forward.17} parent=46 // pred_check_branch
          %1423 = sbr.rel (%p1421) target = $region55
        $region54: #{yolo3_forward.17} parent=46 // pred_region
          %s1424 = smul.u32 4, %s13
        $region55: #{yolo3_forward.17} parent=46 // pred_fallthru
          _
      $region47: #{yolo3_forward.17} parent=5 // pred_fallthru
        _
      %p1425 = scmp.le.s32.totalorder 2, %s8
      // Predicated region
      $region56: #{yolo3_forward.17} parent=5 // pred_check
        %p1426 = pneg %p1425
      $region57: #{yolo3_forward.17} parent=5 // pred_check_branch
        %1428 = sbr.rel (%p1426) target = $region59
      $region58: #{yolo3_forward.17} parent=5 // pred_region
        %s1429 = ssub.s32 %s8, 2
        // Predicated region
        $region60: #{yolo3_forward.17} parent=58 // pred_check
          %p1430 = pneg %p84
        $region61: #{yolo3_forward.17} parent=58 // pred_check_branch
          %1432 = sbr.rel (%p1430) target = $region63
        $region62: #{yolo3_forward.17} parent=58 // pred_region
          %s1433 = smul.u32 4, %s14
          %p1434 = scmp.lt.s32.totalorder %s1433, 15
          %s1435 = scalar_select %p1434, %s1433, 15
          %s1436 = smul.addr %s1435, 8
          %s1437 = scalar_lea.vmem %s2, %s1436
        $region63: #{yolo3_forward.17} parent=58 // pred_fallthru
          _
      $region59: #{yolo3_forward.17} parent=5 // pred_fallthru
        _
    $region6: #{yolo3_forward.17} parent=1 // loop_footer
      %s12 = sadd.s32 1, %s8
    $region7: #{yolo3_forward.17} parent=1 // loop_footer_branch
      %7 = sbr.rel target = $region3
    $region8: #{yolo3_forward.17} parent=1 // loop_exit
      _

// kernel: yolo3_forward.19
$region0: #{yolo3_forward.19}
  #allocation0 [shape = 'u32[]', space=smem, size = 0x4, offset = 0x4, fixed_abs, tag = 'smem constant byte address 0x4 - core index']
  #allocation1 [shape = 'u32[72,128]{1,0:T(1,128)}', space=vmem, size = 0x9000, scoped, tag = 'internal scratch']
  %s0 = inlined_call_operand.vmem [shape: f32[2,8,3072], index: 0, kind: input, shape index: {}]
  %s1 = inlined_call_operand.vmem [shape: f32[4,3072], index: 1, kind: input, shape index: {}]
  %s2 = inlined_call_operand.vmem [shape: f32[2,8,3072], index: 2, kind: output, shape index: {}]
  %s3 = sld [smem:[#allocation0]]
  $region83: #{yolo3_forward.19} parent=0
    _
  %s5 = ssub.s32 1, %s3
  %s6 = scalar_select 0, %s5, %s3
  $region1: #{yolo3_forward.19} parent=0
    #allocation2 [shape = 'u8[65536]{0}', space=vmem, size = 0x10000, scoped, tag = 'input window, operand 0']
    #allocation3 [shape = 'u8[65536]{0}', space=vmem, size = 0x10000, scoped, tag = 'output window, operand 0']
    loop: start=0, step=1, limit=8
    $region2: #{yolo3_forward.19} parent=1 // loop_pre_header
      _
    $region3: #{yolo3_forward.19} parent=1 // loop_header
      %s8 = sphi 0, %s12
      %p9 = scmp.ge.s32.totalorder %s8, 8
      %s18 = sphi 0, %s20
      %s21 = sphi 0, %s18
      %s22 = sphi 0, %s21
      %s38 = sphi 0, %s22
      %s44 = sphi 0, %s46
      %s47 = sphi 0, %s44
      %s48 = sphi 0, %s47
      %s64 = sphi 0, %s48
      %s70 = sphi 0, %s72
      %s73 = sphi 0, %s70
      %s74 = sphi 0, %s73
      %s90 = sphi 0, %s74
    $region4: #{yolo3_forward.19} parent=1 // loop_header_branch
      %11 = sbr.rel (%p9) target = $region8
    $region5: #{yolo3_forward.19} parent=1 // loop_body
      %s13 = ssub.s32 %s8, 1
      %s14 = ssub.s32 %s8, 2
      %s15 = sadd.s32 %s8, 1
      %s16 = ssub.s32 %s8, %s15
      %p17 = scmp.eq.s32.totalorder %s16, 0
      %s19 = sadd.s32 %s18, 1
      %s20 = scalar_select %p17, %s18, %s19
      %p23 = pneg %p17
      %p24 = scmp.eq.s32.totalorder %s8, 5
      %p25 = por %p23, %p24
      %p26 = scmp.ne.s32.totalorder %s18, %s21
      %p27 = scmp.eq.s32.totalorder %s8, 0
      %p28 = por %p26, %p27
      %p29 = scmp.ne.s32.totalorder %s18, %s21
      %p30 = scmp.eq.s32.totalorder %s13, 5
      %p31 = por %p29, %p30
      %p32 = scmp.ne.s32.totalorder %s21, %s22
      %p33 = scmp.eq.s32.totalorder %s13, 0
      %p34 = por %p32, %p33
      %p35 = scmp.ne.s32.totalorder %s21, %s22
      %p36 = scmp.eq.s32.totalorder %s14, 5
      %p37 = por %p35, %p36
      %p39 = scmp.ne.s32.totalorder %s22, %s38
      %p40 = scmp.eq.s32.totalorder %s14, 0
      %p41 = por %p39, %p40
      %s42 = ssub.s32 %s8, %s15
      %p43 = scmp.eq.s32.totalorder %s42, 0
      %s45 = sadd.s32 %s44, 1
      %s46 = scalar_select %p43, %s44, %s45
      %p49 = pneg %p43
      %p50 = scmp.eq.s32.totalorder %s8, 5
      %p51 = por %p49, %p50
      %p52 = scmp.ne.s32.totalorder %s44, %s47
      %p53 = scmp.eq.s32.totalorder %s8, 0
      %p54 = por %p52, %p53
      %p55 = scmp.ne.s32.totalorder %s44, %s47
      %p56 = scmp.eq.s32.totalorder %s13, 5
      %p57 = por %p55, %p56
      %p58 = scmp.ne.s32.totalorder %s47, %s48
      %p59 = scmp.eq.s32.totalorder %s13, 0
      %p60 = por %p58, %p59
      %p61 = scmp.ne.s32.totalorder %s47, %s48
      %p62 = scmp.eq.s32.totalorder %s14, 5
      %p63 = por %p61, %p62
      %p65 = scmp.ne.s32.totalorder %s48, %s64
      %p66 = scmp.eq.s32.totalorder %s14, 0
      %p67 = por %p65, %p66
      %s68 = ssub.s32 %s8, %s15
      %p69 = scmp.eq.s32.totalorder %s68, 0
      %s71 = sadd.s32 %s70, 1
      %s72 = scalar_select %p69, %s70, %s71
      %p75 = pneg %p69
      %p76 = scmp.eq.s32.totalorder %s8, 5
      %p77 = por %p75, %p76
      %p78 = scmp.ne.s32.totalorder %s70, %s73
      %p79 = scmp.eq.s32.totalorder %s8, 0
      %p80 = por %p78, %p79
      %p81 = scmp.ne.s32.totalorder %s70, %s73
      %p82 = scmp.eq.s32.totalorder %s13, 5
      %p83 = por %p81, %p82
      %p84 = scmp.ne.s32.totalorder %s73, %s74
      %p85 = scmp.eq.s32.totalorder %s13, 0
      %p86 = por %p84, %p85
      %p87 = scmp.ne.s32.totalorder %s73, %s74
      %p88 = scmp.eq.s32.totalorder %s14, 5
      %p89 = por %p87, %p88
      %p91 = scmp.ne.s32.totalorder %s74, %s90
      %p92 = scmp.eq.s32.totalorder %s14, 0
      %p93 = por %p91, %p92
      %p94 = scmp.le.s32.totalorder 1, %s8
      %p95 = scmp.lt.s32.totalorder %s8, 7
      %p96 = pnand %p94, %p95
      %p97 = pneg %p96
      // Predicated region
      $region9: #{yolo3_forward.19} parent=5 // pred_check
        _
      $region10: #{yolo3_forward.19} parent=5 // pred_check_branch
        %99 = sbr.rel (%p96) target = $region12
      $region11: #{yolo3_forward.19} parent=5 // pred_region
        %s100 = ssub.s32 %s8, 1
      $region12: #{yolo3_forward.19} parent=5 // pred_fallthru
        _
      %p101 = scmp.lt.s32.totalorder %s8, 6
      // Predicated region
      $region13: #{yolo3_forward.19} parent=5 // pred_check
        %p102 = pneg %p101
      $region14: #{yolo3_forward.19} parent=5 // pred_check_branch
        %104 = sbr.rel (%p102) target = $region16
      $region15: #{yolo3_forward.19} parent=5 // pred_region
        // Predicated region
        $region17: #{yolo3_forward.19} parent=15 // pred_check
          %p105 = pneg %p28
        $region18: #{yolo3_forward.19} parent=15 // pred_check_branch
          %107 = sbr.rel (%p105) target = $region20
        $region19: #{yolo3_forward.19} parent=15 // pred_region
          %s108 = sand.u32 %s18, 1
          %s109 = sand.u32 %s18, 1
          %s110 = smul.addr %s109, 64
          %s111 = scalar_lea.vmem [#allocation2], %s110
          %s112 = smul.u32 4, %s8
          %s113 = smul.addr %s112, 8
          %s114 = scalar_lea.vmem %s0, %s113
          // Predicated region
          $region21: #{yolo3_forward.19} parent=19 // pred_check
            _
          $region22: #{yolo3_forward.19} parent=19 // pred_check_branch
            %116 = sbr.rel (0) target = $region24
          $region23: #{yolo3_forward.19} parent=19 // pred_region
            // Predicated region
            $region25: #{yolo3_forward.19} parent=23 // pred_check
              _
            $region26: #{yolo3_forward.19} parent=23 // pred_check_branch
              %118 = sbr.rel (0) target = $region28
            $region27: #{yolo3_forward.19} parent=23 // pred_region
              loop: start=0, step=1, limit=1
              $region29: #{yolo3_forward.19} parent=27 // loop_pre_header
                _
              $region30: #{yolo3_forward.19} parent=27 // loop_header
                %s120 = sphi 0, %s124
                %p121 = scmp.ge.s32.totalorder %s120, 1
                %s125 = sphi %s114, %s114
                %s126 = sphi %s111, %s111
              $region31: #{yolo3_forward.19} parent=27 // loop_header_branch
                %123 = sbr.rel (%p121) target = $region35
              $region32: #{yolo3_forward.19} parent=27 // loop_body
                %v127 = vld [vmem:[%s125] sm:$0xff]
                %128 = vst [vmem:[%s126] sm:$0xff] %v127
                %v129 = vld [vmem:[%s125 + $0x8] sm:$0xff]
                %130 = vst [vmem:[%s126 + $0x8] sm:$0xff] %v129
                %v131 = vld [vmem:[%s125 + $0x10] sm:$0xff]
                %132 = vst [vmem:[%s126 + $0x10] sm:$0xff] %v131
                %v133 = vld [vmem:[%s125 + $0x18] sm:$0xff]
                %134 = vst [vmem:[%s126 + $0x18] sm:$0xff] %v133
                %v135 = vld [vmem:[%s125 + $0xc0] sm:$0xff]
                %136 = vst [vmem:[%s126 + $0x20] sm:$0xff] %v135
                %v137 = vld [vmem:[%s125 + $0xc8] sm:$0xff]
                %138 = vst [vmem:[%s126 + $0x28] sm:$0xff] %v137
                %v139 = vld [vmem:[%s125 + $0xd0] sm:$0xff]
                %140 = vst [vmem:[%s126 + $0x30] sm:$0xff] %v139
                %v141 = vld [vmem:[%s125 + $0xd8] sm:$0xff]
                %142 = vst [vmem:[%s126 + $0x38] sm:$0xff] %v141
              $region33: #{yolo3_forward.19} parent=27 // loop_footer
                %s124 = sadd.s32 1, %s120
              $region34: #{yolo3_forward.19} parent=27 // loop_footer_branch
                %119 = sbr.rel target = $region30
              $region35: #{yolo3_forward.19} parent=27 // loop_exit
                _
            $region28: #{yolo3_forward.19} parent=23 // pred_fallthru
              _
            // Predicated region
            $region36: #{yolo3_forward.19} parent=23 // pred_check
              _
            $region37: #{yolo3_forward.19} parent=23 // pred_check_branch
              %144 = sbr.rel target = $region39
            $region38: #{yolo3_forward.19} parent=23 // pred_region
              _
            $region39: #{yolo3_forward.19} parent=23 // pred_fallthru
              _
          $region24: #{yolo3_forward.19} parent=19 // pred_fallthru
            _
          %145 = vnop
        $region20: #{yolo3_forward.19} parent=15 // pred_fallthru
          _
        // Predicated region
        $region40: #{yolo3_forward.19} parent=15 // pred_check
          %p146 = pneg %p54
        $region41: #{yolo3_forward.19} parent=15 // pred_check_branch
          %148 = sbr.rel (%p146) target = $region43
        $region42: #{yolo3_forward.19} parent=15 // pred_region
          %s149 = smul.u32 4, %s8
          %p150 = scmp.lt.s32.totalorder %s149, 23
          %s151 = scalar_select %p150, %s149, 23
          %s152 = smul.addr %s151, 4
          %s153 = scalar_lea.vmem %s1, %s152
          %s154 = smul.u32 4, %s8
        $region43: #{yolo3_forward.19} parent=15 // pred_fallthru
          _
      $region16: #{yolo3_forward.19} parent=5 // pred_fallthru
        _
      %p155 = scmp.le.s32.totalorder 1, %s8
      %p156 = scmp.lt.s32.totalorder %s8, 7
      %p157 = pnand %p155, %p156
      %p158 = pneg %p157
      // Predicated region
      $region44: #{yolo3_forward.19} parent=5 // pred_check
        _
      $region45: #{yolo3_forward.19} parent=5 // pred_check_branch
        %160 = sbr.rel (%p157) target = $region47
      $region46: #{yolo3_forward.19} parent=5 // pred_region
        %s161 = ssub.s32 %s8, 1
        %s162 = sand.u32 %s21, 1
        %s163 = sand.u32 %s21, 1
        %s164 = smul.addr %s163, 64
        %s165 = scalar_lea.vmem [#allocation2], %s164
        // Predicated region
        $region48: #{yolo3_forward.19} parent=46 // pred_check
          %p166 = pneg %p34
        $region49: #{yolo3_forward.19} parent=46 // pred_check_branch
          %168 = sbr.rel (%p166) target = $region51
        $region50: #{yolo3_forward.19} parent=46 // pred_region
          _
        $region51: #{yolo3_forward.19} parent=46 // pred_fallthru
          _
        %s169 = sand.u32 %s21, 1
        %s170 = sand.u32 %s21, 1
        %s171 = smul.addr %s170, 64
        %s172 = scalar_lea.vmem [#allocation2], %s171
        %p173 = pneg %p34
        %p174 = pneg %p31
        %s175 = smul.u32 4, %s13
        %p176 = scmp.lt.s32.totalorder %s175, 23
        %s177 = scalar_select %p176, %s175, 23
        %s178 = smul.addr %s177, 4
        %s179 = scalar_lea.vmem %s1, %s178
        %p180 = pneg %p60
        %p181 = pneg %p57
        %p182 = pneg %p86
        %p183 = pneg %p83
        %s184 = sand.u32 %s73, 1
        %s185 = sand.u32 %s73, 1
        %s186 = smul.addr %s185, 64
        %s187 = scalar_lea.vmem [#allocation3], %s186
        %s188 = smul.u32 4, %s13
        %s189 = smul.u32 4, %s13
        %p190 = scmp.lt.s32.totalorder %s189, 23
        %s191 = scalar_select %p190, %s189, 23
        %s192 = smul.addr %s191, 4
        %s193 = scalar_lea.vmem %s1, %s192
        %s194 = smul.u32 4, %s13
        %s195 = smul.u32 4, %s13
        %v196 = vld [vmem:[%s165] sm:$0x3]
        %v197 = vld [vmem:[%s165 + $0x8] sm:$0x3]
        %v198 = vld [vmem:[%s165 + $0x10] sm:$0x3]
        %v199 = vld [vmem:[%s165 + $0x18] sm:$0x3]
        %v200 = vld [vmem:[%s165 + $0x20] sm:$0x3]
        %v201 = vld [vmem:[%s165 + $0x28] sm:$0x3]
        %v202 = vld [vmem:[%s165 + $0x30] sm:$0x3]
        %v203 = vld [vmem:[%s165 + $0x38] sm:$0x3]
        %v204 = vxor.u32 %v196, 2147483648
        %v205 = vxor.u32 %v197, 2147483648
        %v206 = vxor.u32 %v198, 2147483648
        %v207 = vxor.u32 %v199, 2147483648
        %v208 = vxor.u32 %v200, 2147483648
        %v209 = vxor.u32 %v201, 2147483648
        %v210 = vxor.u32 %v202, 2147483648
        %v211 = vxor.u32 %v203, 2147483648
        %v212 = vmul.f32 %v204, 1.442695
        %v213 = vpow.pop %v212
        %v214 = vmul.f32 %v205, 1.442695
        %v215 = vpow.pop %v214
        %v216 = vmul.f32 %v206, 1.442695
        %v217 = vpow.pop %v216
        %v218 = vmul.f32 %v207, 1.442695
        %v219 = vpow.pop %v218
        %v220 = vmul.f32 %v208, 1.442695
        %v221 = vpow.pop %v220
        %v222 = vmul.f32 %v209, 1.442695
        %v223 = vpow.pop %v222
        %v224 = vmul.f32 %v210, 1.442695
        %v225 = vpow.pop %v224
        %v226 = vmul.f32 %v211, 1.442695
        %v227 = vpow.pop %v226
        %v228 = vadd.f32 %v213, 1.0
        %v229 = vadd.f32 %v215, 1.0
        %v230 = vadd.f32 %v217, 1.0
        %v231 = vadd.f32 %v219, 1.0
        %v232 = vadd.f32 %v221, 1.0
        %v233 = vadd.f32 %v223, 1.0
        %v234 = vadd.f32 %v225, 1.0
        %v235 = vadd.f32 %v227, 1.0
        %v236 = vrcp.pop %v228
        %v237 = vmul.f32 %v228, %v236
        %v238 = vsub.f32 1.0, %v237
        %v239 = vmul.f32 %v236, %v238
        %v240 = vadd.f32 %v236, %v239
        %vm241 = vweird.f32 %v228
        %vm242 = vweird.f32 %v236
        %vm243 = vmor %vm241, %vm242
        %v244 = vsel %vm243, %v236, %v240
        %v245 = vand.u32 2147483647, %v228
        %vm246 = vcmp.eq.f32.partialorder %v245, 8.507059e+37
        %v247 = vand.u32 %v228, 2147483648
        %v248 = vor.u32 1.1754944e-38, %v247
        %v249 = vsel %vm246, %v248, %v244
        %v250 = vmul.f32 1.0, %v249
        %v251 = vrcp.pop %v229
        %v252 = vmul.f32 %v229, %v251
        %v253 = vsub.f32 1.0, %v252
        %v254 = vmul.f32 %v251, %v253
        %v255 = vadd.f32 %v251, %v254
        %vm256 = vweird.f32 %v229
        %vm257 = vweird.f32 %v251
        %vm258 = vmor %vm256, %vm257
        %v259 = vsel %vm258, %v251, %v255
        %v260 = vand.u32 2147483647, %v229
        %vm261 = vcmp.eq.f32.partialorder %v260, 8.507059e+37
        %v262 = vand.u32 %v229, 2147483648
        %v263 = vor.u32 1.1754944e-38, %v262
        %v264 = vsel %vm261, %v263, %v259
        %v265 = vmul.f32 1.0, %v264
        %v266 = vrcp.pop %v230
        %v267 = vmul.f32 %v230, %v266
        %v268 = vsub.f32 1.0, %v267
        %v269 = vmul.f32 %v266, %v268
        %v270 = vadd.f32 %v266, %v269
        %vm271 = vweird.f32 %v230
        %vm272 = vweird.f32 %v266
        %vm273 = vmor %vm271, %vm272
        %v274 = vsel %vm273, %v266, %v270
        %v275 = vand.u32 2147483647, %v230
        %vm276 = vcmp.eq.f32.partialorder %v275, 8.507059e+37
        %v277 = vand.u32 %v230, 2147483648
        %v278 = vor.u32 1.1754944e-38, %v277
        %v279 = vsel %vm276, %v278, %v274
        %v280 = vmul.f32 1.0, %v279
        %v281 = vrcp.pop %v231
        %v282 = vmul.f32 %v231, %v281
        %v283 = vsub.f32 1.0, %v282
        %v284 = vmul.f32 %v281, %v283
        %v285 = vadd.f32 %v281, %v284
        %vm286 = vweird.f32 %v231
        %vm287 = vweird.f32 %v281
        %vm288 = vmor %vm286, %vm287
        %v289 = vsel %vm288, %v281, %v285
        %v290 = vand.u32 2147483647, %v231
        %vm291 = vcmp.eq.f32.partialorder %v290, 8.507059e+37
        %v292 = vand.u32 %v231, 2147483648
        %v293 = vor.u32 1.1754944e-38, %v292
        %v294 = vsel %vm291, %v293, %v289
        %v295 = vmul.f32 1.0, %v294
        %v296 = vrcp.pop %v232
        %v297 = vmul.f32 %v232, %v296
        %v298 = vsub.f32 1.0, %v297
        %v299 = vmul.f32 %v296, %v298
        %v300 = vadd.f32 %v296, %v299
        %vm301 = vweird.f32 %v232
        %vm302 = vweird.f32 %v296
        %vm303 = vmor %vm301, %vm302
        %v304 = vsel %vm303, %v296, %v300
        %v305 = vand.u32 2147483647, %v232
        %vm306 = vcmp.eq.f32.partialorder %v305, 8.507059e+37
        %v307 = vand.u32 %v232, 2147483648
        %v308 = vor.u32 1.1754944e-38, %v307
        %v309 = vsel %vm306, %v308, %v304
        %v310 = vmul.f32 1.0, %v309
        %v311 = vrcp.pop %v233
        %v312 = vmul.f32 %v233, %v311
        %v313 = vsub.f32 1.0, %v312
        %v314 = vmul.f32 %v311, %v313
        %v315 = vadd.f32 %v311, %v314
        %vm316 = vweird.f32 %v233
        %vm317 = vweird.f32 %v311
        %vm318 = vmor %vm316, %vm317
        %v319 = vsel %vm318, %v311, %v315
        %v320 = vand.u32 2147483647, %v233
        %vm321 = vcmp.eq.f32.partialorder %v320, 8.507059e+37
        %v322 = vand.u32 %v233, 2147483648
        %v323 = vor.u32 1.1754944e-38, %v322
        %v324 = vsel %vm321, %v323, %v319
        %v325 = vmul.f32 1.0, %v324
        %v326 = vrcp.pop %v234
        %v327 = vmul.f32 %v234, %v326
        %v328 = vsub.f32 1.0, %v327
        %v329 = vmul.f32 %v326, %v328
        %v330 = vadd.f32 %v326, %v329
        %vm331 = vweird.f32 %v234
        %vm332 = vweird.f32 %v326
        %vm333 = vmor %vm331, %vm332
        %v334 = vsel %vm333, %v326, %v330
        %v335 = vand.u32 2147483647, %v234
        %vm336 = vcmp.eq.f32.partialorder %v335, 8.507059e+37
        %v337 = vand.u32 %v234, 2147483648
        %v338 = vor.u32 1.1754944e-38, %v337
        %v339 = vsel %vm336, %v338, %v334
        %v340 = vmul.f32 1.0, %v339
        %v341 = vrcp.pop %v235
        %v342 = vmul.f32 %v235, %v341
        %v343 = vsub.f32 1.0, %v342
        %v344 = vmul.f32 %v341, %v343
        %v345 = vadd.f32 %v341, %v344
        %vm346 = vweird.f32 %v235
        %vm347 = vweird.f32 %v341
        %vm348 = vmor %vm346, %vm347
        %v349 = vsel %vm348, %v341, %v345
        %v350 = vand.u32 2147483647, %v235
        %vm351 = vcmp.eq.f32.partialorder %v350, 8.507059e+37
        %v352 = vand.u32 %v235, 2147483648
        %v353 = vor.u32 1.1754944e-38, %v352
        %v354 = vsel %vm351, %v353, %v349
        %v355 = vmul.f32 1.0, %v354
        %v356 = vld [vmem:[%s193] sm:$0x33]
        %v357 = vld [vmem:[%s193 + $0x8] sm:$0x33]
        %360 = vst [vmem:[#allocation1] ss:$2 sm:$0xff] %v356
        %s361 = scalar_lea.vmem [#allocation1], 16
        %362 = vst [vmem:[%s361] ss:$2 sm:$0xff] %v357
        %v363 = vld.sshfl [vmem:[#allocation1] sm:$0xff pattern:$0x75316420]
        %v364 = vld.sshfl [vmem:[#allocation1 + $0x8] sm:$0xff pattern:$0x75316420]
        %v365 = vld.sshfl [vmem:[#allocation1 + $0x10] sm:$0xff pattern:$0x75316420]
        %v366 = vld.sshfl [vmem:[#allocation1 + $0x18] sm:$0xff pattern:$0x75316420]
        %s367 = scalar_lea.vmem [#allocation1], 32
        %368 = vst [vmem:[%s367] ss:$2 sm:$0xff] %v356
        %s369 = scalar_lea.vmem [#allocation1], 48
        %370 = vst [vmem:[%s369] ss:$2 sm:$0xff] %v357
        %v371 = vld.sshfl [vmem:[#allocation1 + $0x20] sm:$0xff pattern:$0x75316420]
        %v372 = vld.sshfl [vmem:[#allocation1 + $0x28] sm:$0xff pattern:$0x75316420]
        %v373 = vld.sshfl [vmem:[#allocation1 + $0x30] sm:$0xff pattern:$0x75316420]
        %v374 = vld.sshfl [vmem:[#allocation1 + $0x38] sm:$0xff pattern:$0x75316420]
        %v383 = vadd.f32 %v250, %v363
        %v384 = vadd.f32 %v265, %v364
        %v385 = vadd.f32 %v280, %v365
        %v386 = vadd.f32 %v295, %v366
        %v387 = vadd.f32 %v310, %v371
        %v388 = vadd.f32 %v325, %v372
        %v389 = vadd.f32 %v340, %v373
        %v390 = vadd.f32 %v355, %v374
        %vm391 = vcmp.ne.f32.partialorder %v383, %v383
        %vm392 = vcmp.ne.f32.partialorder %v384, %v384
        %vm393 = vcmp.ne.f32.partialorder %v385, %v385
        %vm394 = vcmp.ne.f32.partialorder %v386, %v386
        %vm395 = vcmp.ne.f32.partialorder %v387, %v387
        %vm396 = vcmp.ne.f32.partialorder %v388, %v388
        %vm397 = vcmp.ne.f32.partialorder %v389, %v389
        %vm398 = vcmp.ne.f32.partialorder %v390, %v390
        %v399 = vsel %vm391, 0.0, %v383
        %v400 = vsel %vm392, 0.0, %v384
        %v401 = vsel %vm393, 0.0, %v385
        %v402 = vsel %vm394, 0.0, %v386
        %v403 = vsel %vm395, 0.0, %v387
        %v404 = vsel %vm396, 0.0, %v388
        %v405 = vsel %vm397, 0.0, %v389
        %v406 = vsel %vm398, 0.0, %v390
        %v407 = vmax.f32 %v399, -3.4028235e+38
        %v408 = vmax.f32 %v400, -3.4028235e+38
        %v409 = vmax.f32 %v401, -3.4028235e+38
        %v410 = vmax.f32 %v402, -3.4028235e+38
        %v411 = vmax.f32 %v403, -3.4028235e+38
        %v412 = vmax.f32 %v404, -3.4028235e+38
        %v413 = vmax.f32 %v405, -3.4028235e+38
        %v414 = vmax.f32 %v406, -3.4028235e+38
        %v415 = vmin.f32 %v407, 3.4028235e+38
        %v416 = vmin.f32 %v408, 3.4028235e+38
        %v417 = vmin.f32 %v409, 3.4028235e+38
        %v418 = vmin.f32 %v410, 3.4028235e+38
        %v419 = vmin.f32 %v411, 3.4028235e+38
        %v420 = vmin.f32 %v412, 3.4028235e+38
        %v421 = vmin.f32 %v413, 3.4028235e+38
        %v422 = vmin.f32 %v414, 3.4028235e+38
        %423 = vst [vmem:[%s187] sm:$0x3] %v415
        %424 = vst [vmem:[%s187 + $0x8] sm:$0x3] %v416
        %425 = vst [vmem:[%s187 + $0x10] sm:$0x3] %v417
        %426 = vst [vmem:[%s187 + $0x18] sm:$0x3] %v418
        %427 = vst [vmem:[%s187 + $0x20] sm:$0x3] %v419
        %428 = vst [vmem:[%s187 + $0x28] sm:$0x3] %v420
        %429 = vst [vmem:[%s187 + $0x30] sm:$0x3] %v421
        %430 = vst [vmem:[%s187 + $0x38] sm:$0x3] %v422
        %v431 = vld [vmem:[%s165] sm:$0xc]
        %v432 = vld [vmem:[%s165 + $0x8] sm:$0xc]
        %v433 = vld [vmem:[%s165 + $0x10] sm:$0xc]
        %v434 = vld [vmem:[%s165 + $0x18] sm:$0xc]
        %v435 = vld [vmem:[%s165 + $0x20] sm:$0xc]
        %v436 = vld [vmem:[%s165 + $0x28] sm:$0xc]
        %v437 = vld [vmem:[%s165 + $0x30] sm:$0xc]
        %v438 = vld [vmem:[%s165 + $0x38] sm:$0xc]
        %v439 = vmul.f32 %v431, 1.442695
        %v440 = vpow.pop %v439
        %v441 = vmul.f32 %v432, 1.442695
        %v442 = vpow.pop %v441
        %v443 = vmul.f32 %v433, 1.442695
        %v444 = vpow.pop %v443
        %v445 = vmul.f32 %v434, 1.442695
        %v446 = vpow.pop %v445
        %v447 = vmul.f32 %v435, 1.442695
        %v448 = vpow.pop %v447
        %v449 = vmul.f32 %v436, 1.442695
        %v450 = vpow.pop %v449
        %v451 = vmul.f32 %v437, 1.442695
        %v452 = vpow.pop %v451
        %v453 = vmul.f32 %v438, 1.442695
        %v454 = vpow.pop %v453
        %v455 = vld [vmem:[%s193] sm:$0xcc]
        %v456 = vld [vmem:[%s193 + $0x8] sm:$0xcc]
        %v465 = vrot.slane %v442, 4
        %v466 = vrot.slane %v446, 4
        %v467 = vrot.slane %v450, 4
        %v468 = vrot.slane %v454, 4
        %vm469 = vcmask 1043456
        %v470 = vsel %vm469, %v440, %v465
        %v471 = vsel %vm469, %v444, %v466
        %v472 = vsel %vm469, %v448, %v467
        %v473 = vsel %vm469, %v452, %v468
        %v478 = vmul.f32 %v455, %v470
        %v479 = vmul.f32 %v456, %v471
        %v480 = vmul.f32 %v455, %v472
        %v481 = vmul.f32 %v456, %v473
        %vm482 = vcmp.ne.f32.partialorder %v478, %v478
        %vm483 = vcmp.ne.f32.partialorder %v479, %v479
        %vm484 = vcmp.ne.f32.partialorder %v480, %v480
        %vm485 = vcmp.ne.f32.partialorder %v481, %v481
        %v486 = vsel %vm482, 0.0, %v478
        %v487 = vsel %vm483, 0.0, %v479
        %v488 = vsel %vm484, 0.0, %v480
        %v489 = vsel %vm485, 0.0, %v481
        %v490 = vmax.f32 %v486, -3.4028235e+38
        %v491 = vmax.f32 %v487, -3.4028235e+38
        %v492 = vmax.f32 %v488, -3.4028235e+38
        %v493 = vmax.f32 %v489, -3.4028235e+38
        %v494 = vmin.f32 %v490, 3.4028235e+38
        %v495 = vmin.f32 %v491, 3.4028235e+38
        %v496 = vmin.f32 %v492, 3.4028235e+38
        %v497 = vmin.f32 %v493, 3.4028235e+38
        %502 = vst [vmem:[#allocation1] ss:$2 sm:$0xff] %v494
        %s503 = scalar_lea.vmem [#allocation1], 16
        %504 = vst [vmem:[%s503] ss:$2 sm:$0xff] %v495
        %v505 = vld.sshfl [vmem:[#allocation1] sm:$0xff pattern:$0x75316420]
        %v506 = vld.sshfl [vmem:[#allocation1 + $0x8] sm:$0xff pattern:$0x75316420]
        %v507 = vld.sshfl [vmem:[#allocation1 + $0x10] sm:$0xff pattern:$0x75316420]
        %v508 = vld.sshfl [vmem:[#allocation1 + $0x18] sm:$0xff pattern:$0x75316420]
        %s509 = scalar_lea.vmem [#allocation1], 32
        %510 = vst [vmem:[%s509] ss:$2 sm:$0xff] %v496
        %s511 = scalar_lea.vmem [#allocation1], 48
        %512 = vst [vmem:[%s511] ss:$2 sm:$0xff] %v497
        %v513 = vld.sshfl [vmem:[#allocation1 + $0x20] sm:$0xff pattern:$0x75316420]
        %v514 = vld.sshfl [vmem:[#allocation1 + $0x28] sm:$0xff pattern:$0x75316420]
        %v515 = vld.sshfl [vmem:[#allocation1 + $0x30] sm:$0xff pattern:$0x75316420]
        %v516 = vld.sshfl [vmem:[#allocation1 + $0x38] sm:$0xff pattern:$0x75316420]
        %525 = vst [vmem:[%s187] sm:$0xc] %v505
        %526 = vst [vmem:[%s187 + $0x8] sm:$0xc] %v506
        %527 = vst [vmem:[%s187 + $0x10] sm:$0xc] %v507
        %528 = vst [vmem:[%s187 + $0x18] sm:$0xc] %v508
        %529 = vst [vmem:[%s187 + $0x20] sm:$0xc] %v513
        %530 = vst [vmem:[%s187 + $0x28] sm:$0xc] %v514
        %531 = vst [vmem:[%s187 + $0x30] sm:$0xc] %v515
        %532 = vst [vmem:[%s187 + $0x38] sm:$0xc] %v516
        %v533 = vld [vmem:[%s165] sm:$0xf0]
        %v534 = vld [vmem:[%s165 + $0x8] sm:$0xf0]
        %v535 = vld [vmem:[%s165 + $0x10] sm:$0xf0]
        %v536 = vld [vmem:[%s165 + $0x18] sm:$0xf0]
        %v537 = vld [vmem:[%s165 + $0x20] sm:$0xf0]
        %v538 = vld [vmem:[%s165 + $0x28] sm:$0xf0]
        %v539 = vld [vmem:[%s165 + $0x30] sm:$0xf0]
        %v540 = vld [vmem:[%s165 + $0x38] sm:$0xf0]
        %v541 = vxor.u32 %v533, 2147483648
        %v542 = vxor.u32 %v534, 2147483648
        %v543 = vxor.u32 %v535, 2147483648
        %v544 = vxor.u32 %v536, 2147483648
        %v545 = vxor.u32 %v537, 2147483648
        %v546 = vxor.u32 %v538, 2147483648
        %v547 = vxor.u32 %v539, 2147483648
        %v548 = vxor.u32 %v540, 2147483648
        %v549 = vmul.f32 %v541, 1.442695
        %v550 = vpow.pop %v549
        %v551 = vmul.f32 %v542, 1.442695
        %v552 = vpow.pop %v551
        %v553 = vmul.f32 %v543, 1.442695
        %v554 = vpow.pop %v553
        %v555 = vmul.f32 %v544, 1.442695
        %v556 = vpow.pop %v555
        %v557 = vmul.f32 %v545, 1.442695
        %v558 = vpow.pop %v557
        %v559 = vmul.f32 %v546, 1.442695
        %v560 = vpow.pop %v559
        %v561 = vmul.f32 %v547, 1.442695
        %v562 = vpow.pop %v561
        %v563 = vmul.f32 %v548, 1.442695
        %v564 = vpow.pop %v563
        %v565 = vadd.f32 %v550, 1.0
        %v566 = vadd.f32 %v552, 1.0
        %v567 = vadd.f32 %v554, 1.0
        %v568 = vadd.f32 %v556, 1.0
        %v569 = vadd.f32 %v558, 1.0
        %v570 = vadd.f32 %v560, 1.0
        %v571 = vadd.f32 %v562, 1.0
        %v572 = vadd.f32 %v564, 1.0
        %v573 = vrcp.pop %v565
        %v574 = vmul.f32 %v565, %v573
        %v575 = vsub.f32 1.0, %v574
        %v576 = vmul.f32 %v573, %v575
        %v577 = vadd.f32 %v573, %v576
        %vm578 = vweird.f32 %v565
        %vm579 = vweird.f32 %v573
        %vm580 = vmor %vm578, %vm579
        %v581 = vsel %vm580, %v573, %v577
        %v582 = vand.u32 2147483647, %v565
        %vm583 = vcmp.eq.f32.partialorder %v582, 8.507059e+37
        %v584 = vand.u32 %v565, 2147483648
        %v585 = vor.u32 1.1754944e-38, %v584
        %v586 = vsel %vm583, %v585, %v581
        %v587 = vmul.f32 1.0, %v586
        %v588 = vrcp.pop %v566
        %v589 = vmul.f32 %v566, %v588
        %v590 = vsub.f32 1.0, %v589
        %v591 = vmul.f32 %v588, %v590
        %v592 = vadd.f32 %v588, %v591
        %vm593 = vweird.f32 %v566
        %vm594 = vweird.f32 %v588
        %vm595 = vmor %vm593, %vm594
        %v596 = vsel %vm595, %v588, %v592
        %v597 = vand.u32 2147483647, %v566
        %vm598 = vcmp.eq.f32.partialorder %v597, 8.507059e+37
        %v599 = vand.u32 %v566, 2147483648
        %v600 = vor.u32 1.1754944e-38, %v599
        %v601 = vsel %vm598, %v600, %v596
        %v602 = vmul.f32 1.0, %v601
        %v603 = vrcp.pop %v567
        %v604 = vmul.f32 %v567, %v603
        %v605 = vsub.f32 1.0, %v604
        %v606 = vmul.f32 %v603, %v605
        %v607 = vadd.f32 %v603, %v606
        %vm608 = vweird.f32 %v567
        %vm609 = vweird.f32 %v603
        %vm610 = vmor %vm608, %vm609
        %v611 = vsel %vm610, %v603, %v607
        %v612 = vand.u32 2147483647, %v567
        %vm613 = vcmp.eq.f32.partialorder %v612, 8.507059e+37
        %v614 = vand.u32 %v567, 2147483648
        %v615 = vor.u32 1.1754944e-38, %v614
        %v616 = vsel %vm613, %v615, %v611
        %v617 = vmul.f32 1.0, %v616
        %v618 = vrcp.pop %v568
        %v619 = vmul.f32 %v568, %v618
        %v620 = vsub.f32 1.0, %v619
        %v621 = vmul.f32 %v618, %v620
        %v622 = vadd.f32 %v618, %v621
        %vm623 = vweird.f32 %v568
        %vm624 = vweird.f32 %v618
        %vm625 = vmor %vm623, %vm624
        %v626 = vsel %vm625, %v618, %v622
        %v627 = vand.u32 2147483647, %v568
        %vm628 = vcmp.eq.f32.partialorder %v627, 8.507059e+37
        %v629 = vand.u32 %v568, 2147483648
        %v630 = vor.u32 1.1754944e-38, %v629
        %v631 = vsel %vm628, %v630, %v626
        %v632 = vmul.f32 1.0, %v631
        %v633 = vrcp.pop %v569
        %v634 = vmul.f32 %v569, %v633
        %v635 = vsub.f32 1.0, %v634
        %v636 = vmul.f32 %v633, %v635
        %v637 = vadd.f32 %v633, %v636
        %vm638 = vweird.f32 %v569
        %vm639 = vweird.f32 %v633
        %vm640 = vmor %vm638, %vm639
        %v641 = vsel %vm640, %v633, %v637
        %v642 = vand.u32 2147483647, %v569
        %vm643 = vcmp.eq.f32.partialorder %v642, 8.507059e+37
        %v644 = vand.u32 %v569, 2147483648
        %v645 = vor.u32 1.1754944e-38, %v644
        %v646 = vsel %vm643, %v645, %v641
        %v647 = vmul.f32 1.0, %v646
        %v648 = vrcp.pop %v570
        %v649 = vmul.f32 %v570, %v648
        %v650 = vsub.f32 1.0, %v649
        %v651 = vmul.f32 %v648, %v650
        %v652 = vadd.f32 %v648, %v651
        %vm653 = vweird.f32 %v570
        %vm654 = vweird.f32 %v648
        %vm655 = vmor %vm653, %vm654
        %v656 = vsel %vm655, %v648, %v652
        %v657 = vand.u32 2147483647, %v570
        %vm658 = vcmp.eq.f32.partialorder %v657, 8.507059e+37
        %v659 = vand.u32 %v570, 2147483648
        %v660 = vor.u32 1.1754944e-38, %v659
        %v661 = vsel %vm658, %v660, %v656
        %v662 = vmul.f32 1.0, %v661
        %v663 = vrcp.pop %v571
        %v664 = vmul.f32 %v571, %v663
        %v665 = vsub.f32 1.0, %v664
        %v666 = vmul.f32 %v663, %v665
        %v667 = vadd.f32 %v663, %v666
        %vm668 = vweird.f32 %v571
        %vm669 = vweird.f32 %v663
        %vm670 = vmor %vm668, %vm669
        %v671 = vsel %vm670, %v663, %v667
        %v672 = vand.u32 2147483647, %v571
        %vm673 = vcmp.eq.f32.partialorder %v672, 8.507059e+37
        %v674 = vand.u32 %v571, 2147483648
        %v675 = vor.u32 1.1754944e-38, %v674
        %v676 = vsel %vm673, %v675, %v671
        %v677 = vmul.f32 1.0, %v676
        %v678 = vrcp.pop %v572
        %v679 = vmul.f32 %v572, %v678
        %v680 = vsub.f32 1.0, %v679
        %v681 = vmul.f32 %v678, %v680
        %v682 = vadd.f32 %v678, %v681
        %vm683 = vweird.f32 %v572
        %vm684 = vweird.f32 %v678
        %vm685 = vmor %vm683, %vm684
        %v686 = vsel %vm685, %v678, %v682
        %v687 = vand.u32 2147483647, %v572
        %vm688 = vcmp.eq.f32.partialorder %v687, 8.507059e+37
        %v689 = vand.u32 %v572, 2147483648
        %v690 = vor.u32 1.1754944e-38, %v689
        %v691 = vsel %vm688, %v690, %v686
        %v692 = vmul.f32 1.0, %v691
        %vm693 = vcmp.ne.f32.partialorder %v587, %v587
        %vm694 = vcmp.ne.f32.partialorder %v602, %v602
        %vm695 = vcmp.ne.f32.partialorder %v617, %v617
        %vm696 = vcmp.ne.f32.partialorder %v632, %v632
        %vm697 = vcmp.ne.f32.partialorder %v647, %v647
        %vm698 = vcmp.ne.f32.partialorder %v662, %v662
        %vm699 = vcmp.ne.f32.partialorder %v677, %v677
        %vm700 = vcmp.ne.f32.partialorder %v692, %v692
        %v701 = vsel %vm693, 0.0, %v587
        %v702 = vsel %vm694, 0.0, %v602
        %v703 = vsel %vm695, 0.0, %v617
        %v704 = vsel %vm696, 0.0, %v632
        %v705 = vsel %vm697, 0.0, %v647
        %v706 = vsel %vm698, 0.0, %v662
        %v707 = vsel %vm699, 0.0, %v677
        %v708 = vsel %vm700, 0.0, %v692
        %v709 = vmax.f32 %v701, -3.4028235e+38
        %v710 = vmax.f32 %v702, -3.4028235e+38
        %v711 = vmax.f32 %v703, -3.4028235e+38
        %v712 = vmax.f32 %v704, -3.4028235e+38
        %v713 = vmax.f32 %v705, -3.4028235e+38
        %v714 = vmax.f32 %v706, -3.4028235e+38
        %v715 = vmax.f32 %v707, -3.4028235e+38
        %v716 = vmax.f32 %v708, -3.4028235e+38
        %v717 = vmin.f32 %v709, 3.4028235e+38
        %v718 = vmin.f32 %v710, 3.4028235e+38
        %v719 = vmin.f32 %v711, 3.4028235e+38
        %v720 = vmin.f32 %v712, 3.4028235e+38
        %v721 = vmin.f32 %v713, 3.4028235e+38
        %v722 = vmin.f32 %v714, 3.4028235e+38
        %v723 = vmin.f32 %v715, 3.4028235e+38
        %v724 = vmin.f32 %v716, 3.4028235e+38
        %725 = vst [vmem:[%s187] sm:$0xf0] %v717
        %726 = vst [vmem:[%s187 + $0x8] sm:$0xf0] %v718
        %727 = vst [vmem:[%s187 + $0x10] sm:$0xf0] %v719
        %728 = vst [vmem:[%s187 + $0x18] sm:$0xf0] %v720
        %729 = vst [vmem:[%s187 + $0x20] sm:$0xf0] %v721
        %730 = vst [vmem:[%s187 + $0x28] sm:$0xf0] %v722
        %731 = vst [vmem:[%s187 + $0x30] sm:$0xf0] %v723
        %732 = vst [vmem:[%s187 + $0x38] sm:$0xf0] %v724
        %s733 = sand.u32 %s73, 1
        %s734 = sand.u32 %s73, 1
        %s735 = smul.addr %s734, 64
        %s736 = scalar_lea.vmem [#allocation3], %s735
        // Predicated region
        $region52: #{yolo3_forward.19} parent=46 // pred_check
          %p737 = pneg %p83
        $region53: #{yolo3_forward.19} parent=46 // pred_check_branch
          %739 = sbr.rel (%p737) target = $region55
        $region54: #{yolo3_forward.19} parent=46 // pred_region
          %s740 = smul.u32 4, %s13
          %s741 = smul.addr %s740, 8
          %s742 = scalar_lea.vmem %s2, %s741
          // Predicated region
          $region56: #{yolo3_forward.19} parent=54 // pred_check
            _
          $region57: #{yolo3_forward.19} parent=54 // pred_check_branch
            %744 = sbr.rel (0) target = $region59
          $region58: #{yolo3_forward.19} parent=54 // pred_region
            // Predicated region
            $region60: #{yolo3_forward.19} parent=58 // pred_check
              _
            $region61: #{yolo3_forward.19} parent=58 // pred_check_branch
              %746 = sbr.rel (0) target = $region63
            $region62: #{yolo3_forward.19} parent=58 // pred_region
              loop: start=0, step=1, limit=1
              $region64: #{yolo3_forward.19} parent=62 // loop_pre_header
                _
              $region65: #{yolo3_forward.19} parent=62 // loop_header
                %s748 = sphi 0, %s752
                %p749 = scmp.ge.s32.totalorder %s748, 1
                %s753 = sphi %s736, %s736
                %s754 = sphi %s742, %s742
              $region66: #{yolo3_forward.19} parent=62 // loop_header_branch
                %751 = sbr.rel (%p749) target = $region70
              $region67: #{yolo3_forward.19} parent=62 // loop_body
                %v755 = vld [vmem:[%s753] sm:$0xff]
                %756 = vst [vmem:[%s754] sm:$0xff] %v755
                %v757 = vld [vmem:[%s753 + $0x8] sm:$0xff]
                %758 = vst [vmem:[%s754 + $0x8] sm:$0xff] %v757
                %v759 = vld [vmem:[%s753 + $0x10] sm:$0xff]
                %760 = vst [vmem:[%s754 + $0x10] sm:$0xff] %v759
                %v761 = vld [vmem:[%s753 + $0x18] sm:$0xff]
                %762 = vst [vmem:[%s754 + $0x18] sm:$0xff] %v761
                %v763 = vld [vmem:[%s753 + $0x20] sm:$0xff]
                %764 = vst [vmem:[%s754 + $0xc0] sm:$0xff] %v763
                %v765 = vld [vmem:[%s753 + $0x28] sm:$0xff]
                %766 = vst [vmem:[%s754 + $0xc8] sm:$0xff] %v765
                %v767 = vld [vmem:[%s753 + $0x30] sm:$0xff]
                %768 = vst [vmem:[%s754 + $0xd0] sm:$0xff] %v767
                %v769 = vld [vmem:[%s753 + $0x38] sm:$0xff]
                %770 = vst [vmem:[%s754 + $0xd8] sm:$0xff] %v769
              $region68: #{yolo3_forward.19} parent=62 // loop_footer
                %s752 = sadd.s32 1, %s748
              $region69: #{yolo3_forward.19} parent=62 // loop_footer_branch
                %747 = sbr.rel target = $region65
              $region70: #{yolo3_forward.19} parent=62 // loop_exit
                _
            $region63: #{yolo3_forward.19} parent=58 // pred_fallthru
              _
            // Predicated region
            $region71: #{yolo3_forward.19} parent=58 // pred_check
              _
            $region72: #{yolo3_forward.19} parent=58 // pred_check_branch
              %772 = sbr.rel target = $region74
            $region73: #{yolo3_forward.19} parent=58 // pred_region
              _
            $region74: #{yolo3_forward.19} parent=58 // pred_fallthru
              _
          $region59: #{yolo3_forward.19} parent=54 // pred_fallthru
            _
          %773 = vnop
        $region55: #{yolo3_forward.19} parent=46 // pred_fallthru
          _
      $region47: #{yolo3_forward.19} parent=5 // pred_fallthru
        _
      %p774 = scmp.le.s32.totalorder 2, %s8
      // Predicated region
      $region75: #{yolo3_forward.19} parent=5 // pred_check
        %p775 = pneg %p774
      $region76: #{yolo3_forward.19} parent=5 // pred_check_branch
        %777 = sbr.rel (%p775) target = $region78
      $region77: #{yolo3_forward.19} parent=5 // pred_region
        %s778 = ssub.s32 %s8, 2
        // Predicated region
        $region79: #{yolo3_forward.19} parent=77 // pred_check
          %p779 = pneg %p89
        $region80: #{yolo3_forward.19} parent=77 // pred_check_branch
          %781 = sbr.rel (%p779) target = $region82
        $region81: #{yolo3_forward.19} parent=77 // pred_region
          %s782 = sand.u32 %s74, 1
          %s783 = sand.u32 %s74, 1
          %s784 = smul.addr %s783, 64
          %s785 = scalar_lea.vmem [#allocation3], %s784
        $region82: #{yolo3_forward.19} parent=77 // pred_fallthru
          _
      $region78: #{yolo3_forward.19} parent=5 // pred_fallthru
        _
    $region6: #{yolo3_forward.19} parent=1 // loop_footer
      %s12 = sadd.s32 1, %s8
    $region7: #{yolo3_forward.19} parent=1 // loop_footer_branch
      %7 = sbr.rel target = $region3
    $region8: #{yolo3_forward.19} parent=1 // loop_exit
      _

// kernel: yolo3_forward.14
$region0: #{yolo3_forward.14}
  #allocation0 [shape = 'u32[]', space=smem, size = 0x4, offset = 0x4, fixed_abs, tag = 'smem constant byte address 0x4 - core index']
  #allocation1 [shape = 'u32[72,128]{1,0:T(1,128)}', space=vmem, size = 0x9000, scoped, tag = 'internal scratch']
  %s0 = inlined_call_operand.vmem [shape: bf16[24,16], index: 0, kind: input, shape index: {}]
  %s1 = inlined_call_operand.vmem [shape: bf16[16,512], index: 1, kind: input, shape index: {}]
  %s2 = inlined_call_operand.vmem [shape: f32[24,1], index: 2, kind: input, shape index: {}]
  %s3 = inlined_call_operand.vmem [shape: f32[24,1], index: 3, kind: input, shape index: {}]
  %s4 = inlined_call_operand.vmem [shape: f32[24,512], index: 4, kind: output, shape index: {}]
  %s5 = sld [smem:[#allocation0]]
  $region26: #{yolo3_forward.14} parent=0
    _
  %s7 = ssub.s32 1, %s5
  %s8 = scalar_select 0, %s7, %s5
  // Predicated region
  $region2: #{yolo3_forward.14} parent=0 // pred_check
    _
  $region3: #{yolo3_forward.14} parent=0 // pred_check_branch
    %10 = sbr.rel (0) target = $region5
  $region4: #{yolo3_forward.14} parent=0 // pred_region
    _
  $region5: #{yolo3_forward.14} parent=0 // pred_fallthru
    _
  // Predicated region
  $region6: #{yolo3_forward.14} parent=0 // pred_check
    _
  $region7: #{yolo3_forward.14} parent=0 // pred_check_branch
    %12 = sbr.rel (0) target = $region9
  $region8: #{yolo3_forward.14} parent=0 // pred_region
    _
  $region9: #{yolo3_forward.14} parent=0 // pred_fallthru
    _
  // Predicated region
  $region10: #{yolo3_forward.14} parent=0 // pred_check
    _
  $region11: #{yolo3_forward.14} parent=0 // pred_check_branch
    %14 = sbr.rel (0) target = $region13
  $region12: #{yolo3_forward.14} parent=0 // pred_region
    _
  $region13: #{yolo3_forward.14} parent=0 // pred_fallthru
    _
  // Predicated region
  $region14: #{yolo3_forward.14} parent=0 // pred_check
    _
  $region15: #{yolo3_forward.14} parent=0 // pred_check_branch
    %16 = sbr.rel (0) target = $region17
  $region16: #{yolo3_forward.14} parent=0 // pred_region
    _
  $region17: #{yolo3_forward.14} parent=0 // pred_fallthru
    _
  %v18 = vld [vmem:[%s0] sm:$0xf]
  %v19 = vld [vmem:[%s0 + $0x4] sm:$0xf]
  %v20 = vld [vmem:[%s0 + $0x8] sm:$0xf]
  %v21 = vld [vmem:[%s1] sm:$0xff]
  %v22 = vld [vmem:[%s1 + $0x8] sm:$0xff]
  %v23 = vld [vmem:[%s1 + $0x10] sm:$0xff]
  %v24 = vld [vmem:[%s1 + $0x18] sm:$0xff]
  %v28 = vunpack.c.l.b16 %v18
  %v29 = vunpack.c.l.b16 %v19
  %v30 = vunpack.c.l.b16 %v20
  %v31 = vpack.c.b16 %v29, %v28
  %v32 = vpack.c.b16 %v30, %v30
  %v37 = vunpack.c.l.b16 %v21
  %v38 = vunpack.c.h.b16 %v21
  %v39 = vunpack.c.l.b16 %v22
  %v40 = vunpack.c.h.b16 %v22
  %v41 = vunpack.c.l.b16 %v23
  %v42 = vunpack.c.h.b16 %v23
  %v43 = vunpack.c.l.b16 %v24
  %v44 = vunpack.c.h.b16 %v24
  %v45 = vpack.c.b16 %v41, %v37
  %v46 = vpack.c.b16 %v42, %v38
  %v47 = vpack.c.b16 %v43, %v39
  %v48 = vpack.c.b16 %v44, %v40
  %vm53 = vcmask 130048
  %v55 = vsel %vm53, %v31, 0
  %v58 = vsel %vm53, %v32, 0
  %60 = vmatpush.bf16.msra.mxu0 0
  %61 = vmatpush.bf16.msra.mxu0 0
  %62 = vmatpush.bf16.msra.mxu0 0
  %63 = vmatpush.bf16.msra.mxu0 0
  %64 = vmatpush.bf16.msra.mxu0 0
  %65 = vmatpush.bf16.msra.mxu0 0
  %66 = vmatpush.bf16.msra.mxu0 0
  %67 = vmatpush.bf16.msra.mxu0 %v45
  %68 = vmatmul.bf16.gmra.mxu0 %v55
  %v69 = vpop.f32.mrf.mxu0
  %v70 = vadd.f32 0.0, %v69
  %v71 = vpop.f32.mrf.mxu0
  %v72 = vadd.f32 0.0, %v71
  %73 = vmatmul.bf16.gmra.mxu0 %v58
  %v74 = vpop.f32.mrf.mxu0
  %v75 = vadd.f32 0.0, %v74
  %v76 = vpop.f32.mrf.mxu0
  %77 = vdwg.mxu0
  %78 = vmatpush.bf16.msra.mxu0 0
  %79 = vmatpush.bf16.msra.mxu0 0
  %80 = vmatpush.bf16.msra.mxu0 0
  %81 = vmatpush.bf16.msra.mxu0 0
  %82 = vmatpush.bf16.msra.mxu0 0
  %83 = vmatpush.bf16.msra.mxu0 0
  %84 = vmatpush.bf16.msra.mxu0 0
  %85 = vmatpush.bf16.msra.mxu0 %v46
  %86 = vmatmul.bf16.gmra.mxu0 %v55
  %v87 = vpop.f32.mrf.mxu0
  %v88 = vadd.f32 0.0, %v87
  %v89 = vpop.f32.mrf.mxu0
  %v90 = vadd.f32 0.0, %v89
  %91 = vmatmul.bf16.gmra.mxu0 %v58
  %v92 = vpop.f32.mrf.mxu0
  %v93 = vadd.f32 0.0, %v92
  %v94 = vpop.f32.mrf.mxu0
  %95 = vdwg.mxu0
  %96 = vmatpush.bf16.msra.mxu0 0
  %97 = vmatpush.bf16.msra.mxu0 0
  %98 = vmatpush.bf16.msra.mxu0 0
  %99 = vmatpush.bf16.msra.mxu0 0
  %100 = vmatpush.bf16.msra.mxu0 0
  %101 = vmatpush.bf16.msra.mxu0 0
  %102 = vmatpush.bf16.msra.mxu0 0
  %103 = vmatpush.bf16.msra.mxu0 %v47
  %104 = vmatmul.bf16.gmra.mxu0 %v55
  %v105 = vpop.f32.mrf.mxu0
  %v106 = vadd.f32 0.0, %v105
  %v107 = vpop.f32.mrf.mxu0
  %v108 = vadd.f32 0.0, %v107
  %109 = vmatmul.bf16.gmra.mxu0 %v58
  %v110 = vpop.f32.mrf.mxu0
  %v111 = vadd.f32 0.0, %v110
  %v112 = vpop.f32.mrf.mxu0
  %113 = vdwg.mxu0
  %114 = vmatpush.bf16.msra.mxu0 0
  %115 = vmatpush.bf16.msra.mxu0 0
  %116 = vmatpush.bf16.msra.mxu0 0
  %117 = vmatpush.bf16.msra.mxu0 0
  %118 = vmatpush.bf16.msra.mxu0 0
  %119 = vmatpush.bf16.msra.mxu0 0
  %120 = vmatpush.bf16.msra.mxu0 0
  %121 = vmatpush.bf16.msra.mxu0 %v48
  %122 = vmatmul.bf16.gmra.mxu0 %v55
  %v123 = vpop.f32.mrf.mxu0
  %v124 = vadd.f32 0.0, %v123
  %v125 = vpop.f32.mrf.mxu0
  %v126 = vadd.f32 0.0, %v125
  %127 = vmatmul.bf16.gmra.mxu0 %v58
  %v128 = vpop.f32.mrf.mxu0
  %v129 = vadd.f32 0.0, %v128
  %v130 = vpop.f32.mrf.mxu0
  %131 = vdwg.mxu0
  %v132 = vld [vmem:[%s2] sm:$0xff]
  %v133 = vld [vmem:[%s2 + $0x8] sm:$0xff]
  %v134 = vld [vmem:[%s2 + $0x10] sm:$0xff]
  %136 = vset.pattern.permute.xlu0 0
  %137 = vperm.xlu0 %136, %v132
  %v138 = vpop.permute.xlu0 %137
  %141 = vset.pattern.permute.xlu0 0
  %142 = vperm.xlu0 %141, %v133
  %v143 = vpop.permute.xlu0 %142
  %146 = vset.pattern.permute.xlu0 0
  %147 = vperm.xlu0 %146, %v134
  %v148 = vpop.permute.xlu0 %147
  %v150 = vmul.f32 %v70, %v138
  %v151 = vmul.f32 %v88, %v138
  %v152 = vmul.f32 %v106, %v138
  %v153 = vmul.f32 %v124, %v138
  %v154 = vmul.f32 %v72, %v143
  %v155 = vmul.f32 %v90, %v143
  %v156 = vmul.f32 %v108, %v143
  %v157 = vmul.f32 %v126, %v143
  %v158 = vmul.f32 %v75, %v148
  %v159 = vmul.f32 %v93, %v148
  %v160 = vmul.f32 %v111, %v148
  %v161 = vmul.f32 %v129, %v148
  %v162 = vld [vmem:[%s3] sm:$0xff]
  %v163 = vld [vmem:[%s3 + $0x8] sm:$0xff]
  %v164 = vld [vmem:[%s3 + $0x10] sm:$0xff]
  %166 = vset.pattern.permute.xlu0 0
  %167 = vperm.xlu0 %166, %v162
  %v168 = vpop.permute.xlu0 %167
  %171 = vset.pattern.permute.xlu0 0
  %172 = vperm.xlu0 %171, %v163
  %v173 = vpop.permute.xlu0 %172
  %176 = vset.pattern.permute.xlu0 0
  %177 = vperm.xlu0 %176, %v164
  %v178 = vpop.permute.xlu0 %177
  %v180 = vadd.f32 %v150, %v168
  %v181 = vadd.f32 %v151, %v168
  %v182 = vadd.f32 %v152, %v168
  %v183 = vadd.f32 %v153, %v168
  %v184 = vadd.f32 %v154, %v173
  %v185 = vadd.f32 %v155, %v173
  %v186 = vadd.f32 %v156, %v173
  %v187 = vadd.f32 %v157, %v173
  %v188 = vadd.f32 %v158, %v178
  %v189 = vadd.f32 %v159, %v178
  %v190 = vadd.f32 %v160, %v178
  %v191 = vadd.f32 %v161, %v178
  %192 = vst [vmem:[%s4] sm:$0xff] %v180
  %193 = vst [vmem:[%s4 + $0x8] sm:$0xff] %v181
  %194 = vst [vmem:[%s4 + $0x10] sm:$0xff] %v182
  %195 = vst [vmem:[%s4 + $0x18] sm:$0xff] %v183
  %196 = vst [vmem:[%s4 + $0x20] sm:$0xff] %v184
  %197 = vst [vmem:[%s4 + $0x28] sm:$0xff] %v185
  %198 = vst [vmem:[%s4 + $0x30] sm:$0xff] %v186
  %199 = vst [vmem:[%s4 + $0x38] sm:$0xff] %v187
  %200 = vst [vmem:[%s4 + $0x40] sm:$0xff] %v188
  %201 = vst [vmem:[%s4 + $0x48] sm:$0xff] %v189
  %202 = vst [vmem:[%s4 + $0x50] sm:$0xff] %v190
  %203 = vst [vmem:[%s4 + $0x58] sm:$0xff] %v191
  // Predicated region
  $region18: #{yolo3_forward.14} parent=0 // pred_check
    _
  $region19: #{yolo3_forward.14} parent=0 // pred_check_branch
    %205 = sbr.rel (0) target = $region21
  $region20: #{yolo3_forward.14} parent=0 // pred_region
    _
  $region21: #{yolo3_forward.14} parent=0 // pred_fallthru
    _
  // Predicated region
  $region22: #{yolo3_forward.14} parent=0 // pred_check
    _
  $region23: #{yolo3_forward.14} parent=0 // pred_check_branch
    %207 = sbr.rel (0) target = $region25
  $region24: #{yolo3_forward.14} parent=0 // pred_region
    _
  $region25: #{yolo3_forward.14} parent=0 // pred_fallthru
    _

// kernel: yolo3_forward.15
$region0: #{yolo3_forward.15}
  #allocation0 [shape = 'u32[]', space=smem, size = 0x4, offset = 0x4, fixed_abs, tag = 'smem constant byte address 0x4 - core index']
  #allocation1 [shape = 'u32[72,128]{1,0:T(1,128)}', space=vmem, size = 0x9000, scoped, tag = 'internal scratch']
  %s0 = inlined_call_operand.vmem [shape: f32[2,8,768], index: 0, kind: input, shape index: {}]
  %s1 = inlined_call_operand.vmem [shape: f32[4,768], index: 1, kind: input, shape index: {}]
  %s2 = inlined_call_operand.vmem [shape: f32[2,8,768], index: 2, kind: output, shape index: {}]
  %s3 = sld [smem:[#allocation0]]
  $region83: #{yolo3_forward.15} parent=0
    _
  %s5 = ssub.s32 1, %s3
  %s6 = scalar_select 0, %s5, %s3
  $region1: #{yolo3_forward.15} parent=0
    #allocation2 [shape = 'u8[32768]{0}', space=vmem, size = 0x8000, scoped, tag = 'input window, operand 0']
    #allocation3 [shape = 'u8[32768]{0}', space=vmem, size = 0x8000, scoped, tag = 'output window, operand 0']
    loop: start=0, step=1, limit=5
    $region2: #{yolo3_forward.15} parent=1 // loop_pre_header
      _
    $region3: #{yolo3_forward.15} parent=1 // loop_header
      %s8 = sphi 0, %s12
      %p9 = scmp.ge.s32.totalorder %s8, 5
      %s18 = sphi 0, %s20
      %s21 = sphi 0, %s18
      %s22 = sphi 0, %s21
      %s38 = sphi 0, %s22
      %s44 = sphi 0, %s46
      %s47 = sphi 0, %s44
      %s48 = sphi 0, %s47
      %s64 = sphi 0, %s48
      %s70 = sphi 0, %s72
      %s73 = sphi 0, %s70
      %s74 = sphi 0, %s73
      %s90 = sphi 0, %s74
    $region4: #{yolo3_forward.15} parent=1 // loop_header_branch
      %11 = sbr.rel (%p9) target = $region8
    $region5: #{yolo3_forward.15} parent=1 // loop_body
      %s13 = ssub.s32 %s8, 1
      %s14 = ssub.s32 %s8, 2
      %s15 = sadd.s32 %s8, 1
      %s16 = ssub.s32 %s8, %s15
      %p17 = scmp.eq.s32.totalorder %s16, 0
      %s19 = sadd.s32 %s18, 1
      %s20 = scalar_select %p17, %s18, %s19
      %p23 = pneg %p17
      %p24 = scmp.eq.s32.totalorder %s8, 2
      %p25 = por %p23, %p24
      %p26 = scmp.ne.s32.totalorder %s18, %s21
      %p27 = scmp.eq.s32.totalorder %s8, 0
      %p28 = por %p26, %p27
      %p29 = scmp.ne.s32.totalorder %s18, %s21
      %p30 = scmp.eq.s32.totalorder %s13, 2
      %p31 = por %p29, %p30
      %p32 = scmp.ne.s32.totalorder %s21, %s22
      %p33 = scmp.eq.s32.totalorder %s13, 0
      %p34 = por %p32, %p33
      %p35 = scmp.ne.s32.totalorder %s21, %s22
      %p36 = scmp.eq.s32.totalorder %s14, 2
      %p37 = por %p35, %p36
      %p39 = scmp.ne.s32.totalorder %s22, %s38
      %p40 = scmp.eq.s32.totalorder %s14, 0
      %p41 = por %p39, %p40
      %s42 = ssub.s32 %s8, %s15
      %p43 = scmp.eq.s32.totalorder %s42, 0
      %s45 = sadd.s32 %s44, 1
      %s46 = scalar_select %p43, %s44, %s45
      %p49 = pneg %p43
      %p50 = scmp.eq.s32.totalorder %s8, 2
      %p51 = por %p49, %p50
      %p52 = scmp.ne.s32.totalorder %s44, %s47
      %p53 = scmp.eq.s32.totalorder %s8, 0
      %p54 = por %p52, %p53
      %p55 = scmp.ne.s32.totalorder %s44, %s47
      %p56 = scmp.eq.s32.totalorder %s13, 2
      %p57 = por %p55, %p56
      %p58 = scmp.ne.s32.totalorder %s47, %s48
      %p59 = scmp.eq.s32.totalorder %s13, 0
      %p60 = por %p58, %p59
      %p61 = scmp.ne.s32.totalorder %s47, %s48
      %p62 = scmp.eq.s32.totalorder %s14, 2
      %p63 = por %p61, %p62
      %p65 = scmp.ne.s32.totalorder %s48, %s64
      %p66 = scmp.eq.s32.totalorder %s14, 0
      %p67 = por %p65, %p66
      %s68 = ssub.s32 %s8, %s15
      %p69 = scmp.eq.s32.totalorder %s68, 0
      %s71 = sadd.s32 %s70, 1
      %s72 = scalar_select %p69, %s70, %s71
      %p75 = pneg %p69
      %p76 = scmp.eq.s32.totalorder %s8, 2
      %p77 = por %p75, %p76
      %p78 = scmp.ne.s32.totalorder %s70, %s73
      %p79 = scmp.eq.s32.totalorder %s8, 0
      %p80 = por %p78, %p79
      %p81 = scmp.ne.s32.totalorder %s70, %s73
      %p82 = scmp.eq.s32.totalorder %s13, 2
      %p83 = por %p81, %p82
      %p84 = scmp.ne.s32.totalorder %s73, %s74
      %p85 = scmp.eq.s32.totalorder %s13, 0
      %p86 = por %p84, %p85
      %p87 = scmp.ne.s32.totalorder %s73, %s74
      %p88 = scmp.eq.s32.totalorder %s14, 2
      %p89 = por %p87, %p88
      %p91 = scmp.ne.s32.totalorder %s74, %s90
      %p92 = scmp.eq.s32.totalorder %s14, 0
      %p93 = por %p91, %p92
      %p94 = scmp.le.s32.totalorder 1, %s8
      %p95 = scmp.lt.s32.totalorder %s8, 4
      %p96 = pnand %p94, %p95
      %p97 = pneg %p96
      // Predicated region
      $region9: #{yolo3_forward.15} parent=5 // pred_check
        _
      $region10: #{yolo3_forward.15} parent=5 // pred_check_branch
        %99 = sbr.rel (%p96) target = $region12
      $region11: #{yolo3_forward.15} parent=5 // pred_region
        %s100 = ssub.s32 %s8, 1
      $region12: #{yolo3_forward.15} parent=5 // pred_fallthru
        _
      %p101 = scmp.lt.s32.totalorder %s8, 3
      // Predicated region
      $region13: #{yolo3_forward.15} parent=5 // pred_check
        %p102 = pneg %p101
      $region14: #{yolo3_forward.15} parent=5 // pred_check_branch
        %104 = sbr.rel (%p102) target = $region16
      $region15: #{yolo3_forward.15} parent=5 // pred_region
        // Predicated region
        $region17: #{yolo3_forward.15} parent=15 // pred_check
          %p105 = pneg %p28
        $region18: #{yolo3_forward.15} parent=15 // pred_check_branch
          %107 = sbr.rel (%p105) target = $region20
        $region19: #{yolo3_forward.15} parent=15 // pred_region
          %s108 = sand.u32 %s18, 1
          %s109 = sand.u32 %s18, 1
          %s110 = smul.addr %s109, 32
          %s111 = scalar_lea.vmem [#allocation2], %s110
          %s112 = smul.u32 2, %s8
          %s113 = smul.addr %s112, 8
          %s114 = scalar_lea.vmem %s0, %s113
          // Predicated region
          $region21: #{yolo3_forward.15} parent=19 // pred_check
            _
          $region22: #{yolo3_forward.15} parent=19 // pred_check_branch
            %116 = sbr.rel (0) target = $region24
          $region23: #{yolo3_forward.15} parent=19 // pred_region
            // Predicated region
            $region25: #{yolo3_forward.15} parent=23 // pred_check
              _
            $region26: #{yolo3_forward.15} parent=23 // pred_check_branch
              %118 = sbr.rel (0) target = $region28
            $region27: #{yolo3_forward.15} parent=23 // pred_region
              loop: start=0, step=1, limit=1
              $region29: #{yolo3_forward.15} parent=27 // loop_pre_header
                _
              $region30: #{yolo3_forward.15} parent=27 // loop_header
                %s120 = sphi 0, %s124
                %p121 = scmp.ge.s32.totalorder %s120, 1
                %s125 = sphi %s114, %s114
                %s126 = sphi %s111, %s111
              $region31: #{yolo3_forward.15} parent=27 // loop_header_branch
                %123 = sbr.rel (%p121) target = $region35
              $region32: #{yolo3_forward.15} parent=27 // loop_body
                %v127 = vld [vmem:[%s125] sm:$0xff]
                %128 = vst [vmem:[%s126] sm:$0xff] %v127
                %v129 = vld [vmem:[%s125 + $0x8] sm:$0xff]
                %130 = vst [vmem:[%s126 + $0x8] sm:$0xff] %v129
                %v131 = vld [vmem:[%s125 + $0x30] sm:$0xff]
                %132 = vst [vmem:[%s126 + $0x10] sm:$0xff] %v131
                %v133 = vld [vmem:[%s125 + $0x38] sm:$0xff]
                %134 = vst [vmem:[%s126 + $0x18] sm:$0xff] %v133
              $region33: #{yolo3_forward.15} parent=27 // loop_footer
                %s124 = sadd.s32 1, %s120
              $region34: #{yolo3_forward.15} parent=27 // loop_footer_branch
                %119 = sbr.rel target = $region30
              $region35: #{yolo3_forward.15} parent=27 // loop_exit
                _
            $region28: #{yolo3_forward.15} parent=23 // pred_fallthru
              _
            // Predicated region
            $region36: #{yolo3_forward.15} parent=23 // pred_check
              _
            $region37: #{yolo3_forward.15} parent=23 // pred_check_branch
              %136 = sbr.rel target = $region39
            $region38: #{yolo3_forward.15} parent=23 // pred_region
              _
            $region39: #{yolo3_forward.15} parent=23 // pred_fallthru
              _
          $region24: #{yolo3_forward.15} parent=19 // pred_fallthru
            _
          %137 = vnop
        $region20: #{yolo3_forward.15} parent=15 // pred_fallthru
          _
        // Predicated region
        $region40: #{yolo3_forward.15} parent=15 // pred_check
          %p138 = pneg %p54
        $region41: #{yolo3_forward.15} parent=15 // pred_check_branch
          %140 = sbr.rel (%p138) target = $region43
        $region42: #{yolo3_forward.15} parent=15 // pred_region
          %s141 = smul.u32 2, %s8
          %p142 = scmp.lt.s32.totalorder %s141, 5
          %s143 = scalar_select %p142, %s141, 5
          %s144 = smul.addr %s143, 4
          %s145 = scalar_lea.vmem %s1, %s144
          %s146 = smul.u32 2, %s8
        $region43: #{yolo3_forward.15} parent=15 // pred_fallthru
          _
      $region16: #{yolo3_forward.15} parent=5 // pred_fallthru
        _
      %p147 = scmp.le.s32.totalorder 1, %s8
      %p148 = scmp.lt.s32.totalorder %s8, 4
      %p149 = pnand %p147, %p148
      %p150 = pneg %p149
      // Predicated region
      $region44: #{yolo3_forward.15} parent=5 // pred_check
        _
      $region45: #{yolo3_forward.15} parent=5 // pred_check_branch
        %152 = sbr.rel (%p149) target = $region47
      $region46: #{yolo3_forward.15} parent=5 // pred_region
        %s153 = ssub.s32 %s8, 1
        %s154 = sand.u32 %s21, 1
        %s155 = sand.u32 %s21, 1
        %s156 = smul.addr %s155, 32
        %s157 = scalar_lea.vmem [#allocation2], %s156
        // Predicated region
        $region48: #{yolo3_forward.15} parent=46 // pred_check
          %p158 = pneg %p34
        $region49: #{yolo3_forward.15} parent=46 // pred_check_branch
          %160 = sbr.rel (%p158) target = $region51
        $region50: #{yolo3_forward.15} parent=46 // pred_region
          _
        $region51: #{yolo3_forward.15} parent=46 // pred_fallthru
          _
        %s161 = sand.u32 %s21, 1
        %s162 = sand.u32 %s21, 1
        %s163 = smul.addr %s162, 32
        %s164 = scalar_lea.vmem [#allocation2], %s163
        %p165 = pneg %p34
        %p166 = pneg %p31
        %s167 = smul.u32 2, %s13
        %p168 = scmp.lt.s32.totalorder %s167, 5
        %s169 = scalar_select %p168, %s167, 5
        %s170 = smul.addr %s169, 4
        %s171 = scalar_lea.vmem %s1, %s170
        %p172 = pneg %p60
        %p173 = pneg %p57
        %p174 = pneg %p86
        %p175 = pneg %p83
        %s176 = sand.u32 %s73, 1
        %s177 = sand.u32 %s73, 1
        %s178 = smul.addr %s177, 32
        %s179 = scalar_lea.vmem [#allocation3], %s178
        %s180 = smul.u32 2, %s13
        %s181 = smul.u32 2, %s13
        %p182 = scmp.lt.s32.totalorder %s181, 5
        %s183 = scalar_select %p182, %s181, 5
        %s184 = smul.addr %s183, 4
        %s185 = scalar_lea.vmem %s1, %s184
        %s186 = smul.u32 2, %s13
        %s187 = smul.u32 2, %s13
        %v188 = vld [vmem:[%s157] sm:$0x3]
        %v189 = vld [vmem:[%s157 + $0x8] sm:$0x3]
        %v190 = vld [vmem:[%s157 + $0x10] sm:$0x3]
        %v191 = vld [vmem:[%s157 + $0x18] sm:$0x3]
        %v192 = vxor.u32 %v188, 2147483648
        %v193 = vxor.u32 %v189, 2147483648
        %v194 = vxor.u32 %v190, 2147483648
        %v195 = vxor.u32 %v191, 2147483648
        %v196 = vmul.f32 %v192, 1.442695
        %v197 = vpow.pop %v196
        %v198 = vmul.f32 %v193, 1.442695
        %v199 = vpow.pop %v198
        %v200 = vmul.f32 %v194, 1.442695
        %v201 = vpow.pop %v200
        %v202 = vmul.f32 %v195, 1.442695
        %v203 = vpow.pop %v202
        %v204 = vadd.f32 %v197, 1.0
        %v205 = vadd.f32 %v199, 1.0
        %v206 = vadd.f32 %v201, 1.0
        %v207 = vadd.f32 %v203, 1.0
        %v208 = vrcp.pop %v204
        %v209 = vmul.f32 %v204, %v208
        %v210 = vsub.f32 1.0, %v209
        %v211 = vmul.f32 %v208, %v210
        %v212 = vadd.f32 %v208, %v211
        %vm213 = vweird.f32 %v204
        %vm214 = vweird.f32 %v208
        %vm215 = vmor %vm213, %vm214
        %v216 = vsel %vm215, %v208, %v212
        %v217 = vand.u32 2147483647, %v204
        %vm218 = vcmp.eq.f32.partialorder %v217, 8.507059e+37
        %v219 = vand.u32 %v204, 2147483648
        %v220 = vor.u32 1.1754944e-38, %v219
        %v221 = vsel %vm218, %v220, %v216
        %v222 = vmul.f32 1.0, %v221
        %v223 = vrcp.pop %v205
        %v224 = vmul.f32 %v205, %v223
        %v225 = vsub.f32 1.0, %v224
        %v226 = vmul.f32 %v223, %v225
        %v227 = vadd.f32 %v223, %v226
        %vm228 = vweird.f32 %v205
        %vm229 = vweird.f32 %v223
        %vm230 = vmor %vm228, %vm229
        %v231 = vsel %vm230, %v223, %v227
        %v232 = vand.u32 2147483647, %v205
        %vm233 = vcmp.eq.f32.partialorder %v232, 8.507059e+37
        %v234 = vand.u32 %v205, 2147483648
        %v235 = vor.u32 1.1754944e-38, %v234
        %v236 = vsel %vm233, %v235, %v231
        %v237 = vmul.f32 1.0, %v236
        %v238 = vrcp.pop %v206
        %v239 = vmul.f32 %v206, %v238
        %v240 = vsub.f32 1.0, %v239
        %v241 = vmul.f32 %v238, %v240
        %v242 = vadd.f32 %v238, %v241
        %vm243 = vweird.f32 %v206
        %vm244 = vweird.f32 %v238
        %vm245 = vmor %vm243, %vm244
        %v246 = vsel %vm245, %v238, %v242
        %v247 = vand.u32 2147483647, %v206
        %vm248 = vcmp.eq.f32.partialorder %v247, 8.507059e+37
        %v249 = vand.u32 %v206, 2147483648
        %v250 = vor.u32 1.1754944e-38, %v249
        %v251 = vsel %vm248, %v250, %v246
        %v252 = vmul.f32 1.0, %v251
        %v253 = vrcp.pop %v207
        %v254 = vmul.f32 %v207, %v253
        %v255 = vsub.f32 1.0, %v254
        %v256 = vmul.f32 %v253, %v255
        %v257 = vadd.f32 %v253, %v256
        %vm258 = vweird.f32 %v207
        %vm259 = vweird.f32 %v253
        %vm260 = vmor %vm258, %vm259
        %v261 = vsel %vm260, %v253, %v257
        %v262 = vand.u32 2147483647, %v207
        %vm263 = vcmp.eq.f32.partialorder %v262, 8.507059e+37
        %v264 = vand.u32 %v207, 2147483648
        %v265 = vor.u32 1.1754944e-38, %v264
        %v266 = vsel %vm263, %v265, %v261
        %v267 = vmul.f32 1.0, %v266
        %v268 = vld [vmem:[%s185] sm:$0x33]
        %270 = vst [vmem:[#allocation1] ss:$2 sm:$0xff] %v268
        %v271 = vld.sshfl [vmem:[#allocation1] sm:$0xff pattern:$0x75316420]
        %v272 = vld.sshfl [vmem:[#allocation1 + $0x8] sm:$0xff pattern:$0x75316420]
        %s273 = scalar_lea.vmem [#allocation1], 16
        %274 = vst [vmem:[%s273] ss:$2 sm:$0xff] %v268
        %v275 = vld.sshfl [vmem:[#allocation1 + $0x10] sm:$0xff pattern:$0x75316420]
        %v276 = vld.sshfl [vmem:[#allocation1 + $0x18] sm:$0xff pattern:$0x75316420]
        %v281 = vadd.f32 %v222, %v271
        %v282 = vadd.f32 %v237, %v272
        %v283 = vadd.f32 %v252, %v275
        %v284 = vadd.f32 %v267, %v276
        %v285 = vmul.f32 %v281, 2.0
        %v286 = vmul.f32 %v282, 2.0
        %v287 = vmul.f32 %v283, 2.0
        %v288 = vmul.f32 %v284, 2.0
        %vm289 = vcmp.ne.f32.partialorder %v285, %v285
        %vm290 = vcmp.ne.f32.partialorder %v286, %v286
        %vm291 = vcmp.ne.f32.partialorder %v287, %v287
        %vm292 = vcmp.ne.f32.partialorder %v288, %v288
        %v293 = vsel %vm289, 0.0, %v285
        %v294 = vsel %vm290, 0.0, %v286
        %v295 = vsel %vm291, 0.0, %v287
        %v296 = vsel %vm292, 0.0, %v288
        %v297 = vmax.f32 %v293, -3.4028235e+38
        %v298 = vmax.f32 %v294, -3.4028235e+38
        %v299 = vmax.f32 %v295, -3.4028235e+38
        %v300 = vmax.f32 %v296, -3.4028235e+38
        %v301 = vmin.f32 %v297, 3.4028235e+38
        %v302 = vmin.f32 %v298, 3.4028235e+38
        %v303 = vmin.f32 %v299, 3.4028235e+38
        %v304 = vmin.f32 %v300, 3.4028235e+38
        %305 = vst [vmem:[%s179] sm:$0x3] %v301
        %306 = vst [vmem:[%s179 + $0x8] sm:$0x3] %v302
        %307 = vst [vmem:[%s179 + $0x10] sm:$0x3] %v303
        %308 = vst [vmem:[%s179 + $0x18] sm:$0x3] %v304
        %v309 = vld [vmem:[%s157] sm:$0xc]
        %v310 = vld [vmem:[%s157 + $0x8] sm:$0xc]
        %v311 = vld [vmem:[%s157 + $0x10] sm:$0xc]
        %v312 = vld [vmem:[%s157 + $0x18] sm:$0xc]
        %v313 = vmul.f32 %v309, 1.442695
        %v314 = vpow.pop %v313
        %v315 = vmul.f32 %v310, 1.442695
        %v316 = vpow.pop %v315
        %v317 = vmul.f32 %v311, 1.442695
        %v318 = vpow.pop %v317
        %v319 = vmul.f32 %v312, 1.442695
        %v320 = vpow.pop %v319
        %v321 = vld [vmem:[%s185] sm:$0xcc]
        %v326 = vrot.slane %v316, 4
        %v327 = vrot.slane %v320, 4
        %vm328 = vcmask 1043456
        %v329 = vsel %vm328, %v314, %v326
        %v330 = vsel %vm328, %v318, %v327
        %v333 = vmul.f32 %v321, %v329
        %v334 = vmul.f32 %v321, %v330
        %v335 = vmul.f32 %v333, 2.0
        %v336 = vmul.f32 %v334, 2.0
        %vm337 = vcmp.ne.f32.partialorder %v335, %v335
        %vm338 = vcmp.ne.f32.partialorder %v336, %v336
        %v339 = vsel %vm337, 0.0, %v335
        %v340 = vsel %vm338, 0.0, %v336
        %v341 = vmax.f32 %v339, -3.4028235e+38
        %v342 = vmax.f32 %v340, -3.4028235e+38
        %v343 = vmin.f32 %v341, 3.4028235e+38
        %v344 = vmin.f32 %v342, 3.4028235e+38
        %347 = vst [vmem:[#allocation1] ss:$2 sm:$0xff] %v343
        %v348 = vld.sshfl [vmem:[#allocation1] sm:$0xff pattern:$0x75316420]
        %v349 = vld.sshfl [vmem:[#allocation1 + $0x8] sm:$0xff pattern:$0x75316420]
        %s350 = scalar_lea.vmem [#allocation1], 16
        %351 = vst [vmem:[%s350] ss:$2 sm:$0xff] %v344
        %v352 = vld.sshfl [vmem:[#allocation1 + $0x10] sm:$0xff pattern:$0x75316420]
        %v353 = vld.sshfl [vmem:[#allocation1 + $0x18] sm:$0xff pattern:$0x75316420]
        %358 = vst [vmem:[%s179] sm:$0xc] %v348
        %359 = vst [vmem:[%s179 + $0x8] sm:$0xc] %v349
        %360 = vst [vmem:[%s179 + $0x10] sm:$0xc] %v352
        %361 = vst [vmem:[%s179 + $0x18] sm:$0xc] %v353
        %v362 = vld [vmem:[%s157] sm:$0xf0]
        %v363 = vld [vmem:[%s157 + $0x8] sm:$0xf0]
        %v364 = vld [vmem:[%s157 + $0x10] sm:$0xf0]
        %v365 = vld [vmem:[%s157 + $0x18] sm:$0xf0]
        %v366 = vxor.u32 %v362, 2147483648
        %v367 = vxor.u32 %v363, 2147483648
        %v368 = vxor.u32 %v364, 2147483648
        %v369 = vxor.u32 %v365, 2147483648
        %v370 = vmul.f32 %v366, 1.442695
        %v371 = vpow.pop %v370
        %v372 = vmul.f32 %v367, 1.442695
        %v373 = vpow.pop %v372
        %v374 = vmul.f32 %v368, 1.442695
        %v375 = vpow.pop %v374
        %v376 = vmul.f32 %v369, 1.442695
        %v377 = vpow.pop %v376
        %v378 = vadd.f32 %v371, 1.0
        %v379 = vadd.f32 %v373, 1.0
        %v380 = vadd.f32 %v375, 1.0
        %v381 = vadd.f32 %v377, 1.0
        %v382 = vrcp.pop %v378
        %v383 = vmul.f32 %v378, %v382
        %v384 = vsub.f32 1.0, %v383
        %v385 = vmul.f32 %v382, %v384
        %v386 = vadd.f32 %v382, %v385
        %vm387 = vweird.f32 %v378
        %vm388 = vweird.f32 %v382
        %vm389 = vmor %vm387, %vm388
        %v390 = vsel %vm389, %v382, %v386
        %v391 = vand.u32 2147483647, %v378
        %vm392 = vcmp.eq.f32.partialorder %v391, 8.507059e+37
        %v393 = vand.u32 %v378, 2147483648
        %v394 = vor.u32 1.1754944e-38, %v393
        %v395 = vsel %vm392, %v394, %v390
        %v396 = vmul.f32 1.0, %v395
        %v397 = vrcp.pop %v379
        %v398 = vmul.f32 %v379, %v397
        %v399 = vsub.f32 1.0, %v398
        %v400 = vmul.f32 %v397, %v399
        %v401 = vadd.f32 %v397, %v400
        %vm402 = vweird.f32 %v379
        %vm403 = vweird.f32 %v397
        %vm404 = vmor %vm402, %vm403
        %v405 = vsel %vm404, %v397, %v401
        %v406 = vand.u32 2147483647, %v379
        %vm407 = vcmp.eq.f32.partialorder %v406, 8.507059e+37
        %v408 = vand.u32 %v379, 2147483648
        %v409 = vor.u32 1.1754944e-38, %v408
        %v410 = vsel %vm407, %v409, %v405
        %v411 = vmul.f32 1.0, %v410
        %v412 = vrcp.pop %v380
        %v413 = vmul.f32 %v380, %v412
        %v414 = vsub.f32 1.0, %v413
        %v415 = vmul.f32 %v412, %v414
        %v416 = vadd.f32 %v412, %v415
        %vm417 = vweird.f32 %v380
        %vm418 = vweird.f32 %v412
        %vm419 = vmor %vm417, %vm418
        %v420 = vsel %vm419, %v412, %v416
        %v421 = vand.u32 2147483647, %v380
        %vm422 = vcmp.eq.f32.partialorder %v421, 8.507059e+37
        %v423 = vand.u32 %v380, 2147483648
        %v424 = vor.u32 1.1754944e-38, %v423
        %v425 = vsel %vm422, %v424, %v420
        %v426 = vmul.f32 1.0, %v425
        %v427 = vrcp.pop %v381
        %v428 = vmul.f32 %v381, %v427
        %v429 = vsub.f32 1.0, %v428
        %v430 = vmul.f32 %v427, %v429
        %v431 = vadd.f32 %v427, %v430
        %vm432 = vweird.f32 %v381
        %vm433 = vweird.f32 %v427
        %vm434 = vmor %vm432, %vm433
        %v435 = vsel %vm434, %v427, %v431
        %v436 = vand.u32 2147483647, %v381
        %vm437 = vcmp.eq.f32.partialorder %v436, 8.507059e+37
        %v438 = vand.u32 %v381, 2147483648
        %v439 = vor.u32 1.1754944e-38, %v438
        %v440 = vsel %vm437, %v439, %v435
        %v441 = vmul.f32 1.0, %v440
        %vm442 = vcmp.ne.f32.partialorder %v396, %v396
        %vm443 = vcmp.ne.f32.partialorder %v411, %v411
        %vm444 = vcmp.ne.f32.partialorder %v426, %v426
        %vm445 = vcmp.ne.f32.partialorder %v441, %v441
        %v446 = vsel %vm442, 0.0, %v396
        %v447 = vsel %vm443, 0.0, %v411
        %v448 = vsel %vm444, 0.0, %v426
        %v449 = vsel %vm445, 0.0, %v441
        %v450 = vmax.f32 %v446, -3.4028235e+38
        %v451 = vmax.f32 %v447, -3.4028235e+38
        %v452 = vmax.f32 %v448, -3.4028235e+38
        %v453 = vmax.f32 %v449, -3.4028235e+38
        %v454 = vmin.f32 %v450, 3.4028235e+38
        %v455 = vmin.f32 %v451, 3.4028235e+38
        %v456 = vmin.f32 %v452, 3.4028235e+38
        %v457 = vmin.f32 %v453, 3.4028235e+38
        %458 = vst [vmem:[%s179] sm:$0xf0] %v454
        %459 = vst [vmem:[%s179 + $0x8] sm:$0xf0] %v455
        %460 = vst [vmem:[%s179 + $0x10] sm:$0xf0] %v456
        %461 = vst [vmem:[%s179 + $0x18] sm:$0xf0] %v457
        %s462 = sand.u32 %s73, 1
        %s463 = sand.u32 %s73, 1
        %s464 = smul.addr %s463, 32
        %s465 = scalar_lea.vmem [#allocation3], %s464
        // Predicated region
        $region52: #{yolo3_forward.15} parent=46 // pred_check
          %p466 = pneg %p83
        $region53: #{yolo3_forward.15} parent=46 // pred_check_branch
          %468 = sbr.rel (%p466) target = $region55
        $region54: #{yolo3_forward.15} parent=46 // pred_region
          %s469 = smul.u32 2, %s13
          %s470 = smul.addr %s469, 8
          %s471 = scalar_lea.vmem %s2, %s470
          // Predicated region
          $region56: #{yolo3_forward.15} parent=54 // pred_check
            _
          $region57: #{yolo3_forward.15} parent=54 // pred_check_branch
            %473 = sbr.rel (0) target = $region59
          $region58: #{yolo3_forward.15} parent=54 // pred_region
            // Predicated region
            $region60: #{yolo3_forward.15} parent=58 // pred_check
              _
            $region61: #{yolo3_forward.15} parent=58 // pred_check_branch
              %475 = sbr.rel (0) target = $region63
            $region62: #{yolo3_forward.15} parent=58 // pred_region
              loop: start=0, step=1, limit=1
              $region64: #{yolo3_forward.15} parent=62 // loop_pre_header
                _
              $region65: #{yolo3_forward.15} parent=62 // loop_header
                %s477 = sphi 0, %s481
                %p478 = scmp.ge.s32.totalorder %s477, 1
                %s482 = sphi %s465, %s465
                %s483 = sphi %s471, %s471
              $region66: #{yolo3_forward.15} parent=62 // loop_header_branch
                %480 = sbr.rel (%p478) target = $region70
              $region67: #{yolo3_forward.15} parent=62 // loop_body
                %v484 = vld [vmem:[%s482] sm:$0xff]
                %485 = vst [vmem:[%s483] sm:$0xff] %v484
                %v486 = vld [vmem:[%s482 + $0x8] sm:$0xff]
                %487 = vst [vmem:[%s483 + $0x8] sm:$0xff] %v486
                %v488 = vld [vmem:[%s482 + $0x10] sm:$0xff]
                %489 = vst [vmem:[%s483 + $0x30] sm:$0xff] %v488
                %v490 = vld [vmem:[%s482 + $0x18] sm:$0xff]
                %491 = vst [vmem:[%s483 + $0x38] sm:$0xff] %v490
              $region68: #{yolo3_forward.15} parent=62 // loop_footer
                %s481 = sadd.s32 1, %s477
              $region69: #{yolo3_forward.15} parent=62 // loop_footer_branch
                %476 = sbr.rel target = $region65
              $region70: #{yolo3_forward.15} parent=62 // loop_exit
                _
            $region63: #{yolo3_forward.15} parent=58 // pred_fallthru
              _
            // Predicated region
            $region71: #{yolo3_forward.15} parent=58 // pred_check
              _
            $region72: #{yolo3_forward.15} parent=58 // pred_check_branch
              %493 = sbr.rel target = $region74
            $region73: #{yolo3_forward.15} parent=58 // pred_region
              _
            $region74: #{yolo3_forward.15} parent=58 // pred_fallthru
              _
          $region59: #{yolo3_forward.15} parent=54 // pred_fallthru
            _
          %494 = vnop
        $region55: #{yolo3_forward.15} parent=46 // pred_fallthru
          _
      $region47: #{yolo3_forward.15} parent=5 // pred_fallthru
        _
      %p495 = scmp.le.s32.totalorder 2, %s8
      // Predicated region
      $region75: #{yolo3_forward.15} parent=5 // pred_check
        %p496 = pneg %p495
      $region76: #{yolo3_forward.15} parent=5 // pred_check_branch
        %498 = sbr.rel (%p496) target = $region78
      $region77: #{yolo3_forward.15} parent=5 // pred_region
        %s499 = ssub.s32 %s8, 2
        // Predicated region
        $region79: #{yolo3_forward.15} parent=77 // pred_check
          %p500 = pneg %p89
        $region80: #{yolo3_forward.15} parent=77 // pred_check_branch
          %502 = sbr.rel (%p500) target = $region82
        $region81: #{yolo3_forward.15} parent=77 // pred_region
          %s503 = sand.u32 %s74, 1
          %s504 = sand.u32 %s74, 1
          %s505 = smul.addr %s504, 32
          %s506 = scalar_lea.vmem [#allocation3], %s505
        $region82: #{yolo3_forward.15} parent=77 // pred_fallthru
          _
      $region78: #{yolo3_forward.15} parent=5 // pred_fallthru
        _
    $region6: #{yolo3_forward.15} parent=1 // loop_footer
      %s12 = sadd.s32 1, %s8
    $region7: #{yolo3_forward.15} parent=1 // loop_footer_branch
      %7 = sbr.rel target = $region3
    $region8: #{yolo3_forward.15} parent=1 // loop_exit
      _

</llo_original>
